<compile_context>
chip_gen: v7x
topology: tpu7x:2x2x1
jax: 0.10.0
libtpu: 0.0.40
codegen_flags: <defaults>
</compile_context>

<pallas_src>
import math
import functools

import jax
import jax.numpy as jnp
from jax.experimental import pallas as pl
from jax.experimental.pallas import tpu as pltpu


# ----------------------------- Pallas kernel -------------------------------

def _arfnn_kernel(hidden_dims, n_lags, P, O, *refs):
    """Full autoregressive rollout for one batch block.

    refs = (base_ref, wxg_ref, alpha_ref, *weight_refs, out_ref)

      base_ref  : (n_lags, Bb, H0)  z_t @ Wz + b0 + (original-past window
                                    contribution at step t), precomputed
      wxg_ref   : (P, O, H0)        first-layer weight rows seen by generated
                                    step x_gen_{t-d}:  wxg[d-1]
      alpha_ref : (n_hidden,) SMEM  PReLU scalars
      weights   : [W_i (H_{i-1},H_i), b_i (1,H_i)] for i = 1..n_hidden-1,
                  Wf (H_last, O), bf (1, O)
      out_ref   : (Bb, n_lags*O)    lane-dense generated sequence
    """
    n_hidden = len(hidden_dims)
    base_ref, wxg_ref, a_ref = refs[0], refs[1], refs[2]
    n_w = 2 * (n_hidden - 1) + 2
    wrefs = refs[3:3 + n_w]
    out_ref = refs[3 + n_w]

    Bb = out_ref.shape[0]

    # ---- hoist every step-invariant load / broadcast out of the AR loop ----
    alphas = [a_ref[i] for i in range(n_hidden)]
    hidden_w = []
    for li in range(1, n_hidden):
        Wl = wrefs[2 * (li - 1)][...]
        bl = jnp.broadcast_to(wrefs[2 * (li - 1) + 1][...],
                              (Bb, hidden_dims[li]))
        hidden_w.append((Wl, bl))
    Wf = wrefs[n_w - 2][...]
    bf = jnp.broadcast_to(wrefs[n_w - 1][...], (Bb, O))
    n_lag_w = min(P, max(n_lags - 1, 0))
    wlag = [wxg_ref[k] for k in range(n_lag_w)]   # wlag[d-1] pairs with x_gen_{t-d}

    # TODO(synk): for large n_lags switch the outer unroll to lax.fori_loop
    # with a small VMEM ring of the last P generated steps to bound code size.
    # TODO(synk): advanced v5e/v6e option — hold each layer's RHS in MXU
    # staging regs via pltpu.matmul_push_rhs/acc_lhs across the t loop.
    gens = []  # register-resident generated steps
    for t in range(n_lags):   # static unroll; n_lags is small here
        h = base_ref[t]                                   # (Bb, H0), b0 folded in
        # contribution of previously generated steps still inside the window;
        # only d == 1 is on the serial dependency chain.
        for d in range(1, min(t, P) + 1):
            h = h + jnp.dot(gens[t - d], wlag[d - 1],
                            preferred_element_type=jnp.float32)
        h = jnp.where(h > 0, h, alphas[0] * h)            # PReLU
        # (no residual on the first block: L + P*O != hidden_dims[0]; enforced
        #  in the wrapper)

        for li in range(1, n_hidden):
            Wl, bl = hidden_w[li - 1]
            y = jnp.dot(h, Wl, preferred_element_type=jnp.float32) + bl
            y = jnp.where(y > 0, y, alphas[li] * y)       # PReLU
            if hidden_dims[li - 1] == hidden_dims[li]:
                y = h + y                                 # residual
            h = y

        x_gen = jnp.dot(h, Wf, preferred_element_type=jnp.float32) + bf  # (Bb, O)

        # Lane-0-based output slab; the single lane-dense HBM store is done by
        # the pipeline epilogue.  This store is off the dependency chain.
        out_ref[:, t * O:(t + 1) * O] = x_gen
        gens.append(x_gen)


# ------------------------------- wrapper ------------------------------------

def _choose_block_b(B):
    # Every per-step matmul is latency-bound (tiny H, K); extra LHS rows ride
    # the same MXU pass for free, so keep the whole batch in one block unless
    # a split still leaves >=128 rows per block (one full MXU row tile).
    if B <= 256:
        return B
    for cand in (256, 128):
        if B % cand == 0:
            return cand
    return B


def _vmem_limit_bytes(total_block_bytes):
    # double-buffered blocks + headroom; floor at the larger default scoped
    # limit (32 MiB), cap at 48 MiB so we stay under v7x's 64 MiB physical VMEM.
    need = 2 * total_block_bytes + (4 << 20)
    return int(min(max(need, 32 << 20), 48 << 20))


def arfnn_pallas(z, x_past, params, hidden_dims, block_b=None):
    B, n_lags, L = z.shape
    _, P, O = x_past.shape
    Wwin = P * O
    H0 = hidden_dims[0]
    n_hidden = len(hidden_dims)
    assert n_hidden >= 1
    if Wwin + L == hidden_dims[0]:
        # fast path has no residual branch for the first block
        raise NotImplementedError(
            "arfnn_pallas requires P*O + latent_dim != hidden_dims[0]")

    if block_b is None:
        block_b = _choose_block_b(B)
    assert B % block_b == 0
    n_blocks = B // block_b

    hp = jax.lax.Precision.HIGHEST  # wrapper-side precompute is cheap; keep exact

    # ---- wrapper-side precompute (plain XLA ops, not in-kernel) -------------
    W0, b0 = params[0], params[1]
    Wz, Wx = W0[:L, :], W0[L:, :]
    xp_flat = x_past.reshape(B, Wwin)

    # base[t] = z[:, t] @ Wz + b0 + contribution of the ORIGINAL past window
    # that is still inside the AR window at step t (window pos j < P - t).
    base = jnp.einsum("btl,lh->tbh", z, Wz, precision=hp) + b0[None]
    past_parts = []
    for t in range(n_lags):
        k = Wwin - t * O
        if k > 0:
            past_parts.append(jnp.dot(xp_flat[:, t * O:], Wx[:k, :], precision=hp))
        else:
            past_parts.append(jnp.zeros((B, H0), jnp.float32))
    base = base + jnp.stack(past_parts, axis=0)          # (n_lags, B, H0)

    # first-layer weight rows multiplying generated step x_gen_{t-d}
    # (window slot P-d -> rows [Wwin - d*O, Wwin - d*O + O)).
    wxg = jnp.stack(
        [Wx[Wwin - (k + 1) * O: Wwin - k * O, :] for k in range(P)], axis=0)

    # fold all PReLU scalars into one small SMEM array
    alphas = jnp.concatenate(
        [params[3 * i + 2].reshape(1) for i in range(n_hidden)])  # (n_hidden,)

    weights = []
    for i in range(1, n_hidden):
        weights += [params[3 * i], params[3 * i + 1]]
    weights += [params[3 * n_hidden], params[3 * n_hidden + 1]]

    kernel = functools.partial(_arfnn_kernel, tuple(hidden_dims), n_lags, P, O)

    in_specs = [
        pl.BlockSpec((n_lags, block_b, H0), lambda i: (0, i, 0)),
        pl.BlockSpec(wxg.shape, lambda i: (0, 0, 0)),
        pl.BlockSpec(memory_space=pltpu.MemorySpace.SMEM),   # PReLU scalars
    ]
    for w in weights:  # small weights / biases: replicate full arrays
        in_specs.append(pl.BlockSpec(w.shape, lambda i: (0, 0)))

    blk_bytes = 4 * (n_lags * block_b * H0 + P * O * H0
                     + sum(int(w.size) for w in weights)
                     + block_b * n_lags * O)

    out_flat = pl.pallas_call(
        kernel,
        out_shape=jax.ShapeDtypeStruct((B, n_lags * O), jnp.float32),
        grid=(n_blocks,),
        in_specs=in_specs,
        out_specs=pl.BlockSpec((block_b, n_lags * O), lambda i: (i, 0)),
        compiler_params=pltpu.CompilerParams(
            dimension_semantics=("parallel",),
            vmem_limit_bytes=_vmem_limit_bytes(blk_bytes)),
    )(base, wxg, alphas, *weights)

    return out_flat.reshape(B, n_lags, O)


# --------------------------- parameter creation -----------------------------

def init_params(key, input_dim, output_dim, hidden_dims, latent_dim):
    """Deterministic init matching the PyTorch module's shapes.

    nn.Linear(in, out): W stored here as (in, out) so y = x @ W + b.
    nn.PReLU(): single shared parameter, init 0.25.
    """
    params = []
    d_in = input_dim + latent_dim
    dims = [d_in] + list(hidden_dims)
    for i, hd in enumerate(hidden_dims):
        key, k1, k2 = jax.random.split(key, 3)
        bound = 1.0 / math.sqrt(dims[i])
        params.append(jax.random.uniform(k1, (dims[i], hd), jnp.float32, -bound, bound))
        params.append(jax.random.uniform(k2, (1, hd), jnp.float32, -bound, bound))
        params.append(jnp.full((1, 1), 0.25, jnp.float32))          # PReLU a
    key, k1, k2 = jax.random.split(key, 3)
    bound = 1.0 / math.sqrt(dims[-1])
    params.append(jax.random.uniform(k1, (dims[-1], output_dim), jnp.float32, -bound, bound))
    params.append(jax.random.uniform(k2, (1, output_dim), jnp.float32, -bound, bound))
    return params


# ----------------------------- pure-JAX reference ---------------------------

def arfnn_reference(z, x_past, params, hidden_dims):
    B, n_lags, L = z.shape
    _, P, O = x_past.shape
    xp = x_past.reshape(B, P * O)
    outs = []
    for t in range(n_lags):
        h = jnp.concatenate([z[:, t, :], xp], axis=-1)
        in_dim = h.shape[-1]
        pi = 0
        for hd in hidden_dims:
            W, b, a = params[pi], params[pi + 1], params[pi + 2]
            pi += 3
            y = jnp.dot(h, W, precision=jax.lax.Precision.HIGHEST) + b
            y = jnp.maximum(y, 0.0) + a * jnp.minimum(y, 0.0)
            if in_dim == hd:
                y = h + y
            h = y
            in_dim = hd
        x_gen = jnp.dot(h, params[pi], precision=jax.lax.Precision.HIGHEST) + params[pi + 1]
        outs.append(x_gen[:, None, :])
        xp = jnp.concatenate([xp[:, O:], x_gen], axis=-1)
    return jnp.concatenate(outs, axis=1)


# ---------------------------------- main ------------------------------------

if __name__ == "__main__":
    # Module config (small shapes): x_past window P=4 steps of O=4 features
    # => ResFNN input_dim = P*O = 16 (+ latent_dim), output_dim = O.
    B, P, O = 16, 4, 4
    latent_dim = 3
    hidden_dims = (32, 32)
    n_lags = 8
    input_dim = P * O
    output_dim = O

    key = jax.random.PRNGKey(0)
    k_params, k_xpast, k_z = jax.random.split(key, 3)

    params = init_params(k_params, input_dim, output_dim, hidden_dims, latent_dim)
    x_past = jax.random.normal(k_xpast, (B, P, O), jnp.float32)
    # torch.randn inside forward -> deterministic jax.random.normal drawn here.
    z = jax.random.normal(k_z, (B, n_lags, latent_dim), jnp.float32)

    out = arfnn_pallas(z, x_past, params, hidden_dims)
    out = jax.block_until_ready(out)

    ref = arfnn_reference(z, x_past, params, hidden_dims)
    assert out.shape == (B, n_lags, O)
    # tolerance documents MXU-default f32 precision in-kernel vs HIGHEST in
    # the reference, compounded over the autoregressive feedback.
    assert jnp.allclose(out, ref, rtol=2e-3, atol=2e-3), (
        f"max abs err = {jnp.max(jnp.abs(out - ref))}")

    print("KERNEL_OK")
</pallas_src>

<mosaic_0001>
module attributes {stable_mosaic.version = 11 : i64} {
  func.func @_arfnn_kernel(%arg0: i32, %arg1: memref<8x16x32xf32, #tpu.memory_space<vmem>>, %arg2: memref<4x4x32xf32, #tpu.memory_space<vmem>>, %arg3: memref<2xf32, #tpu.memory_space<smem>>, %arg4: memref<32x32xf32, #tpu.memory_space<vmem>>, %arg5: memref<1x32xf32, #tpu.memory_space<vmem>>, %arg6: memref<32x4xf32, #tpu.memory_space<vmem>>, %arg7: memref<1x4xf32, #tpu.memory_space<vmem>>, %arg8: memref<16x32xf32, #tpu.memory_space<vmem>>) attributes {dimension_semantics = [#tpu.dimension_semantics<parallel>], iteration_bounds = array<i64: 1>, scalar_prefetch = 0 : i64, scratch_operands = 0 : i64, tpu.core_type = #tpu.core_type<tc>, window_params = [{transform_indices = @transform_0, window_bounds = array<i64: 8, 16, 32>}, {pipeline_mode = #tpu.pipeline_mode<synchronous>, transform_indices = @transform_1, window_bounds = array<i64: 4, 4, 32>}, {transform_indices = @transform_2, window_bounds = array<i64: 2>}, {pipeline_mode = #tpu.pipeline_mode<synchronous>, transform_indices = @transform_3, window_bounds = array<i64: 32, 32>}, {pipeline_mode = #tpu.pipeline_mode<synchronous>, transform_indices = @transform_4, window_bounds = array<i64: 1, 32>}, {pipeline_mode = #tpu.pipeline_mode<synchronous>, transform_indices = @transform_5, window_bounds = array<i64: 32, 4>}, {pipeline_mode = #tpu.pipeline_mode<synchronous>, transform_indices = @transform_6, window_bounds = array<i64: 1, 4>}, {transform_indices = @transform_7, window_bounds = array<i64: 16, 32>}]} {
    %c0 = arith.constant 0 : index
    %0 = memref.load %arg3[%c0] : memref<2xf32, #tpu.memory_space<smem>>
    %c1 = arith.constant 1 : index
    %1 = memref.load %arg3[%c1] : memref<2xf32, #tpu.memory_space<smem>>
    %c0_0 = arith.constant 0 : index
    %c0_1 = arith.constant 0 : index
    %2 = vector.load %arg4[%c0_0, %c0_1] : memref<32x32xf32, #tpu.memory_space<vmem>>, vector<32x32xf32>
    %c0_2 = arith.constant 0 : index
    %c0_3 = arith.constant 0 : index
    %3 = vector.load %arg5[%c0_2, %c0_3] : memref<1x32xf32, #tpu.memory_space<vmem>>, vector<1x32xf32>
    %4 = vector.shape_cast %3 : vector<1x32xf32> to vector<1x32xf32>
    %5 = vector.broadcast %4 : vector<1x32xf32> to vector<16x32xf32>
    %c0_4 = arith.constant 0 : index
    %c0_5 = arith.constant 0 : index
    %6 = vector.load %arg6[%c0_4, %c0_5] : memref<32x4xf32, #tpu.memory_space<vmem>>, vector<32x4xf32>
    %c0_6 = arith.constant 0 : index
    %c0_7 = arith.constant 0 : index
    %7 = vector.load %arg7[%c0_6, %c0_7] : memref<1x4xf32, #tpu.memory_space<vmem>>, vector<1x4xf32>
    %8 = vector.shape_cast %7 : vector<1x4xf32> to vector<1x4xf32>
    %9 = vector.broadcast %8 : vector<1x4xf32> to vector<16x4xf32>
    %c0_8 = arith.constant 0 : index
    %c0_9 = arith.constant 0 : index
    %c0_10 = arith.constant 0 : index
    %10 = vector.load %arg2[%c0_8, %c0_9, %c0_10] : memref<4x4x32xf32, #tpu.memory_space<vmem>>, vector<1x4x32xf32>
    %11 = vector.shape_cast %10 : vector<1x4x32xf32> to vector<4x32xf32>
    %c1_11 = arith.constant 1 : index
    %c0_12 = arith.constant 0 : index
    %c0_13 = arith.constant 0 : index
    %12 = vector.load %arg2[%c1_11, %c0_12, %c0_13] : memref<4x4x32xf32, #tpu.memory_space<vmem>>, vector<1x4x32xf32>
    %13 = vector.shape_cast %12 : vector<1x4x32xf32> to vector<4x32xf32>
    %c2 = arith.constant 2 : index
    %c0_14 = arith.constant 0 : index
    %c0_15 = arith.constant 0 : index
    %14 = vector.load %arg2[%c2, %c0_14, %c0_15] : memref<4x4x32xf32, #tpu.memory_space<vmem>>, vector<1x4x32xf32>
    %15 = vector.shape_cast %14 : vector<1x4x32xf32> to vector<4x32xf32>
    %c3 = arith.constant 3 : index
    %c0_16 = arith.constant 0 : index
    %c0_17 = arith.constant 0 : index
    %16 = vector.load %arg2[%c3, %c0_16, %c0_17] : memref<4x4x32xf32, #tpu.memory_space<vmem>>, vector<1x4x32xf32>
    %17 = vector.shape_cast %16 : vector<1x4x32xf32> to vector<4x32xf32>
    %c0_18 = arith.constant 0 : index
    %c0_19 = arith.constant 0 : index
    %c0_20 = arith.constant 0 : index
    %18 = vector.load %arg1[%c0_18, %c0_19, %c0_20] : memref<8x16x32xf32, #tpu.memory_space<vmem>>, vector<1x16x32xf32>
    %19 = vector.shape_cast %18 : vector<1x16x32xf32> to vector<16x32xf32>
    %cst = arith.constant 0.000000e+00 : f32
    %20 = vector.broadcast %cst : f32 to vector<16x32xf32>
    %21 = arith.cmpf ogt, %19, %20 : vector<16x32xf32>
    %22 = vector.broadcast %0 : f32 to vector<16x32xf32>
    %23 = arith.mulf %22, %19 : vector<16x32xf32>
    %24 = arith.select %21, %19, %23 : vector<16x32xi1>, vector<16x32xf32>
    %cst_21 = arith.constant dense<0.000000e+00> : vector<16x32xf32>
    %25 = tpu.matmul %24, %2, %cst_21 {dimension_numbers = #tpu.dot_dimension_numbers<[1], [0], [0], [1], [0, 0, 1, 1], [], []>} : vector<16x32xf32>, vector<32x32xf32>, vector<16x32xf32> -> vector<16x32xf32>
    %26 = arith.addf %25, %5 : vector<16x32xf32>
    %cst_22 = arith.constant 0.000000e+00 : f32
    %27 = vector.broadcast %cst_22 : f32 to vector<16x32xf32>
    %28 = arith.cmpf ogt, %26, %27 : vector<16x32xf32>
    %29 = vector.broadcast %1 : f32 to vector<16x32xf32>
    %30 = arith.mulf %29, %26 : vector<16x32xf32>
    %31 = arith.select %28, %26, %30 : vector<16x32xi1>, vector<16x32xf32>
    %32 = arith.addf %24, %31 : vector<16x32xf32>
    %cst_23 = arith.constant dense<0.000000e+00> : vector<16x4xf32>
    %33 = tpu.matmul %32, %6, %cst_23 {dimension_numbers = #tpu.dot_dimension_numbers<[1], [0], [0], [1], [0, 0, 1, 1], [], []>} : vector<16x32xf32>, vector<32x4xf32>, vector<16x4xf32> -> vector<16x4xf32>
    %34 = arith.addf %33, %9 : vector<16x4xf32>
    %c0_24 = arith.constant 0 : index
    %c0_25 = arith.constant 0 : index
    %35 = vector.load %arg8[%c0_24, %c0_25] : memref<16x32xf32, #tpu.memory_space<vmem>>, vector<16x4xf32>
    tpu.vector_store %arg8[%c0_24, %c0_25], %34 {strides = array<i32>} : memref<16x32xf32, #tpu.memory_space<vmem>>, vector<16x4xf32>,
    %c1_26 = arith.constant 1 : index
    %c0_27 = arith.constant 0 : index
    %c0_28 = arith.constant 0 : index
    %36 = vector.load %arg1[%c1_26, %c0_27, %c0_28] : memref<8x16x32xf32, #tpu.memory_space<vmem>>, vector<1x16x32xf32>
    %37 = vector.shape_cast %36 : vector<1x16x32xf32> to vector<16x32xf32>
    %cst_29 = arith.constant dense<0.000000e+00> : vector<16x32xf32>
    %38 = tpu.matmul %34, %11, %cst_29 {dimension_numbers = #tpu.dot_dimension_numbers<[1], [0], [0], [1], [0, 0, 1, 1], [], []>} : vector<16x4xf32>, vector<4x32xf32>, vector<16x32xf32> -> vector<16x32xf32>
    %39 = arith.addf %37, %38 : vector<16x32xf32>
    %cst_30 = arith.constant 0.000000e+00 : f32
    %40 = vector.broadcast %cst_30 : f32 to vector<16x32xf32>
    %41 = arith.cmpf ogt, %39, %40 : vector<16x32xf32>
    %42 = vector.broadcast %0 : f32 to vector<16x32xf32>
    %43 = arith.mulf %42, %39 : vector<16x32xf32>
    %44 = arith.select %41, %39, %43 : vector<16x32xi1>, vector<16x32xf32>
    %cst_31 = arith.constant dense<0.000000e+00> : vector<16x32xf32>
    %45 = tpu.matmul %44, %2, %cst_31 {dimension_numbers = #tpu.dot_dimension_numbers<[1], [0], [0], [1], [0, 0, 1, 1], [], []>} : vector<16x32xf32>, vector<32x32xf32>, vector<16x32xf32> -> vector<16x32xf32>
    %46 = arith.addf %45, %5 : vector<16x32xf32>
    %cst_32 = arith.constant 0.000000e+00 : f32
    %47 = vector.broadcast %cst_32 : f32 to vector<16x32xf32>
    %48 = arith.cmpf ogt, %46, %47 : vector<16x32xf32>
    %49 = vector.broadcast %1 : f32 to vector<16x32xf32>
    %50 = arith.mulf %49, %46 : vector<16x32xf32>
    %51 = arith.select %48, %46, %50 : vector<16x32xi1>, vector<16x32xf32>
    %52 = arith.addf %44, %51 : vector<16x32xf32>
    %cst_33 = arith.constant dense<0.000000e+00> : vector<16x4xf32>
    %53 = tpu.matmul %52, %6, %cst_33 {dimension_numbers = #tpu.dot_dimension_numbers<[1], [0], [0], [1], [0, 0, 1, 1], [], []>} : vector<16x32xf32>, vector<32x4xf32>, vector<16x4xf32> -> vector<16x4xf32>
    %54 = arith.addf %53, %9 : vector<16x4xf32>
    %c0_34 = arith.constant 0 : index
    %c4 = arith.constant 4 : index
    %55 = vector.load %arg8[%c0_34, %c4] : memref<16x32xf32, #tpu.memory_space<vmem>>, vector<16x4xf32>
    tpu.vector_store %arg8[%c0_34, %c4], %54 {strides = array<i32>} : memref<16x32xf32, #tpu.memory_space<vmem>>, vector<16x4xf32>,
    %c2_35 = arith.constant 2 : index
    %c0_36 = arith.constant 0 : index
    %c0_37 = arith.constant 0 : index
    %56 = vector.load %arg1[%c2_35, %c0_36, %c0_37] : memref<8x16x32xf32, #tpu.memory_space<vmem>>, vector<1x16x32xf32>
    %57 = vector.shape_cast %56 : vector<1x16x32xf32> to vector<16x32xf32>
    %cst_38 = arith.constant dense<0.000000e+00> : vector<16x32xf32>
    %58 = tpu.matmul %54, %11, %cst_38 {dimension_numbers = #tpu.dot_dimension_numbers<[1], [0], [0], [1], [0, 0, 1, 1], [], []>} : vector<16x4xf32>, vector<4x32xf32>, vector<16x32xf32> -> vector<16x32xf32>
    %59 = arith.addf %57, %58 : vector<16x32xf32>
    %cst_39 = arith.constant dense<0.000000e+00> : vector<16x32xf32>
    %60 = tpu.matmul %34, %13, %cst_39 {dimension_numbers = #tpu.dot_dimension_numbers<[1], [0], [0], [1], [0, 0, 1, 1], [], []>} : vector<16x4xf32>, vector<4x32xf32>, vector<16x32xf32> -> vector<16x32xf32>
    %61 = arith.addf %59, %60 : vector<16x32xf32>
    %cst_40 = arith.constant 0.000000e+00 : f32
    %62 = vector.broadcast %cst_40 : f32 to vector<16x32xf32>
    %63 = arith.cmpf ogt, %61, %62 : vector<16x32xf32>
    %64 = vector.broadcast %0 : f32 to vector<16x32xf32>
    %65 = arith.mulf %64, %61 : vector<16x32xf32>
    %66 = arith.select %63, %61, %65 : vector<16x32xi1>, vector<16x32xf32>
    %cst_41 = arith.constant dense<0.000000e+00> : vector<16x32xf32>
    %67 = tpu.matmul %66, %2, %cst_41 {dimension_numbers = #tpu.dot_dimension_numbers<[1], [0], [0], [1], [0, 0, 1, 1], [], []>} : vector<16x32xf32>, vector<32x32xf32>, vector<16x32xf32> -> vector<16x32xf32>
    %68 = arith.addf %67, %5 : vector<16x32xf32>
    %cst_42 = arith.constant 0.000000e+00 : f32
    %69 = vector.broadcast %cst_42 : f32 to vector<16x32xf32>
    %70 = arith.cmpf ogt, %68, %69 : vector<16x32xf32>
    %71 = vector.broadcast %1 : f32 to vector<16x32xf32>
    %72 = arith.mulf %71, %68 : vector<16x32xf32>
    %73 = arith.select %70, %68, %72 : vector<16x32xi1>, vector<16x32xf32>
    %74 = arith.addf %66, %73 : vector<16x32xf32>
    %cst_43 = arith.constant dense<0.000000e+00> : vector<16x4xf32>
    %75 = tpu.matmul %74, %6, %cst_43 {dimension_numbers = #tpu.dot_dimension_numbers<[1], [0], [0], [1], [0, 0, 1, 1], [], []>} : vector<16x32xf32>, vector<32x4xf32>, vector<16x4xf32> -> vector<16x4xf32>
    %76 = arith.addf %75, %9 : vector<16x4xf32>
    %c0_44 = arith.constant 0 : index
    %c8 = arith.constant 8 : index
    %77 = vector.load %arg8[%c0_44, %c8] : memref<16x32xf32, #tpu.memory_space<vmem>>, vector<16x4xf32>
    tpu.vector_store %arg8[%c0_44, %c8], %76 {strides = array<i32>} : memref<16x32xf32, #tpu.memory_space<vmem>>, vector<16x4xf32>,
    %c3_45 = arith.constant 3 : index
    %c0_46 = arith.constant 0 : index
    %c0_47 = arith.constant 0 : index
    %78 = vector.load %arg1[%c3_45, %c0_46, %c0_47] : memref<8x16x32xf32, #tpu.memory_space<vmem>>, vector<1x16x32xf32>
    %79 = vector.shape_cast %78 : vector<1x16x32xf32> to vector<16x32xf32>
    %cst_48 = arith.constant dense<0.000000e+00> : vector<16x32xf32>
    %80 = tpu.matmul %76, %11, %cst_48 {dimension_numbers = #tpu.dot_dimension_numbers<[1], [0], [0], [1], [0, 0, 1, 1], [], []>} : vector<16x4xf32>, vector<4x32xf32>, vector<16x32xf32> -> vector<16x32xf32>
    %81 = arith.addf %79, %80 : vector<16x32xf32>
    %cst_49 = arith.constant dense<0.000000e+00> : vector<16x32xf32>
    %82 = tpu.matmul %54, %13, %cst_49 {dimension_numbers = #tpu.dot_dimension_numbers<[1], [0], [0], [1], [0, 0, 1, 1], [], []>} : vector<16x4xf32>, vector<4x32xf32>, vector<16x32xf32> -> vector<16x32xf32>
    %83 = arith.addf %81, %82 : vector<16x32xf32>
    %cst_50 = arith.constant dense<0.000000e+00> : vector<16x32xf32>
    %84 = tpu.matmul %34, %15, %cst_50 {dimension_numbers = #tpu.dot_dimension_numbers<[1], [0], [0], [1], [0, 0, 1, 1], [], []>} : vector<16x4xf32>, vector<4x32xf32>, vector<16x32xf32> -> vector<16x32xf32>
    %85 = arith.addf %83, %84 : vector<16x32xf32>
    %cst_51 = arith.constant 0.000000e+00 : f32
    %86 = vector.broadcast %cst_51 : f32 to vector<16x32xf32>
    %87 = arith.cmpf ogt, %85, %86 : vector<16x32xf32>
    %88 = vector.broadcast %0 : f32 to vector<16x32xf32>
    %89 = arith.mulf %88, %85 : vector<16x32xf32>
    %90 = arith.select %87, %85, %89 : vector<16x32xi1>, vector<16x32xf32>
    %cst_52 = arith.constant dense<0.000000e+00> : vector<16x32xf32>
    %91 = tpu.matmul %90, %2, %cst_52 {dimension_numbers = #tpu.dot_dimension_numbers<[1], [0], [0], [1], [0, 0, 1, 1], [], []>} : vector<16x32xf32>, vector<32x32xf32>, vector<16x32xf32> -> vector<16x32xf32>
    %92 = arith.addf %91, %5 : vector<16x32xf32>
    %cst_53 = arith.constant 0.000000e+00 : f32
    %93 = vector.broadcast %cst_53 : f32 to vector<16x32xf32>
    %94 = arith.cmpf ogt, %92, %93 : vector<16x32xf32>
    %95 = vector.broadcast %1 : f32 to vector<16x32xf32>
    %96 = arith.mulf %95, %92 : vector<16x32xf32>
    %97 = arith.select %94, %92, %96 : vector<16x32xi1>, vector<16x32xf32>
    %98 = arith.addf %90, %97 : vector<16x32xf32>
    %cst_54 = arith.constant dense<0.000000e+00> : vector<16x4xf32>
    %99 = tpu.matmul %98, %6, %cst_54 {dimension_numbers = #tpu.dot_dimension_numbers<[1], [0], [0], [1], [0, 0, 1, 1], [], []>} : vector<16x32xf32>, vector<32x4xf32>, vector<16x4xf32> -> vector<16x4xf32>
    %100 = arith.addf %99, %9 : vector<16x4xf32>
    %c0_55 = arith.constant 0 : index
    %c12 = arith.constant 12 : index
    %101 = vector.load %arg8[%c0_55, %c12] : memref<16x32xf32, #tpu.memory_space<vmem>>, vector<16x4xf32>
    tpu.vector_store %arg8[%c0_55, %c12], %100 {strides = array<i32>} : memref<16x32xf32, #tpu.memory_space<vmem>>, vector<16x4xf32>,
    %c4_56 = arith.constant 4 : index
    %c0_57 = arith.constant 0 : index
    %c0_58 = arith.constant 0 : index
    %102 = vector.load %arg1[%c4_56, %c0_57, %c0_58] : memref<8x16x32xf32, #tpu.memory_space<vmem>>, vector<1x16x32xf32>
    %103 = vector.shape_cast %102 : vector<1x16x32xf32> to vector<16x32xf32>
    %cst_59 = arith.constant dense<0.000000e+00> : vector<16x32xf32>
    %104 = tpu.matmul %100, %11, %cst_59 {dimension_numbers = #tpu.dot_dimension_numbers<[1], [0], [0], [1], [0, 0, 1, 1], [], []>} : vector<16x4xf32>, vector<4x32xf32>, vector<16x32xf32> -> vector<16x32xf32>
    %105 = arith.addf %103, %104 : vector<16x32xf32>
    %cst_60 = arith.constant dense<0.000000e+00> : vector<16x32xf32>
    %106 = tpu.matmul %76, %13, %cst_60 {dimension_numbers = #tpu.dot_dimension_numbers<[1], [0], [0], [1], [0, 0, 1, 1], [], []>} : vector<16x4xf32>, vector<4x32xf32>, vector<16x32xf32> -> vector<16x32xf32>
    %107 = arith.addf %105, %106 : vector<16x32xf32>
    %cst_61 = arith.constant dense<0.000000e+00> : vector<16x32xf32>
    %108 = tpu.matmul %54, %15, %cst_61 {dimension_numbers = #tpu.dot_dimension_numbers<[1], [0], [0], [1], [0, 0, 1, 1], [], []>} : vector<16x4xf32>, vector<4x32xf32>, vector<16x32xf32> -> vector<16x32xf32>
    %109 = arith.addf %107, %108 : vector<16x32xf32>
    %cst_62 = arith.constant dense<0.000000e+00> : vector<16x32xf32>
    %110 = tpu.matmul %34, %17, %cst_62 {dimension_numbers = #tpu.dot_dimension_numbers<[1], [0], [0], [1], [0, 0, 1, 1], [], []>} : vector<16x4xf32>, vector<4x32xf32>, vector<16x32xf32> -> vector<16x32xf32>
    %111 = arith.addf %109, %110 : vector<16x32xf32>
    %cst_63 = arith.constant 0.000000e+00 : f32
    %112 = vector.broadcast %cst_63 : f32 to vector<16x32xf32>
    %113 = arith.cmpf ogt, %111, %112 : vector<16x32xf32>
    %114 = vector.broadcast %0 : f32 to vector<16x32xf32>
    %115 = arith.mulf %114, %111 : vector<16x32xf32>
    %116 = arith.select %113, %111, %115 : vector<16x32xi1>, vector<16x32xf32>
    %cst_64 = arith.constant dense<0.000000e+00> : vector<16x32xf32>
    %117 = tpu.matmul %116, %2, %cst_64 {dimension_numbers = #tpu.dot_dimension_numbers<[1], [0], [0], [1], [0, 0, 1, 1], [], []>} : vector<16x32xf32>, vector<32x32xf32>, vector<16x32xf32> -> vector<16x32xf32>
    %118 = arith.addf %117, %5 : vector<16x32xf32>
    %cst_65 = arith.constant 0.000000e+00 : f32
    %119 = vector.broadcast %cst_65 : f32 to vector<16x32xf32>
    %120 = arith.cmpf ogt, %118, %119 : vector<16x32xf32>
    %121 = vector.broadcast %1 : f32 to vector<16x32xf32>
    %122 = arith.mulf %121, %118 : vector<16x32xf32>
    %123 = arith.select %120, %118, %122 : vector<16x32xi1>, vector<16x32xf32>
    %124 = arith.addf %116, %123 : vector<16x32xf32>
    %cst_66 = arith.constant dense<0.000000e+00> : vector<16x4xf32>
    %125 = tpu.matmul %124, %6, %cst_66 {dimension_numbers = #tpu.dot_dimension_numbers<[1], [0], [0], [1], [0, 0, 1, 1], [], []>} : vector<16x32xf32>, vector<32x4xf32>, vector<16x4xf32> -> vector<16x4xf32>
    %126 = arith.addf %125, %9 : vector<16x4xf32>
    %c0_67 = arith.constant 0 : index
    %c16 = arith.constant 16 : index
    %127 = vector.load %arg8[%c0_67, %c16] : memref<16x32xf32, #tpu.memory_space<vmem>>, vector<16x4xf32>
    tpu.vector_store %arg8[%c0_67, %c16], %126 {strides = array<i32>} : memref<16x32xf32, #tpu.memory_space<vmem>>, vector<16x4xf32>,
    %c5 = arith.constant 5 : index
    %c0_68 = arith.constant 0 : index
    %c0_69 = arith.constant 0 : index
    %128 = vector.load %arg1[%c5, %c0_68, %c0_69] : memref<8x16x32xf32, #tpu.memory_space<vmem>>, vector<1x16x32xf32>
    %129 = vector.shape_cast %128 : vector<1x16x32xf32> to vector<16x32xf32>
    %cst_70 = arith.constant dense<0.000000e+00> : vector<16x32xf32>
    %130 = tpu.matmul %126, %11, %cst_70 {dimension_numbers = #tpu.dot_dimension_numbers<[1], [0], [0], [1], [0, 0, 1, 1], [], []>} : vector<16x4xf32>, vector<4x32xf32>, vector<16x32xf32> -> vector<16x32xf32>
    %131 = arith.addf %129, %130 : vector<16x32xf32>
    %cst_71 = arith.constant dense<0.000000e+00> : vector<16x32xf32>
    %132 = tpu.matmul %100, %13, %cst_71 {dimension_numbers = #tpu.dot_dimension_numbers<[1], [0], [0], [1], [0, 0, 1, 1], [], []>} : vector<16x4xf32>, vector<4x32xf32>, vector<16x32xf32> -> vector<16x32xf32>
    %133 = arith.addf %131, %132 : vector<16x32xf32>
    %cst_72 = arith.constant dense<0.000000e+00> : vector<16x32xf32>
    %134 = tpu.matmul %76, %15, %cst_72 {dimension_numbers = #tpu.dot_dimension_numbers<[1], [0], [0], [1], [0, 0, 1, 1], [], []>} : vector<16x4xf32>, vector<4x32xf32>, vector<16x32xf32> -> vector<16x32xf32>
    %135 = arith.addf %133, %134 : vector<16x32xf32>
    %cst_73 = arith.constant dense<0.000000e+00> : vector<16x32xf32>
    %136 = tpu.matmul %54, %17, %cst_73 {dimension_numbers = #tpu.dot_dimension_numbers<[1], [0], [0], [1], [0, 0, 1, 1], [], []>} : vector<16x4xf32>, vector<4x32xf32>, vector<16x32xf32> -> vector<16x32xf32>
    %137 = arith.addf %135, %136 : vector<16x32xf32>
    %cst_74 = arith.constant 0.000000e+00 : f32
    %138 = vector.broadcast %cst_74 : f32 to vector<16x32xf32>
    %139 = arith.cmpf ogt, %137, %138 : vector<16x32xf32>
    %140 = vector.broadcast %0 : f32 to vector<16x32xf32>
    %141 = arith.mulf %140, %137 : vector<16x32xf32>
    %142 = arith.select %139, %137, %141 : vector<16x32xi1>, vector<16x32xf32>
    %cst_75 = arith.constant dense<0.000000e+00> : vector<16x32xf32>
    %143 = tpu.matmul %142, %2, %cst_75 {dimension_numbers = #tpu.dot_dimension_numbers<[1], [0], [0], [1], [0, 0, 1, 1], [], []>} : vector<16x32xf32>, vector<32x32xf32>, vector<16x32xf32> -> vector<16x32xf32>
    %144 = arith.addf %143, %5 : vector<16x32xf32>
    %cst_76 = arith.constant 0.000000e+00 : f32
    %145 = vector.broadcast %cst_76 : f32 to vector<16x32xf32>
    %146 = arith.cmpf ogt, %144, %145 : vector<16x32xf32>
    %147 = vector.broadcast %1 : f32 to vector<16x32xf32>
    %148 = arith.mulf %147, %144 : vector<16x32xf32>
    %149 = arith.select %146, %144, %148 : vector<16x32xi1>, vector<16x32xf32>
    %150 = arith.addf %142, %149 : vector<16x32xf32>
    %cst_77 = arith.constant dense<0.000000e+00> : vector<16x4xf32>
    %151 = tpu.matmul %150, %6, %cst_77 {dimension_numbers = #tpu.dot_dimension_numbers<[1], [0], [0], [1], [0, 0, 1, 1], [], []>} : vector<16x32xf32>, vector<32x4xf32>, vector<16x4xf32> -> vector<16x4xf32>
    %152 = arith.addf %151, %9 : vector<16x4xf32>
    %c0_78 = arith.constant 0 : index
    %c20 = arith.constant 20 : index
    %153 = vector.load %arg8[%c0_78, %c20] : memref<16x32xf32, #tpu.memory_space<vmem>>, vector<16x4xf32>
    tpu.vector_store %arg8[%c0_78, %c20], %152 {strides = array<i32>} : memref<16x32xf32, #tpu.memory_space<vmem>>, vector<16x4xf32>,
    %c6 = arith.constant 6 : index
    %c0_79 = arith.constant 0 : index
    %c0_80 = arith.constant 0 : index
    %154 = vector.load %arg1[%c6, %c0_79, %c0_80] : memref<8x16x32xf32, #tpu.memory_space<vmem>>, vector<1x16x32xf32>
    %155 = vector.shape_cast %154 : vector<1x16x32xf32> to vector<16x32xf32>
    %cst_81 = arith.constant dense<0.000000e+00> : vector<16x32xf32>
    %156 = tpu.matmul %152, %11, %cst_81 {dimension_numbers = #tpu.dot_dimension_numbers<[1], [0], [0], [1], [0, 0, 1, 1], [], []>} : vector<16x4xf32>, vector<4x32xf32>, vector<16x32xf32> -> vector<16x32xf32>
    %157 = arith.addf %155, %156 : vector<16x32xf32>
    %cst_82 = arith.constant dense<0.000000e+00> : vector<16x32xf32>
    %158 = tpu.matmul %126, %13, %cst_82 {dimension_numbers = #tpu.dot_dimension_numbers<[1], [0], [0], [1], [0, 0, 1, 1], [], []>} : vector<16x4xf32>, vector<4x32xf32>, vector<16x32xf32> -> vector<16x32xf32>
    %159 = arith.addf %157, %158 : vector<16x32xf32>
    %cst_83 = arith.constant dense<0.000000e+00> : vector<16x32xf32>
    %160 = tpu.matmul %100, %15, %cst_83 {dimension_numbers = #tpu.dot_dimension_numbers<[1], [0], [0], [1], [0, 0, 1, 1], [], []>} : vector<16x4xf32>, vector<4x32xf32>, vector<16x32xf32> -> vector<16x32xf32>
    %161 = arith.addf %159, %160 : vector<16x32xf32>
    %cst_84 = arith.constant dense<0.000000e+00> : vector<16x32xf32>
    %162 = tpu.matmul %76, %17, %cst_84 {dimension_numbers = #tpu.dot_dimension_numbers<[1], [0], [0], [1], [0, 0, 1, 1], [], []>} : vector<16x4xf32>, vector<4x32xf32>, vector<16x32xf32> -> vector<16x32xf32>
    %163 = arith.addf %161, %162 : vector<16x32xf32>
    %cst_85 = arith.constant 0.000000e+00 : f32
    %164 = vector.broadcast %cst_85 : f32 to vector<16x32xf32>
    %165 = arith.cmpf ogt, %163, %164 : vector<16x32xf32>
    %166 = vector.broadcast %0 : f32 to vector<16x32xf32>
    %167 = arith.mulf %166, %163 : vector<16x32xf32>
    %168 = arith.select %165, %163, %167 : vector<16x32xi1>, vector<16x32xf32>
    %cst_86 = arith.constant dense<0.000000e+00> : vector<16x32xf32>
    %169 = tpu.matmul %168, %2, %cst_86 {dimension_numbers = #tpu.dot_dimension_numbers<[1], [0], [0], [1], [0, 0, 1, 1], [], []>} : vector<16x32xf32>, vector<32x32xf32>, vector<16x32xf32> -> vector<16x32xf32>
    %170 = arith.addf %169, %5 : vector<16x32xf32>
    %cst_87 = arith.constant 0.000000e+00 : f32
    %171 = vector.broadcast %cst_87 : f32 to vector<16x32xf32>
    %172 = arith.cmpf ogt, %170, %171 : vector<16x32xf32>
    %173 = vector.broadcast %1 : f32 to vector<16x32xf32>
    %174 = arith.mulf %173, %170 : vector<16x32xf32>
    %175 = arith.select %172, %170, %174 : vector<16x32xi1>, vector<16x32xf32>
    %176 = arith.addf %168, %175 : vector<16x32xf32>
    %cst_88 = arith.constant dense<0.000000e+00> : vector<16x4xf32>
    %177 = tpu.matmul %176, %6, %cst_88 {dimension_numbers = #tpu.dot_dimension_numbers<[1], [0], [0], [1], [0, 0, 1, 1], [], []>} : vector<16x32xf32>, vector<32x4xf32>, vector<16x4xf32> -> vector<16x4xf32>
    %178 = arith.addf %177, %9 : vector<16x4xf32>
    %c0_89 = arith.constant 0 : index
    %c24 = arith.constant 24 : index
    %179 = vector.load %arg8[%c0_89, %c24] : memref<16x32xf32, #tpu.memory_space<vmem>>, vector<16x4xf32>
    tpu.vector_store %arg8[%c0_89, %c24], %178 {strides = array<i32>} : memref<16x32xf32, #tpu.memory_space<vmem>>, vector<16x4xf32>,
    %c7 = arith.constant 7 : index
    %c0_90 = arith.constant 0 : index
    %c0_91 = arith.constant 0 : index
    %180 = vector.load %arg1[%c7, %c0_90, %c0_91] : memref<8x16x32xf32, #tpu.memory_space<vmem>>, vector<1x16x32xf32>
    %181 = vector.shape_cast %180 : vector<1x16x32xf32> to vector<16x32xf32>
    %cst_92 = arith.constant dense<0.000000e+00> : vector<16x32xf32>
    %182 = tpu.matmul %178, %11, %cst_92 {dimension_numbers = #tpu.dot_dimension_numbers<[1], [0], [0], [1], [0, 0, 1, 1], [], []>} : vector<16x4xf32>, vector<4x32xf32>, vector<16x32xf32> -> vector<16x32xf32>
    %183 = arith.addf %181, %182 : vector<16x32xf32>
    %cst_93 = arith.constant dense<0.000000e+00> : vector<16x32xf32>
    %184 = tpu.matmul %152, %13, %cst_93 {dimension_numbers = #tpu.dot_dimension_numbers<[1], [0], [0], [1], [0, 0, 1, 1], [], []>} : vector<16x4xf32>, vector<4x32xf32>, vector<16x32xf32> -> vector<16x32xf32>
    %185 = arith.addf %183, %184 : vector<16x32xf32>
    %cst_94 = arith.constant dense<0.000000e+00> : vector<16x32xf32>
    %186 = tpu.matmul %126, %15, %cst_94 {dimension_numbers = #tpu.dot_dimension_numbers<[1], [0], [0], [1], [0, 0, 1, 1], [], []>} : vector<16x4xf32>, vector<4x32xf32>, vector<16x32xf32> -> vector<16x32xf32>
    %187 = arith.addf %185, %186 : vector<16x32xf32>
    %cst_95 = arith.constant dense<0.000000e+00> : vector<16x32xf32>
    %188 = tpu.matmul %100, %17, %cst_95 {dimension_numbers = #tpu.dot_dimension_numbers<[1], [0], [0], [1], [0, 0, 1, 1], [], []>} : vector<16x4xf32>, vector<4x32xf32>, vector<16x32xf32> -> vector<16x32xf32>
    %189 = arith.addf %187, %188 : vector<16x32xf32>
    %cst_96 = arith.constant 0.000000e+00 : f32
    %190 = vector.broadcast %cst_96 : f32 to vector<16x32xf32>
    %191 = arith.cmpf ogt, %189, %190 : vector<16x32xf32>
    %192 = vector.broadcast %0 : f32 to vector<16x32xf32>
    %193 = arith.mulf %192, %189 : vector<16x32xf32>
    %194 = arith.select %191, %189, %193 : vector<16x32xi1>, vector<16x32xf32>
    %cst_97 = arith.constant dense<0.000000e+00> : vector<16x32xf32>
    %195 = tpu.matmul %194, %2, %cst_97 {dimension_numbers = #tpu.dot_dimension_numbers<[1], [0], [0], [1], [0, 0, 1, 1], [], []>} : vector<16x32xf32>, vector<32x32xf32>, vector<16x32xf32> -> vector<16x32xf32>
    %196 = arith.addf %195, %5 : vector<16x32xf32>
    %cst_98 = arith.constant 0.000000e+00 : f32
    %197 = vector.broadcast %cst_98 : f32 to vector<16x32xf32>
    %198 = arith.cmpf ogt, %196, %197 : vector<16x32xf32>
    %199 = vector.broadcast %1 : f32 to vector<16x32xf32>
    %200 = arith.mulf %199, %196 : vector<16x32xf32>
    %201 = arith.select %198, %196, %200 : vector<16x32xi1>, vector<16x32xf32>
    %202 = arith.addf %194, %201 : vector<16x32xf32>
    %cst_99 = arith.constant dense<0.000000e+00> : vector<16x4xf32>
    %203 = tpu.matmul %202, %6, %cst_99 {dimension_numbers = #tpu.dot_dimension_numbers<[1], [0], [0], [1], [0, 0, 1, 1], [], []>} : vector<16x32xf32>, vector<32x4xf32>, vector<16x4xf32> -> vector<16x4xf32>
    %204 = arith.addf %203, %9 : vector<16x4xf32>
    %c0_100 = arith.constant 0 : index
    %c28 = arith.constant 28 : index
    %205 = vector.load %arg8[%c0_100, %c28] : memref<16x32xf32, #tpu.memory_space<vmem>>, vector<16x4xf32>
    tpu.vector_store %arg8[%c0_100, %c28], %204 {strides = array<i32>} : memref<16x32xf32, #tpu.memory_space<vmem>>, vector<16x4xf32>,
    return
  }
  func.func @transform_0(%arg0: i32) -> (i32, i32, i32) {
    %c0_i32 = arith.constant 0 : i32
    %c0_i32_0 = arith.constant 0 : i32
    %c0_i32_1 = arith.constant 0 : i32
    return %c0_i32, %arg0, %c0_i32_0 : i32, i32, i32
  }
  func.func @transform_1(%arg0: i32) -> (i32, i32, i32) {
    %c0_i32 = arith.constant 0 : i32
    %c0_i32_0 = arith.constant 0 : i32
    %c0_i32_1 = arith.constant 0 : i32
    %c0_i32_2 = arith.constant 0 : i32
    return %c0_i32, %c0_i32_0, %c0_i32_1 : i32, i32, i32
  }
  func.func @transform_2(%arg0: i32) -> i32 {
    %c0_i32 = arith.constant 0 : i32
    %c0_i32_0 = arith.constant 0 : i32
    return %c0_i32 : i32
  }
  func.func @transform_3(%arg0: i32) -> (i32, i32) {
    %c0_i32 = arith.constant 0 : i32
    %c0_i32_0 = arith.constant 0 : i32
    %c0_i32_1 = arith.constant 0 : i32
    return %c0_i32, %c0_i32_0 : i32, i32
  }
  func.func @transform_4(%arg0: i32) -> (i32, i32) {
    %c0_i32 = arith.constant 0 : i32
    %c0_i32_0 = arith.constant 0 : i32
    %c0_i32_1 = arith.constant 0 : i32
    return %c0_i32, %c0_i32_0 : i32, i32
  }
  func.func @transform_5(%arg0: i32) -> (i32, i32) {
    %c0_i32 = arith.constant 0 : i32
    %c0_i32_0 = arith.constant 0 : i32
    %c0_i32_1 = arith.constant 0 : i32
    return %c0_i32, %c0_i32_0 : i32, i32
  }
  func.func @transform_6(%arg0: i32) -> (i32, i32) {
    %c0_i32 = arith.constant 0 : i32
    %c0_i32_0 = arith.constant 0 : i32
    %c0_i32_1 = arith.constant 0 : i32
    return %c0_i32, %c0_i32_0 : i32, i32
  }
  func.func @transform_7(%arg0: i32) -> (i32, i32) {
    %c0_i32 = arith.constant 0 : i32
    %c0_i32_0 = arith.constant 0 : i32
    return %arg0, %c0_i32 : i32, i32
  }
}

</mosaic_0001>

<llo_original>
// kernel: tpu_custom_call.1
$region0: #{tpu_custom_call.1}
  #allocation0 [shape = 'u32[]', space=smem, size = 0x4, offset = 0x4, fixed_abs, tag = 'smem constant byte address 0x4 - core index']
  #allocation1 [shape = 'u32[144,128]{1,0:T(1,128)}', space=vmem, size = 0x12000, scoped, tag = 'internal scratch']
  %s0 = inlined_call_operand.hbm [shape: f32[8,16,32], index: 0, kind: input, shape index: {}]
  %s1 = inlined_call_operand.hbm [shape: f32[4,4,32], index: 1, kind: input, shape index: {}]
  %s2 = inlined_call_operand.vmem [shape: f32[2], index: 2, kind: input, shape index: {}]
  %s3 = inlined_call_operand.vmem [shape: f32[32,32], index: 3, kind: input, shape index: {}]
  %s4 = inlined_call_operand.vmem [shape: f32[1,32], index: 4, kind: input, shape index: {}]
  %s5 = inlined_call_operand.vmem [shape: f32[32,4], index: 5, kind: input, shape index: {}]
  %s6 = inlined_call_operand.vmem [shape: f32[1,4], index: 6, kind: input, shape index: {}]
  %s7 = inlined_call_operand.hbm [shape: f32[16,32], index: 7, kind: output, shape index: {}]
  %s8 = sld [smem:[#allocation0]]
  $region50: #{tpu_custom_call.1} parent=0
    _
  %s10 = ssub.s32 1, %s8
  %s11 = scalar_select 0, %s10, %s8
  $region1: #{tpu_custom_call.1} parent=0
    #allocation2 [shape = 'u8[65536]{0}', space=vmem, size = 0x10000, scoped, tag = 'input window, operand 0, single buffered']
    #allocation3 [shape = 's32[1]{0}', space=sflag, size = 0x4, scoped, tag = 'scoped memory for tpu_custom_call.1']
    #allocation4 [shape = 's32[1]{0}', space=sflag, size = 0x4, scoped, tag = 'scoped memory for tpu_custom_call.1']
    #allocation5 [shape = 's32[1]{0}', space=sflag, size = 0x4, scoped, tag = 'scoped memory for tpu_custom_call.1']
    #allocation6 [shape = 'u8[8192]{0}', space=vmem, size = 0x2000, scoped, tag = 'input window, operand 1, single buffered']
    #allocation7 [shape = 's32[1]{0}', space=sflag, size = 0x4, scoped, tag = 'scoped memory for tpu_custom_call.1']
    #allocation8 [shape = 'u8[512]{0}', space=smem, size = 0x200, scoped, tag = 'input window, operand 2, single buffered']
    #allocation9 [shape = 'u8[8192]{0}', space=vmem, size = 0x2000, scoped, tag = 'output window, operand 0, single buffered']
    %12 = vsyncpa [#allocation3], 0
    %13 = vsyncpa [#allocation7], 0
    %14 = vsyncpa [#allocation5], 0
    %15 = vsyncpa [#allocation4], 0
    // Predicated region
    $region2: #{tpu_custom_call.1} parent=1 // pred_check
      _
    $region3: #{tpu_custom_call.1} parent=1 // pred_check_branch
      %17 = sbr.rel (0) target = $region5
    $region4: #{tpu_custom_call.1} parent=1 // pred_region
      %s19 = ssub.s32 2048, 2048
      %20 = vsyncadd [#allocation3], %s19
      %s21 = sshll.u32 [#allocation2], 4
      %s22 = int_to_ptr.vmem [resolvable:$true] %s21
      %27 = dma.hbm_to_vmem [thread:$0]  %s0, 2048, %s22, [#allocation3], 128, 128, 8
    $region5: #{tpu_custom_call.1} parent=1 // pred_fallthru
      _
    // Predicated region
    $region6: #{tpu_custom_call.1} parent=1 // pred_check
      _
    $region7: #{tpu_custom_call.1} parent=1 // pred_check_branch
      %29 = sbr.rel (0) target = $region9
    $region8: #{tpu_custom_call.1} parent=1 // pred_region
      %s31 = ssub.s32 256, 256
      %32 = vsyncadd [#allocation7], %s31
      %s33 = sshll.u32 [#allocation6], 4
      %s34 = int_to_ptr.vmem [resolvable:$true] %s33
      %39 = dma.hbm_to_vmem [thread:$0]  %s1, 256, %s34, [#allocation7], 64, 64, 4
    $region9: #{tpu_custom_call.1} parent=1 // pred_fallthru
      _
    // Predicated region
    $region10: #{tpu_custom_call.1} parent=1 // pred_check
      _
    $region11: #{tpu_custom_call.1} parent=1 // pred_check_branch
      %41 = sbr.rel (0) target = $region13
    $region12: #{tpu_custom_call.1} parent=1 // pred_region
      %s43 = ssub.s32 16, 16
      %44 = vsyncadd [#allocation5], %s43
      %s46 = sshll.u32 %s2, 4
      %s47 = int_to_ptr.vmem [resolvable:$true] %s46
      %49 = dma.vmem_to_smem %s47, 16, [#allocation8], [#allocation5]
    $region13: #{tpu_custom_call.1} parent=1 // pred_fallthru
      _
    // Predicated region
    $region14: #{tpu_custom_call.1} parent=1 // pred_check
      _
    $region15: #{tpu_custom_call.1} parent=1 // pred_check_branch
      %51 = sbr.rel (0) target = $region17
    $region16: #{tpu_custom_call.1} parent=1 // pred_region
      _
    $region17: #{tpu_custom_call.1} parent=1 // pred_fallthru
      _
    // Predicated region
    $region18: #{tpu_custom_call.1} parent=1 // pred_check
      _
    $region19: #{tpu_custom_call.1} parent=1 // pred_check_branch
      %53 = sbr.rel (0) target = $region21
    $region20: #{tpu_custom_call.1} parent=1 // pred_region
      _
    $region21: #{tpu_custom_call.1} parent=1 // pred_fallthru
      _
    // Predicated region
    $region22: #{tpu_custom_call.1} parent=1 // pred_check
      _
    $region23: #{tpu_custom_call.1} parent=1 // pred_check_branch
      %55 = sbr.rel (0) target = $region25
    $region24: #{tpu_custom_call.1} parent=1 // pred_region
      _
    $region25: #{tpu_custom_call.1} parent=1 // pred_fallthru
      _
    // Predicated region
    $region26: #{tpu_custom_call.1} parent=1 // pred_check
      _
    $region27: #{tpu_custom_call.1} parent=1 // pred_check_branch
      %57 = sbr.rel (0) target = $region29
    $region28: #{tpu_custom_call.1} parent=1 // pred_region
      _
    $region29: #{tpu_custom_call.1} parent=1 // pred_fallthru
      _
    // Predicated region
    $region30: #{tpu_custom_call.1} parent=1 // pred_check
      _
    $region31: #{tpu_custom_call.1} parent=1 // pred_check_branch
      %59 = sbr.rel (0) target = $region33
    $region32: #{tpu_custom_call.1} parent=1 // pred_region
      %60 = dma.done [#allocation3], 2048
    $region33: #{tpu_custom_call.1} parent=1 // pred_fallthru
      _
    // Predicated region
    $region34: #{tpu_custom_call.1} parent=1 // pred_check
      _
    $region35: #{tpu_custom_call.1} parent=1 // pred_check_branch
      %62 = sbr.rel (0) target = $region37
    $region36: #{tpu_custom_call.1} parent=1 // pred_region
      %63 = dma.done [#allocation7], 256
    $region37: #{tpu_custom_call.1} parent=1 // pred_fallthru
      _
    // Predicated region
    $region38: #{tpu_custom_call.1} parent=1 // pred_check
      _
    $region39: #{tpu_custom_call.1} parent=1 // pred_check_branch
      %65 = sbr.rel (0) target = $region41
    $region40: #{tpu_custom_call.1} parent=1 // pred_region
      %66 = dma.done [#allocation5], 16
    $region41: #{tpu_custom_call.1} parent=1 // pred_fallthru
      _
    %67 = sfence
    %s68 = sld [smem:[#allocation8]]
    %s69 = sld [smem:[#allocation8 + $0x1]]
    %v70 = vld [vmem:[%s3] sm:$0xff]
    %v71 = vld [vmem:[%s3 + $0x8] sm:$0xff]
    %v72 = vld [vmem:[%s3 + $0x10] sm:$0xff]
    %v73 = vld [vmem:[%s3 + $0x18] sm:$0xff]
    %v74 = vld [vmem:[%s4] sm:$0x1]
    %v76 = vlaneseq
    %v77 = vshrl.u32 %v76, 7
    %v78 = vsub.s32 0, %v77
    %v79 = vrot.slane %v74, %v78
    %v81 = vld [vmem:[%s5] sm:$0xff]
    %v82 = vld [vmem:[%s5 + $0x8] sm:$0xff]
    %v83 = vld [vmem:[%s5 + $0x10] sm:$0xff]
    %v84 = vld [vmem:[%s5 + $0x18] sm:$0xff]
    %v85 = vld [vmem:[%s6] sm:$0x1]
    %v87 = vlaneseq
    %v88 = vshrl.u32 %v87, 7
    %v89 = vsub.s32 0, %v88
    %v90 = vrot.slane %v85, %v89
    %v92 = vld [vmem:[#allocation6] sm:$0xf]
    %s93 = scalar_lea.vmem [#allocation6], 4
    %v94 = vld [vmem:[%s93] sm:$0xf]
    %s95 = scalar_lea.vmem [#allocation6], 8
    %v96 = vld [vmem:[%s95] sm:$0xf]
    %s97 = scalar_lea.vmem [#allocation6], 12
    %v98 = vld [vmem:[%s97] sm:$0xf]
    %v99 = vld [vmem:[#allocation2] sm:$0xff]
    %v100 = vld [vmem:[#allocation2 + $0x8] sm:$0xff]
    %vm101 = vcmp.gt.f32.partialorder %v99, 0.0
    %vm102 = vcmp.gt.f32.partialorder %v100, 0.0
    %v103 = vstv %s68
    %v104 = vmul.f32 %v103, %v99
    %v105 = vmul.f32 %v103, %v100
    %v106 = vsel %vm101, %v99, %v104
    %v107 = vsel %vm102, %v100, %v105
    %vm108 = vcmask 261120
    %v110 = vsel %vm108, %v106, 0
    %v113 = vsel %vm108, %v107, 0
    %115 = vmatprep.subr.mxu0 0.0
    %116 = vmatpush1.msra.mxu0 %v70
    %117 = vmatprep.subr.mxu0 0.0
    %118 = vmatpush1.msra.mxu0 %v71
    %119 = vmatprep.subr.mxu0 0.0
    %120 = vmatpush1.msra.mxu0 %v72
    %121 = vmatprep.subr.mxu0 0.0
    %122 = vmatpush1.msra.mxu0 %v73
    %123 = vmatprep.subr.mxu0 0.0
    %124 = vmatpush1.msra.mxu0 0.0
    %125 = vmatprep.subr.mxu0 0.0
    %126 = vmatpush1.msra.mxu0 0.0
    %127 = vmatprep.subr.mxu0 0.0
    %128 = vmatpush1.msra.mxu0 0.0
    %129 = vmatprep.subr.mxu0 0.0
    %130 = vmatpush1.msra.mxu0 0.0
    %131 = vmatprep.subr.mxu0 0.0
    %132 = vmatpush1.msra.mxu0 0.0
    %133 = vmatprep.subr.mxu0 0.0
    %134 = vmatpush1.msra.mxu0 0.0
    %135 = vmatprep.subr.mxu0 0.0
    %136 = vmatpush1.msra.mxu0 0.0
    %137 = vmatprep.subr.mxu0 0.0
    %138 = vmatpush1.msra.mxu0 0.0
    %139 = vmatprep.subr.mxu0 0.0
    %140 = vmatpush1.msra.mxu0 0.0
    %141 = vmatprep.subr.mxu0 0.0
    %142 = vmatpush1.msra.mxu0 0.0
    %143 = vmatprep.subr.mxu0 0.0
    %144 = vmatpush1.msra.mxu0 0.0
    %145 = vmatprep.subr.mxu0 0.0
    %146 = vmatpush1.msra.mxu0 0.0
    %147 = vmatprep.subr.mxu0 0.0
    %148 = vmatpush1.msra.mxu0 0.0
    %149 = vmatprep.subr.mxu0 0.0
    %150 = vmatpush1.msra.mxu0 0.0
    %151 = vmatprep.subr.mxu0 0.0
    %152 = vmatpush1.msra.mxu0 0.0
    %153 = vmatprep.subr.mxu0 0.0
    %154 = vmatpush1.msra.mxu0 0.0
    %155 = vmatprep.subr.mxu0 0.0
    %156 = vmatpush1.msra.mxu0 0.0
    %157 = vmatprep.subr.mxu0 0.0
    %158 = vmatpush1.msra.mxu0 0.0
    %159 = vmatprep.subr.mxu0 0.0
    %160 = vmatpush1.msra.mxu0 0.0
    %161 = vmatprep.subr.mxu0 0.0
    %162 = vmatpush1.msra.mxu0 0.0
    %163 = vmatprep.subr.mxu0 0.0
    %164 = vmatpush1.msra.mxu0 0.0
    %165 = vmatprep.subr.mxu0 0.0
    %166 = vmatpush1.msra.mxu0 0.0
    %167 = vmatprep.subr.mxu0 0.0
    %168 = vmatpush1.msra.mxu0 0.0
    %169 = vmatprep.subr.mxu0 0.0
    %170 = vmatpush1.msra.mxu0 0.0
    %171 = vmatprep.subr.mxu0 0.0
    %172 = vmatpush1.msra.mxu0 0.0
    %173 = vmatprep.subr.mxu0 0.0
    %174 = vmatpush1.msra.mxu0 0.0
    %175 = vmatprep.subr.mxu0 0.0
    %176 = vmatpush1.msra.mxu0 0.0
    %177 = vmatprep.subr.mxu0 0.0
    %178 = vmatpush1.msra.mxu0 0.0
    %179 = vmatprep.mubr.f32.mxu0 0.0
    %180 = vmatmul.mubr.f32.gmra.mrb[0].mxu0 %v110
    %v181 = vpop.f32.mrb[0].mxu0
    %v182 = vadd.f32 %v79, %v181
    %v183 = vpop.f32.mrb[0].mxu0
    %184 = vmatprep.mubr.f32.mxu0 0.0
    %185 = vmatmul.mubr.f32.gmra.mrb[0].mxu0 %v113
    %v186 = vpop.f32.mrb[0].mxu0
    %v187 = vadd.f32 %v79, %v186
    %v188 = vpop.f32.mrb[0].mxu0
    %189 = vdwg.mxu0
    %vm190 = vcmp.gt.f32.partialorder %v182, 0.0
    %vm191 = vcmp.gt.f32.partialorder %v187, 0.0
    %v192 = vstv %s69
    %v193 = vmul.f32 %v192, %v182
    %v194 = vmul.f32 %v192, %v187
    %v195 = vsel %vm190, %v182, %v193
    %v196 = vsel %vm191, %v187, %v194
    %v197 = vadd.f32 %v106, %v195
    %v198 = vadd.f32 %v107, %v196
    %v200 = vsel %vm108, %v197, 0
    %v203 = vsel %vm108, %v198, 0
    %205 = vmatprep.subr.mxu0 0.0
    %206 = vmatpush1.msra.mxu0 %v81
    %207 = vmatprep.subr.mxu0 0.0
    %208 = vmatpush1.msra.mxu0 %v82
    %209 = vmatprep.subr.mxu0 0.0
    %210 = vmatpush1.msra.mxu0 %v83
    %211 = vmatprep.subr.mxu0 0.0
    %212 = vmatpush1.msra.mxu0 %v84
    %213 = vmatprep.subr.mxu0 0.0
    %214 = vmatpush1.msra.mxu0 0.0
    %215 = vmatprep.subr.mxu0 0.0
    %216 = vmatpush1.msra.mxu0 0.0
    %217 = vmatprep.subr.mxu0 0.0
    %218 = vmatpush1.msra.mxu0 0.0
    %219 = vmatprep.subr.mxu0 0.0
    %220 = vmatpush1.msra.mxu0 0.0
    %221 = vmatprep.subr.mxu0 0.0
    %222 = vmatpush1.msra.mxu0 0.0
    %223 = vmatprep.subr.mxu0 0.0
    %224 = vmatpush1.msra.mxu0 0.0
    %225 = vmatprep.subr.mxu0 0.0
    %226 = vmatpush1.msra.mxu0 0.0
    %227 = vmatprep.subr.mxu0 0.0
    %228 = vmatpush1.msra.mxu0 0.0
    %229 = vmatprep.subr.mxu0 0.0
    %230 = vmatpush1.msra.mxu0 0.0
    %231 = vmatprep.subr.mxu0 0.0
    %232 = vmatpush1.msra.mxu0 0.0
    %233 = vmatprep.subr.mxu0 0.0
    %234 = vmatpush1.msra.mxu0 0.0
    %235 = vmatprep.subr.mxu0 0.0
    %236 = vmatpush1.msra.mxu0 0.0
    %237 = vmatprep.subr.mxu0 0.0
    %238 = vmatpush1.msra.mxu0 0.0
    %239 = vmatprep.subr.mxu0 0.0
    %240 = vmatpush1.msra.mxu0 0.0
    %241 = vmatprep.subr.mxu0 0.0
    %242 = vmatpush1.msra.mxu0 0.0
    %243 = vmatprep.subr.mxu0 0.0
    %244 = vmatpush1.msra.mxu0 0.0
    %245 = vmatprep.subr.mxu0 0.0
    %246 = vmatpush1.msra.mxu0 0.0
    %247 = vmatprep.subr.mxu0 0.0
    %248 = vmatpush1.msra.mxu0 0.0
    %249 = vmatprep.subr.mxu0 0.0
    %250 = vmatpush1.msra.mxu0 0.0
    %251 = vmatprep.subr.mxu0 0.0
    %252 = vmatpush1.msra.mxu0 0.0
    %253 = vmatprep.subr.mxu0 0.0
    %254 = vmatpush1.msra.mxu0 0.0
    %255 = vmatprep.subr.mxu0 0.0
    %256 = vmatpush1.msra.mxu0 0.0
    %257 = vmatprep.subr.mxu0 0.0
    %258 = vmatpush1.msra.mxu0 0.0
    %259 = vmatprep.subr.mxu0 0.0
    %260 = vmatpush1.msra.mxu0 0.0
    %261 = vmatprep.subr.mxu0 0.0
    %262 = vmatpush1.msra.mxu0 0.0
    %263 = vmatprep.subr.mxu0 0.0
    %264 = vmatpush1.msra.mxu0 0.0
    %265 = vmatprep.subr.mxu0 0.0
    %266 = vmatpush1.msra.mxu0 0.0
    %267 = vmatprep.subr.mxu0 0.0
    %268 = vmatpush1.msra.mxu0 0.0
    %269 = vmatprep.mubr.f32.mxu0 0.0
    %270 = vmatmul.mubr.f32.gmra.mrb[0].mxu0 %v200
    %v271 = vpop.f32.mrb[0].mxu0
    %v272 = vadd.f32 %v90, %v271
    %v273 = vpop.f32.mrb[0].mxu0
    %274 = vmatprep.mubr.f32.mxu0 0.0
    %275 = vmatmul.mubr.f32.gmra.mrb[0].mxu0 %v203
    %v276 = vpop.f32.mrb[0].mxu0
    %v277 = vadd.f32 %v90, %v276
    %v278 = vpop.f32.mrb[0].mxu0
    %279 = vdwg.mxu0
    %vm280 = vcmask 31744
    %281 = vst.msk [vmem:[#allocation9] sm:$0xff] %vm280, %v272
    %282 = vst.msk [vmem:[#allocation9 + $0x8] sm:$0xff] %vm280, %v277
    %s283 = scalar_lea.vmem [#allocation2], 16
    %v284 = vld [vmem:[%s283] sm:$0xff]
    %v285 = vld [vmem:[%s283 + $0x8] sm:$0xff]
    %v287 = vsel %vm280, %v272, 0
    %v290 = vsel %vm280, %v277, 0
    %vm292 = vcmask 1043456
    %v294 = vsel %vm292, %v92, 0
    %296 = vmatprep.subr.mxu0 0.0
    %297 = vmatpush1.msra.mxu0 %v294
    %298 = vmatprep.subr.mxu0 0.0
    %299 = vmatpush1.msra.mxu0 0.0
    %300 = vmatprep.subr.mxu0 0.0
    %301 = vmatpush1.msra.mxu0 0.0
    %302 = vmatprep.subr.mxu0 0.0
    %303 = vmatpush1.msra.mxu0 0.0
    %304 = vmatprep.subr.mxu0 0.0
    %305 = vmatpush1.msra.mxu0 0.0
    %306 = vmatprep.subr.mxu0 0.0
    %307 = vmatpush1.msra.mxu0 0.0
    %308 = vmatprep.subr.mxu0 0.0
    %309 = vmatpush1.msra.mxu0 0.0
    %310 = vmatprep.subr.mxu0 0.0
    %311 = vmatpush1.msra.mxu0 0.0
    %312 = vmatprep.subr.mxu0 0.0
    %313 = vmatpush1.msra.mxu0 0.0
    %314 = vmatprep.subr.mxu0 0.0
    %315 = vmatpush1.msra.mxu0 0.0
    %316 = vmatprep.subr.mxu0 0.0
    %317 = vmatpush1.msra.mxu0 0.0
    %318 = vmatprep.subr.mxu0 0.0
    %319 = vmatpush1.msra.mxu0 0.0
    %320 = vmatprep.subr.mxu0 0.0
    %321 = vmatpush1.msra.mxu0 0.0
    %322 = vmatprep.subr.mxu0 0.0
    %323 = vmatpush1.msra.mxu0 0.0
    %324 = vmatprep.subr.mxu0 0.0
    %325 = vmatpush1.msra.mxu0 0.0
    %326 = vmatprep.subr.mxu0 0.0
    %327 = vmatpush1.msra.mxu0 0.0
    %328 = vmatprep.subr.mxu0 0.0
    %329 = vmatpush1.msra.mxu0 0.0
    %330 = vmatprep.subr.mxu0 0.0
    %331 = vmatpush1.msra.mxu0 0.0
    %332 = vmatprep.subr.mxu0 0.0
    %333 = vmatpush1.msra.mxu0 0.0
    %334 = vmatprep.subr.mxu0 0.0
    %335 = vmatpush1.msra.mxu0 0.0
    %336 = vmatprep.subr.mxu0 0.0
    %337 = vmatpush1.msra.mxu0 0.0
    %338 = vmatprep.subr.mxu0 0.0
    %339 = vmatpush1.msra.mxu0 0.0
    %340 = vmatprep.subr.mxu0 0.0
    %341 = vmatpush1.msra.mxu0 0.0
    %342 = vmatprep.subr.mxu0 0.0
    %343 = vmatpush1.msra.mxu0 0.0
    %344 = vmatprep.subr.mxu0 0.0
    %345 = vmatpush1.msra.mxu0 0.0
    %346 = vmatprep.subr.mxu0 0.0
    %347 = vmatpush1.msra.mxu0 0.0
    %348 = vmatprep.subr.mxu0 0.0
    %349 = vmatpush1.msra.mxu0 0.0
    %350 = vmatprep.subr.mxu0 0.0
    %351 = vmatpush1.msra.mxu0 0.0
    %352 = vmatprep.subr.mxu0 0.0
    %353 = vmatpush1.msra.mxu0 0.0
    %354 = vmatprep.subr.mxu0 0.0
    %355 = vmatpush1.msra.mxu0 0.0
    %356 = vmatprep.subr.mxu0 0.0
    %357 = vmatpush1.msra.mxu0 0.0
    %358 = vmatprep.subr.mxu0 0.0
    %359 = vmatpush1.msra.mxu0 0.0
    %360 = vmatprep.mubr.f32.mxu0 0.0
    %361 = vmatmul.mubr.f32.gmra.mrb[0].mxu0 %v287
    %v362 = vpop.f32.mrb[0].mxu0
    %v363 = vadd.f32 0.0, %v362
    %v364 = vpop.f32.mrb[0].mxu0
    %365 = vmatprep.mubr.f32.mxu0 0.0
    %366 = vmatmul.mubr.f32.gmra.mrb[0].mxu0 %v290
    %v367 = vpop.f32.mrb[0].mxu0
    %v368 = vadd.f32 0.0, %v367
    %v369 = vpop.f32.mrb[0].mxu0
    %370 = vdwg.mxu0
    %v371 = vadd.f32 %v284, %v363
    %v372 = vadd.f32 %v285, %v368
    %vm373 = vcmp.gt.f32.partialorder %v371, 0.0
    %vm374 = vcmp.gt.f32.partialorder %v372, 0.0
    %v375 = vmul.f32 %v103, %v371
    %v376 = vmul.f32 %v103, %v372
    %v377 = vsel %vm373, %v371, %v375
    %v378 = vsel %vm374, %v372, %v376
    %v380 = vsel %vm108, %v377, 0
    %v383 = vsel %vm108, %v378, 0
    %385 = vmatprep.subr.mxu0 0.0
    %386 = vmatpush1.msra.mxu0 %v70
    %387 = vmatprep.subr.mxu0 0.0
    %388 = vmatpush1.msra.mxu0 %v71
    %389 = vmatprep.subr.mxu0 0.0
    %390 = vmatpush1.msra.mxu0 %v72
    %391 = vmatprep.subr.mxu0 0.0
    %392 = vmatpush1.msra.mxu0 %v73
    %393 = vmatprep.subr.mxu0 0.0
    %394 = vmatpush1.msra.mxu0 0.0
    %395 = vmatprep.subr.mxu0 0.0
    %396 = vmatpush1.msra.mxu0 0.0
    %397 = vmatprep.subr.mxu0 0.0
    %398 = vmatpush1.msra.mxu0 0.0
    %399 = vmatprep.subr.mxu0 0.0
    %400 = vmatpush1.msra.mxu0 0.0
    %401 = vmatprep.subr.mxu0 0.0
    %402 = vmatpush1.msra.mxu0 0.0
    %403 = vmatprep.subr.mxu0 0.0
    %404 = vmatpush1.msra.mxu0 0.0
    %405 = vmatprep.subr.mxu0 0.0
    %406 = vmatpush1.msra.mxu0 0.0
    %407 = vmatprep.subr.mxu0 0.0
    %408 = vmatpush1.msra.mxu0 0.0
    %409 = vmatprep.subr.mxu0 0.0
    %410 = vmatpush1.msra.mxu0 0.0
    %411 = vmatprep.subr.mxu0 0.0
    %412 = vmatpush1.msra.mxu0 0.0
    %413 = vmatprep.subr.mxu0 0.0
    %414 = vmatpush1.msra.mxu0 0.0
    %415 = vmatprep.subr.mxu0 0.0
    %416 = vmatpush1.msra.mxu0 0.0
    %417 = vmatprep.subr.mxu0 0.0
    %418 = vmatpush1.msra.mxu0 0.0
    %419 = vmatprep.subr.mxu0 0.0
    %420 = vmatpush1.msra.mxu0 0.0
    %421 = vmatprep.subr.mxu0 0.0
    %422 = vmatpush1.msra.mxu0 0.0
    %423 = vmatprep.subr.mxu0 0.0
    %424 = vmatpush1.msra.mxu0 0.0
    %425 = vmatprep.subr.mxu0 0.0
    %426 = vmatpush1.msra.mxu0 0.0
    %427 = vmatprep.subr.mxu0 0.0
    %428 = vmatpush1.msra.mxu0 0.0
    %429 = vmatprep.subr.mxu0 0.0
    %430 = vmatpush1.msra.mxu0 0.0
    %431 = vmatprep.subr.mxu0 0.0
    %432 = vmatpush1.msra.mxu0 0.0
    %433 = vmatprep.subr.mxu0 0.0
    %434 = vmatpush1.msra.mxu0 0.0
    %435 = vmatprep.subr.mxu0 0.0
    %436 = vmatpush1.msra.mxu0 0.0
    %437 = vmatprep.subr.mxu0 0.0
    %438 = vmatpush1.msra.mxu0 0.0
    %439 = vmatprep.subr.mxu0 0.0
    %440 = vmatpush1.msra.mxu0 0.0
    %441 = vmatprep.subr.mxu0 0.0
    %442 = vmatpush1.msra.mxu0 0.0
    %443 = vmatprep.subr.mxu0 0.0
    %444 = vmatpush1.msra.mxu0 0.0
    %445 = vmatprep.subr.mxu0 0.0
    %446 = vmatpush1.msra.mxu0 0.0
    %447 = vmatprep.subr.mxu0 0.0
    %448 = vmatpush1.msra.mxu0 0.0
    %449 = vmatprep.mubr.f32.mxu0 0.0
    %450 = vmatmul.mubr.f32.gmra.mrb[0].mxu0 %v380
    %v451 = vpop.f32.mrb[0].mxu0
    %v452 = vadd.f32 %v79, %v451
    %v453 = vpop.f32.mrb[0].mxu0
    %454 = vmatprep.mubr.f32.mxu0 0.0
    %455 = vmatmul.mubr.f32.gmra.mrb[0].mxu0 %v383
    %v456 = vpop.f32.mrb[0].mxu0
    %v457 = vadd.f32 %v79, %v456
    %v458 = vpop.f32.mrb[0].mxu0
    %459 = vdwg.mxu0
    %vm460 = vcmp.gt.f32.partialorder %v452, 0.0
    %vm461 = vcmp.gt.f32.partialorder %v457, 0.0
    %v462 = vmul.f32 %v192, %v452
    %v463 = vmul.f32 %v192, %v457
    %v464 = vsel %vm460, %v452, %v462
    %v465 = vsel %vm461, %v457, %v463
    %v466 = vadd.f32 %v377, %v464
    %v467 = vadd.f32 %v378, %v465
    %v469 = vsel %vm108, %v466, 0
    %v472 = vsel %vm108, %v467, 0
    %474 = vmatprep.subr.mxu0 0.0
    %475 = vmatpush1.msra.mxu0 %v81
    %476 = vmatprep.subr.mxu0 0.0
    %477 = vmatpush1.msra.mxu0 %v82
    %478 = vmatprep.subr.mxu0 0.0
    %479 = vmatpush1.msra.mxu0 %v83
    %480 = vmatprep.subr.mxu0 0.0
    %481 = vmatpush1.msra.mxu0 %v84
    %482 = vmatprep.subr.mxu0 0.0
    %483 = vmatpush1.msra.mxu0 0.0
    %484 = vmatprep.subr.mxu0 0.0
    %485 = vmatpush1.msra.mxu0 0.0
    %486 = vmatprep.subr.mxu0 0.0
    %487 = vmatpush1.msra.mxu0 0.0
    %488 = vmatprep.subr.mxu0 0.0
    %489 = vmatpush1.msra.mxu0 0.0
    %490 = vmatprep.subr.mxu0 0.0
    %491 = vmatpush1.msra.mxu0 0.0
    %492 = vmatprep.subr.mxu0 0.0
    %493 = vmatpush1.msra.mxu0 0.0
    %494 = vmatprep.subr.mxu0 0.0
    %495 = vmatpush1.msra.mxu0 0.0
    %496 = vmatprep.subr.mxu0 0.0
    %497 = vmatpush1.msra.mxu0 0.0
    %498 = vmatprep.subr.mxu0 0.0
    %499 = vmatpush1.msra.mxu0 0.0
    %500 = vmatprep.subr.mxu0 0.0
    %501 = vmatpush1.msra.mxu0 0.0
    %502 = vmatprep.subr.mxu0 0.0
    %503 = vmatpush1.msra.mxu0 0.0
    %504 = vmatprep.subr.mxu0 0.0
    %505 = vmatpush1.msra.mxu0 0.0
    %506 = vmatprep.subr.mxu0 0.0
    %507 = vmatpush1.msra.mxu0 0.0
    %508 = vmatprep.subr.mxu0 0.0
    %509 = vmatpush1.msra.mxu0 0.0
    %510 = vmatprep.subr.mxu0 0.0
    %511 = vmatpush1.msra.mxu0 0.0
    %512 = vmatprep.subr.mxu0 0.0
    %513 = vmatpush1.msra.mxu0 0.0
    %514 = vmatprep.subr.mxu0 0.0
    %515 = vmatpush1.msra.mxu0 0.0
    %516 = vmatprep.subr.mxu0 0.0
    %517 = vmatpush1.msra.mxu0 0.0
    %518 = vmatprep.subr.mxu0 0.0
    %519 = vmatpush1.msra.mxu0 0.0
    %520 = vmatprep.subr.mxu0 0.0
    %521 = vmatpush1.msra.mxu0 0.0
    %522 = vmatprep.subr.mxu0 0.0
    %523 = vmatpush1.msra.mxu0 0.0
    %524 = vmatprep.subr.mxu0 0.0
    %525 = vmatpush1.msra.mxu0 0.0
    %526 = vmatprep.subr.mxu0 0.0
    %527 = vmatpush1.msra.mxu0 0.0
    %528 = vmatprep.subr.mxu0 0.0
    %529 = vmatpush1.msra.mxu0 0.0
    %530 = vmatprep.subr.mxu0 0.0
    %531 = vmatpush1.msra.mxu0 0.0
    %532 = vmatprep.subr.mxu0 0.0
    %533 = vmatpush1.msra.mxu0 0.0
    %534 = vmatprep.subr.mxu0 0.0
    %535 = vmatpush1.msra.mxu0 0.0
    %536 = vmatprep.subr.mxu0 0.0
    %537 = vmatpush1.msra.mxu0 0.0
    %538 = vmatprep.mubr.f32.mxu0 0.0
    %539 = vmatmul.mubr.f32.gmra.mrb[0].mxu0 %v469
    %v540 = vpop.f32.mrb[0].mxu0
    %v541 = vadd.f32 %v90, %v540
    %v542 = vpop.f32.mrb[0].mxu0
    %543 = vmatprep.mubr.f32.mxu0 0.0
    %544 = vmatmul.mubr.f32.gmra.mrb[0].mxu0 %v472
    %v545 = vpop.f32.mrb[0].mxu0
    %v546 = vadd.f32 %v90, %v545
    %v547 = vpop.f32.mrb[0].mxu0
    %548 = vdwg.mxu0
    %551 = vrot.lane.b32.xlu0 %v541, 4
    %v552 = vpop.permute.xlu0 %551
    %553 = vrot.lane.b32.xlu0 %v546, 4
    %v554 = vpop.permute.xlu0 %553
    %vm557 = vcmask 64544
    %558 = vst.msk [vmem:[#allocation9] sm:$0xff] %vm557, %v552
    %559 = vst.msk [vmem:[#allocation9 + $0x8] sm:$0xff] %vm557, %v554
    %s560 = scalar_lea.vmem [#allocation2], 32
    %v561 = vld [vmem:[%s560] sm:$0xff]
    %v562 = vld [vmem:[%s560 + $0x8] sm:$0xff]
    %v563 = vsel %vm280, %v541, 0
    %v565 = vsel %vm280, %v546, 0
    %567 = vmatprep.subr.mxu0 0.0
    %568 = vmatpush1.msra.mxu0 %v294
    %569 = vmatprep.subr.mxu0 0.0
    %570 = vmatpush1.msra.mxu0 0.0
    %571 = vmatprep.subr.mxu0 0.0
    %572 = vmatpush1.msra.mxu0 0.0
    %573 = vmatprep.subr.mxu0 0.0
    %574 = vmatpush1.msra.mxu0 0.0
    %575 = vmatprep.subr.mxu0 0.0
    %576 = vmatpush1.msra.mxu0 0.0
    %577 = vmatprep.subr.mxu0 0.0
    %578 = vmatpush1.msra.mxu0 0.0
    %579 = vmatprep.subr.mxu0 0.0
    %580 = vmatpush1.msra.mxu0 0.0
    %581 = vmatprep.subr.mxu0 0.0
    %582 = vmatpush1.msra.mxu0 0.0
    %583 = vmatprep.subr.mxu0 0.0
    %584 = vmatpush1.msra.mxu0 0.0
    %585 = vmatprep.subr.mxu0 0.0
    %586 = vmatpush1.msra.mxu0 0.0
    %587 = vmatprep.subr.mxu0 0.0
    %588 = vmatpush1.msra.mxu0 0.0
    %589 = vmatprep.subr.mxu0 0.0
    %590 = vmatpush1.msra.mxu0 0.0
    %591 = vmatprep.subr.mxu0 0.0
    %592 = vmatpush1.msra.mxu0 0.0
    %593 = vmatprep.subr.mxu0 0.0
    %594 = vmatpush1.msra.mxu0 0.0
    %595 = vmatprep.subr.mxu0 0.0
    %596 = vmatpush1.msra.mxu0 0.0
    %597 = vmatprep.subr.mxu0 0.0
    %598 = vmatpush1.msra.mxu0 0.0
    %599 = vmatprep.subr.mxu0 0.0
    %600 = vmatpush1.msra.mxu0 0.0
    %601 = vmatprep.subr.mxu0 0.0
    %602 = vmatpush1.msra.mxu0 0.0
    %603 = vmatprep.subr.mxu0 0.0
    %604 = vmatpush1.msra.mxu0 0.0
    %605 = vmatprep.subr.mxu0 0.0
    %606 = vmatpush1.msra.mxu0 0.0
    %607 = vmatprep.subr.mxu0 0.0
    %608 = vmatpush1.msra.mxu0 0.0
    %609 = vmatprep.subr.mxu0 0.0
    %610 = vmatpush1.msra.mxu0 0.0
    %611 = vmatprep.subr.mxu0 0.0
    %612 = vmatpush1.msra.mxu0 0.0
    %613 = vmatprep.subr.mxu0 0.0
    %614 = vmatpush1.msra.mxu0 0.0
    %615 = vmatprep.subr.mxu0 0.0
    %616 = vmatpush1.msra.mxu0 0.0
    %617 = vmatprep.subr.mxu0 0.0
    %618 = vmatpush1.msra.mxu0 0.0
    %619 = vmatprep.subr.mxu0 0.0
    %620 = vmatpush1.msra.mxu0 0.0
    %621 = vmatprep.subr.mxu0 0.0
    %622 = vmatpush1.msra.mxu0 0.0
    %623 = vmatprep.subr.mxu0 0.0
    %624 = vmatpush1.msra.mxu0 0.0
    %625 = vmatprep.subr.mxu0 0.0
    %626 = vmatpush1.msra.mxu0 0.0
    %627 = vmatprep.subr.mxu0 0.0
    %628 = vmatpush1.msra.mxu0 0.0
    %629 = vmatprep.subr.mxu0 0.0
    %630 = vmatpush1.msra.mxu0 0.0
    %631 = vmatprep.mubr.f32.mxu0 0.0
    %632 = vmatmul.mubr.f32.gmra.mrb[0].mxu0 %v563
    %v633 = vpop.f32.mrb[0].mxu0
    %v634 = vadd.f32 0.0, %v633
    %v635 = vpop.f32.mrb[0].mxu0
    %636 = vmatprep.mubr.f32.mxu0 0.0
    %637 = vmatmul.mubr.f32.gmra.mrb[0].mxu0 %v565
    %v638 = vpop.f32.mrb[0].mxu0
    %v639 = vadd.f32 0.0, %v638
    %v640 = vpop.f32.mrb[0].mxu0
    %641 = vdwg.mxu0
    %v642 = vadd.f32 %v561, %v634
    %v643 = vadd.f32 %v562, %v639
    %v645 = vsel %vm292, %v94, 0
    %647 = vmatprep.subr.mxu0 0.0
    %648 = vmatpush1.msra.mxu0 %v645
    %649 = vmatprep.subr.mxu0 0.0
    %650 = vmatpush1.msra.mxu0 0.0
    %651 = vmatprep.subr.mxu0 0.0
    %652 = vmatpush1.msra.mxu0 0.0
    %653 = vmatprep.subr.mxu0 0.0
    %654 = vmatpush1.msra.mxu0 0.0
    %655 = vmatprep.subr.mxu0 0.0
    %656 = vmatpush1.msra.mxu0 0.0
    %657 = vmatprep.subr.mxu0 0.0
    %658 = vmatpush1.msra.mxu0 0.0
    %659 = vmatprep.subr.mxu0 0.0
    %660 = vmatpush1.msra.mxu0 0.0
    %661 = vmatprep.subr.mxu0 0.0
    %662 = vmatpush1.msra.mxu0 0.0
    %663 = vmatprep.subr.mxu0 0.0
    %664 = vmatpush1.msra.mxu0 0.0
    %665 = vmatprep.subr.mxu0 0.0
    %666 = vmatpush1.msra.mxu0 0.0
    %667 = vmatprep.subr.mxu0 0.0
    %668 = vmatpush1.msra.mxu0 0.0
    %669 = vmatprep.subr.mxu0 0.0
    %670 = vmatpush1.msra.mxu0 0.0
    %671 = vmatprep.subr.mxu0 0.0
    %672 = vmatpush1.msra.mxu0 0.0
    %673 = vmatprep.subr.mxu0 0.0
    %674 = vmatpush1.msra.mxu0 0.0
    %675 = vmatprep.subr.mxu0 0.0
    %676 = vmatpush1.msra.mxu0 0.0
    %677 = vmatprep.subr.mxu0 0.0
    %678 = vmatpush1.msra.mxu0 0.0
    %679 = vmatprep.subr.mxu0 0.0
    %680 = vmatpush1.msra.mxu0 0.0
    %681 = vmatprep.subr.mxu0 0.0
    %682 = vmatpush1.msra.mxu0 0.0
    %683 = vmatprep.subr.mxu0 0.0
    %684 = vmatpush1.msra.mxu0 0.0
    %685 = vmatprep.subr.mxu0 0.0
    %686 = vmatpush1.msra.mxu0 0.0
    %687 = vmatprep.subr.mxu0 0.0
    %688 = vmatpush1.msra.mxu0 0.0
    %689 = vmatprep.subr.mxu0 0.0
    %690 = vmatpush1.msra.mxu0 0.0
    %691 = vmatprep.subr.mxu0 0.0
    %692 = vmatpush1.msra.mxu0 0.0
    %693 = vmatprep.subr.mxu0 0.0
    %694 = vmatpush1.msra.mxu0 0.0
    %695 = vmatprep.subr.mxu0 0.0
    %696 = vmatpush1.msra.mxu0 0.0
    %697 = vmatprep.subr.mxu0 0.0
    %698 = vmatpush1.msra.mxu0 0.0
    %699 = vmatprep.subr.mxu0 0.0
    %700 = vmatpush1.msra.mxu0 0.0
    %701 = vmatprep.subr.mxu0 0.0
    %702 = vmatpush1.msra.mxu0 0.0
    %703 = vmatprep.subr.mxu0 0.0
    %704 = vmatpush1.msra.mxu0 0.0
    %705 = vmatprep.subr.mxu0 0.0
    %706 = vmatpush1.msra.mxu0 0.0
    %707 = vmatprep.subr.mxu0 0.0
    %708 = vmatpush1.msra.mxu0 0.0
    %709 = vmatprep.subr.mxu0 0.0
    %710 = vmatpush1.msra.mxu0 0.0
    %711 = vmatprep.mubr.f32.mxu0 0.0
    %712 = vmatmul.mubr.f32.gmra.mrb[0].mxu0 %v287
    %v713 = vpop.f32.mrb[0].mxu0
    %v714 = vadd.f32 0.0, %v713
    %v715 = vpop.f32.mrb[0].mxu0
    %716 = vmatprep.mubr.f32.mxu0 0.0
    %717 = vmatmul.mubr.f32.gmra.mrb[0].mxu0 %v290
    %v718 = vpop.f32.mrb[0].mxu0
    %v719 = vadd.f32 0.0, %v718
    %v720 = vpop.f32.mrb[0].mxu0
    %721 = vdwg.mxu0
    %v722 = vadd.f32 %v642, %v714
    %v723 = vadd.f32 %v643, %v719
    %vm724 = vcmp.gt.f32.partialorder %v722, 0.0
    %vm725 = vcmp.gt.f32.partialorder %v723, 0.0
    %v726 = vmul.f32 %v103, %v722
    %v727 = vmul.f32 %v103, %v723
    %v728 = vsel %vm724, %v722, %v726
    %v729 = vsel %vm725, %v723, %v727
    %v731 = vsel %vm108, %v728, 0
    %v734 = vsel %vm108, %v729, 0
    %736 = vmatprep.subr.mxu0 0.0
    %737 = vmatpush1.msra.mxu0 %v70
    %738 = vmatprep.subr.mxu0 0.0
    %739 = vmatpush1.msra.mxu0 %v71
    %740 = vmatprep.subr.mxu0 0.0
    %741 = vmatpush1.msra.mxu0 %v72
    %742 = vmatprep.subr.mxu0 0.0
    %743 = vmatpush1.msra.mxu0 %v73
    %744 = vmatprep.subr.mxu0 0.0
    %745 = vmatpush1.msra.mxu0 0.0
    %746 = vmatprep.subr.mxu0 0.0
    %747 = vmatpush1.msra.mxu0 0.0
    %748 = vmatprep.subr.mxu0 0.0
    %749 = vmatpush1.msra.mxu0 0.0
    %750 = vmatprep.subr.mxu0 0.0
    %751 = vmatpush1.msra.mxu0 0.0
    %752 = vmatprep.subr.mxu0 0.0
    %753 = vmatpush1.msra.mxu0 0.0
    %754 = vmatprep.subr.mxu0 0.0
    %755 = vmatpush1.msra.mxu0 0.0
    %756 = vmatprep.subr.mxu0 0.0
    %757 = vmatpush1.msra.mxu0 0.0
    %758 = vmatprep.subr.mxu0 0.0
    %759 = vmatpush1.msra.mxu0 0.0
    %760 = vmatprep.subr.mxu0 0.0
    %761 = vmatpush1.msra.mxu0 0.0
    %762 = vmatprep.subr.mxu0 0.0
    %763 = vmatpush1.msra.mxu0 0.0
    %764 = vmatprep.subr.mxu0 0.0
    %765 = vmatpush1.msra.mxu0 0.0
    %766 = vmatprep.subr.mxu0 0.0
    %767 = vmatpush1.msra.mxu0 0.0
    %768 = vmatprep.subr.mxu0 0.0
    %769 = vmatpush1.msra.mxu0 0.0
    %770 = vmatprep.subr.mxu0 0.0
    %771 = vmatpush1.msra.mxu0 0.0
    %772 = vmatprep.subr.mxu0 0.0
    %773 = vmatpush1.msra.mxu0 0.0
    %774 = vmatprep.subr.mxu0 0.0
    %775 = vmatpush1.msra.mxu0 0.0
    %776 = vmatprep.subr.mxu0 0.0
    %777 = vmatpush1.msra.mxu0 0.0
    %778 = vmatprep.subr.mxu0 0.0
    %779 = vmatpush1.msra.mxu0 0.0
    %780 = vmatprep.subr.mxu0 0.0
    %781 = vmatpush1.msra.mxu0 0.0
    %782 = vmatprep.subr.mxu0 0.0
    %783 = vmatpush1.msra.mxu0 0.0
    %784 = vmatprep.subr.mxu0 0.0
    %785 = vmatpush1.msra.mxu0 0.0
    %786 = vmatprep.subr.mxu0 0.0
    %787 = vmatpush1.msra.mxu0 0.0
    %788 = vmatprep.subr.mxu0 0.0
    %789 = vmatpush1.msra.mxu0 0.0
    %790 = vmatprep.subr.mxu0 0.0
    %791 = vmatpush1.msra.mxu0 0.0
    %792 = vmatprep.subr.mxu0 0.0
    %793 = vmatpush1.msra.mxu0 0.0
    %794 = vmatprep.subr.mxu0 0.0
    %795 = vmatpush1.msra.mxu0 0.0
    %796 = vmatprep.subr.mxu0 0.0
    %797 = vmatpush1.msra.mxu0 0.0
    %798 = vmatprep.subr.mxu0 0.0
    %799 = vmatpush1.msra.mxu0 0.0
    %800 = vmatprep.mubr.f32.mxu0 0.0
    %801 = vmatmul.mubr.f32.gmra.mrb[0].mxu0 %v731
    %v802 = vpop.f32.mrb[0].mxu0
    %v803 = vadd.f32 %v79, %v802
    %v804 = vpop.f32.mrb[0].mxu0
    %805 = vmatprep.mubr.f32.mxu0 0.0
    %806 = vmatmul.mubr.f32.gmra.mrb[0].mxu0 %v734
    %v807 = vpop.f32.mrb[0].mxu0
    %v808 = vadd.f32 %v79, %v807
    %v809 = vpop.f32.mrb[0].mxu0
    %810 = vdwg.mxu0
    %vm811 = vcmp.gt.f32.partialorder %v803, 0.0
    %vm812 = vcmp.gt.f32.partialorder %v808, 0.0
    %v813 = vmul.f32 %v192, %v803
    %v814 = vmul.f32 %v192, %v808
    %v815 = vsel %vm811, %v803, %v813
    %v816 = vsel %vm812, %v808, %v814
    %v817 = vadd.f32 %v728, %v815
    %v818 = vadd.f32 %v729, %v816
    %v820 = vsel %vm108, %v817, 0
    %v823 = vsel %vm108, %v818, 0
    %825 = vmatprep.subr.mxu0 0.0
    %826 = vmatpush1.msra.mxu0 %v81
    %827 = vmatprep.subr.mxu0 0.0
    %828 = vmatpush1.msra.mxu0 %v82
    %829 = vmatprep.subr.mxu0 0.0
    %830 = vmatpush1.msra.mxu0 %v83
    %831 = vmatprep.subr.mxu0 0.0
    %832 = vmatpush1.msra.mxu0 %v84
    %833 = vmatprep.subr.mxu0 0.0
    %834 = vmatpush1.msra.mxu0 0.0
    %835 = vmatprep.subr.mxu0 0.0
    %836 = vmatpush1.msra.mxu0 0.0
    %837 = vmatprep.subr.mxu0 0.0
    %838 = vmatpush1.msra.mxu0 0.0
    %839 = vmatprep.subr.mxu0 0.0
    %840 = vmatpush1.msra.mxu0 0.0
    %841 = vmatprep.subr.mxu0 0.0
    %842 = vmatpush1.msra.mxu0 0.0
    %843 = vmatprep.subr.mxu0 0.0
    %844 = vmatpush1.msra.mxu0 0.0
    %845 = vmatprep.subr.mxu0 0.0
    %846 = vmatpush1.msra.mxu0 0.0
    %847 = vmatprep.subr.mxu0 0.0
    %848 = vmatpush1.msra.mxu0 0.0
    %849 = vmatprep.subr.mxu0 0.0
    %850 = vmatpush1.msra.mxu0 0.0
    %851 = vmatprep.subr.mxu0 0.0
    %852 = vmatpush1.msra.mxu0 0.0
    %853 = vmatprep.subr.mxu0 0.0
    %854 = vmatpush1.msra.mxu0 0.0
    %855 = vmatprep.subr.mxu0 0.0
    %856 = vmatpush1.msra.mxu0 0.0
    %857 = vmatprep.subr.mxu0 0.0
    %858 = vmatpush1.msra.mxu0 0.0
    %859 = vmatprep.subr.mxu0 0.0
    %860 = vmatpush1.msra.mxu0 0.0
    %861 = vmatprep.subr.mxu0 0.0
    %862 = vmatpush1.msra.mxu0 0.0
    %863 = vmatprep.subr.mxu0 0.0
    %864 = vmatpush1.msra.mxu0 0.0
    %865 = vmatprep.subr.mxu0 0.0
    %866 = vmatpush1.msra.mxu0 0.0
    %867 = vmatprep.subr.mxu0 0.0
    %868 = vmatpush1.msra.mxu0 0.0
    %869 = vmatprep.subr.mxu0 0.0
    %870 = vmatpush1.msra.mxu0 0.0
    %871 = vmatprep.subr.mxu0 0.0
    %872 = vmatpush1.msra.mxu0 0.0
    %873 = vmatprep.subr.mxu0 0.0
    %874 = vmatpush1.msra.mxu0 0.0
    %875 = vmatprep.subr.mxu0 0.0
    %876 = vmatpush1.msra.mxu0 0.0
    %877 = vmatprep.subr.mxu0 0.0
    %878 = vmatpush1.msra.mxu0 0.0
    %879 = vmatprep.subr.mxu0 0.0
    %880 = vmatpush1.msra.mxu0 0.0
    %881 = vmatprep.subr.mxu0 0.0
    %882 = vmatpush1.msra.mxu0 0.0
    %883 = vmatprep.subr.mxu0 0.0
    %884 = vmatpush1.msra.mxu0 0.0
    %885 = vmatprep.subr.mxu0 0.0
    %886 = vmatpush1.msra.mxu0 0.0
    %887 = vmatprep.subr.mxu0 0.0
    %888 = vmatpush1.msra.mxu0 0.0
    %889 = vmatprep.mubr.f32.mxu0 0.0
    %890 = vmatmul.mubr.f32.gmra.mrb[0].mxu0 %v820
    %v891 = vpop.f32.mrb[0].mxu0
    %v892 = vadd.f32 %v90, %v891
    %v893 = vpop.f32.mrb[0].mxu0
    %894 = vmatprep.mubr.f32.mxu0 0.0
    %895 = vmatmul.mubr.f32.gmra.mrb[0].mxu0 %v823
    %v896 = vpop.f32.mrb[0].mxu0
    %v897 = vadd.f32 %v90, %v896
    %v898 = vpop.f32.mrb[0].mxu0
    %899 = vdwg.mxu0
    %902 = vrot.lane.b32.xlu0 %v892, 8
    %v903 = vpop.permute.xlu0 %902
    %904 = vrot.lane.b32.xlu0 %v897, 8
    %v905 = vpop.permute.xlu0 %904
    %vm908 = vcmask 97344
    %909 = vst.msk [vmem:[#allocation9] sm:$0xff] %vm908, %v903
    %910 = vst.msk [vmem:[#allocation9 + $0x8] sm:$0xff] %vm908, %v905
    %s911 = scalar_lea.vmem [#allocation2], 48
    %v912 = vld [vmem:[%s911] sm:$0xff]
    %v913 = vld [vmem:[%s911 + $0x8] sm:$0xff]
    %v914 = vsel %vm280, %v892, 0
    %v916 = vsel %vm280, %v897, 0
    %918 = vmatprep.subr.mxu0 0.0
    %919 = vmatpush1.msra.mxu0 %v294
    %920 = vmatprep.subr.mxu0 0.0
    %921 = vmatpush1.msra.mxu0 0.0
    %922 = vmatprep.subr.mxu0 0.0
    %923 = vmatpush1.msra.mxu0 0.0
    %924 = vmatprep.subr.mxu0 0.0
    %925 = vmatpush1.msra.mxu0 0.0
    %926 = vmatprep.subr.mxu0 0.0
    %927 = vmatpush1.msra.mxu0 0.0
    %928 = vmatprep.subr.mxu0 0.0
    %929 = vmatpush1.msra.mxu0 0.0
    %930 = vmatprep.subr.mxu0 0.0
    %931 = vmatpush1.msra.mxu0 0.0
    %932 = vmatprep.subr.mxu0 0.0
    %933 = vmatpush1.msra.mxu0 0.0
    %934 = vmatprep.subr.mxu0 0.0
    %935 = vmatpush1.msra.mxu0 0.0
    %936 = vmatprep.subr.mxu0 0.0
    %937 = vmatpush1.msra.mxu0 0.0
    %938 = vmatprep.subr.mxu0 0.0
    %939 = vmatpush1.msra.mxu0 0.0
    %940 = vmatprep.subr.mxu0 0.0
    %941 = vmatpush1.msra.mxu0 0.0
    %942 = vmatprep.subr.mxu0 0.0
    %943 = vmatpush1.msra.mxu0 0.0
    %944 = vmatprep.subr.mxu0 0.0
    %945 = vmatpush1.msra.mxu0 0.0
    %946 = vmatprep.subr.mxu0 0.0
    %947 = vmatpush1.msra.mxu0 0.0
    %948 = vmatprep.subr.mxu0 0.0
    %949 = vmatpush1.msra.mxu0 0.0
    %950 = vmatprep.subr.mxu0 0.0
    %951 = vmatpush1.msra.mxu0 0.0
    %952 = vmatprep.subr.mxu0 0.0
    %953 = vmatpush1.msra.mxu0 0.0
    %954 = vmatprep.subr.mxu0 0.0
    %955 = vmatpush1.msra.mxu0 0.0
    %956 = vmatprep.subr.mxu0 0.0
    %957 = vmatpush1.msra.mxu0 0.0
    %958 = vmatprep.subr.mxu0 0.0
    %959 = vmatpush1.msra.mxu0 0.0
    %960 = vmatprep.subr.mxu0 0.0
    %961 = vmatpush1.msra.mxu0 0.0
    %962 = vmatprep.subr.mxu0 0.0
    %963 = vmatpush1.msra.mxu0 0.0
    %964 = vmatprep.subr.mxu0 0.0
    %965 = vmatpush1.msra.mxu0 0.0
    %966 = vmatprep.subr.mxu0 0.0
    %967 = vmatpush1.msra.mxu0 0.0
    %968 = vmatprep.subr.mxu0 0.0
    %969 = vmatpush1.msra.mxu0 0.0
    %970 = vmatprep.subr.mxu0 0.0
    %971 = vmatpush1.msra.mxu0 0.0
    %972 = vmatprep.subr.mxu0 0.0
    %973 = vmatpush1.msra.mxu0 0.0
    %974 = vmatprep.subr.mxu0 0.0
    %975 = vmatpush1.msra.mxu0 0.0
    %976 = vmatprep.subr.mxu0 0.0
    %977 = vmatpush1.msra.mxu0 0.0
    %978 = vmatprep.subr.mxu0 0.0
    %979 = vmatpush1.msra.mxu0 0.0
    %980 = vmatprep.subr.mxu0 0.0
    %981 = vmatpush1.msra.mxu0 0.0
    %982 = vmatprep.mubr.f32.mxu0 0.0
    %983 = vmatmul.mubr.f32.gmra.mrb[0].mxu0 %v914
    %v984 = vpop.f32.mrb[0].mxu0
    %v985 = vadd.f32 0.0, %v984
    %v986 = vpop.f32.mrb[0].mxu0
    %987 = vmatprep.mubr.f32.mxu0 0.0
    %988 = vmatmul.mubr.f32.gmra.mrb[0].mxu0 %v916
    %v989 = vpop.f32.mrb[0].mxu0
    %v990 = vadd.f32 0.0, %v989
    %v991 = vpop.f32.mrb[0].mxu0
    %992 = vdwg.mxu0
    %v993 = vadd.f32 %v912, %v985
    %v994 = vadd.f32 %v913, %v990
    %995 = vmatprep.subr.mxu0 0.0
    %996 = vmatpush1.msra.mxu0 %v645
    %997 = vmatprep.subr.mxu0 0.0
    %998 = vmatpush1.msra.mxu0 0.0
    %999 = vmatprep.subr.mxu0 0.0
    %1000 = vmatpush1.msra.mxu0 0.0
    %1001 = vmatprep.subr.mxu0 0.0
    %1002 = vmatpush1.msra.mxu0 0.0
    %1003 = vmatprep.subr.mxu0 0.0
    %1004 = vmatpush1.msra.mxu0 0.0
    %1005 = vmatprep.subr.mxu0 0.0
    %1006 = vmatpush1.msra.mxu0 0.0
    %1007 = vmatprep.subr.mxu0 0.0
    %1008 = vmatpush1.msra.mxu0 0.0
    %1009 = vmatprep.subr.mxu0 0.0
    %1010 = vmatpush1.msra.mxu0 0.0
    %1011 = vmatprep.subr.mxu0 0.0
    %1012 = vmatpush1.msra.mxu0 0.0
    %1013 = vmatprep.subr.mxu0 0.0
    %1014 = vmatpush1.msra.mxu0 0.0
    %1015 = vmatprep.subr.mxu0 0.0
    %1016 = vmatpush1.msra.mxu0 0.0
    %1017 = vmatprep.subr.mxu0 0.0
    %1018 = vmatpush1.msra.mxu0 0.0
    %1019 = vmatprep.subr.mxu0 0.0
    %1020 = vmatpush1.msra.mxu0 0.0
    %1021 = vmatprep.subr.mxu0 0.0
    %1022 = vmatpush1.msra.mxu0 0.0
    %1023 = vmatprep.subr.mxu0 0.0
    %1024 = vmatpush1.msra.mxu0 0.0
    %1025 = vmatprep.subr.mxu0 0.0
    %1026 = vmatpush1.msra.mxu0 0.0
    %1027 = vmatprep.subr.mxu0 0.0
    %1028 = vmatpush1.msra.mxu0 0.0
    %1029 = vmatprep.subr.mxu0 0.0
    %1030 = vmatpush1.msra.mxu0 0.0
    %1031 = vmatprep.subr.mxu0 0.0
    %1032 = vmatpush1.msra.mxu0 0.0
    %1033 = vmatprep.subr.mxu0 0.0
    %1034 = vmatpush1.msra.mxu0 0.0
    %1035 = vmatprep.subr.mxu0 0.0
    %1036 = vmatpush1.msra.mxu0 0.0
    %1037 = vmatprep.subr.mxu0 0.0
    %1038 = vmatpush1.msra.mxu0 0.0
    %1039 = vmatprep.subr.mxu0 0.0
    %1040 = vmatpush1.msra.mxu0 0.0
    %1041 = vmatprep.subr.mxu0 0.0
    %1042 = vmatpush1.msra.mxu0 0.0
    %1043 = vmatprep.subr.mxu0 0.0
    %1044 = vmatpush1.msra.mxu0 0.0
    %1045 = vmatprep.subr.mxu0 0.0
    %1046 = vmatpush1.msra.mxu0 0.0
    %1047 = vmatprep.subr.mxu0 0.0
    %1048 = vmatpush1.msra.mxu0 0.0
    %1049 = vmatprep.subr.mxu0 0.0
    %1050 = vmatpush1.msra.mxu0 0.0
    %1051 = vmatprep.subr.mxu0 0.0
    %1052 = vmatpush1.msra.mxu0 0.0
    %1053 = vmatprep.subr.mxu0 0.0
    %1054 = vmatpush1.msra.mxu0 0.0
    %1055 = vmatprep.subr.mxu0 0.0
    %1056 = vmatpush1.msra.mxu0 0.0
    %1057 = vmatprep.subr.mxu0 0.0
    %1058 = vmatpush1.msra.mxu0 0.0
    %1059 = vmatprep.mubr.f32.mxu0 0.0
    %1060 = vmatmul.mubr.f32.gmra.mrb[0].mxu0 %v563
    %v1061 = vpop.f32.mrb[0].mxu0
    %v1062 = vadd.f32 0.0, %v1061
    %v1063 = vpop.f32.mrb[0].mxu0
    %1064 = vmatprep.mubr.f32.mxu0 0.0
    %1065 = vmatmul.mubr.f32.gmra.mrb[0].mxu0 %v565
    %v1066 = vpop.f32.mrb[0].mxu0
    %v1067 = vadd.f32 0.0, %v1066
    %v1068 = vpop.f32.mrb[0].mxu0
    %1069 = vdwg.mxu0
    %v1070 = vadd.f32 %v993, %v1062
    %v1071 = vadd.f32 %v994, %v1067
    %v1073 = vsel %vm292, %v96, 0
    %1075 = vmatprep.subr.mxu0 0.0
    %1076 = vmatpush1.msra.mxu0 %v1073
    %1077 = vmatprep.subr.mxu0 0.0
    %1078 = vmatpush1.msra.mxu0 0.0
    %1079 = vmatprep.subr.mxu0 0.0
    %1080 = vmatpush1.msra.mxu0 0.0
    %1081 = vmatprep.subr.mxu0 0.0
    %1082 = vmatpush1.msra.mxu0 0.0
    %1083 = vmatprep.subr.mxu0 0.0
    %1084 = vmatpush1.msra.mxu0 0.0
    %1085 = vmatprep.subr.mxu0 0.0
    %1086 = vmatpush1.msra.mxu0 0.0
    %1087 = vmatprep.subr.mxu0 0.0
    %1088 = vmatpush1.msra.mxu0 0.0
    %1089 = vmatprep.subr.mxu0 0.0
    %1090 = vmatpush1.msra.mxu0 0.0
    %1091 = vmatprep.subr.mxu0 0.0
    %1092 = vmatpush1.msra.mxu0 0.0
    %1093 = vmatprep.subr.mxu0 0.0
    %1094 = vmatpush1.msra.mxu0 0.0
    %1095 = vmatprep.subr.mxu0 0.0
    %1096 = vmatpush1.msra.mxu0 0.0
    %1097 = vmatprep.subr.mxu0 0.0
    %1098 = vmatpush1.msra.mxu0 0.0
    %1099 = vmatprep.subr.mxu0 0.0
    %1100 = vmatpush1.msra.mxu0 0.0
    %1101 = vmatprep.subr.mxu0 0.0
    %1102 = vmatpush1.msra.mxu0 0.0
    %1103 = vmatprep.subr.mxu0 0.0
    %1104 = vmatpush1.msra.mxu0 0.0
    %1105 = vmatprep.subr.mxu0 0.0
    %1106 = vmatpush1.msra.mxu0 0.0
    %1107 = vmatprep.subr.mxu0 0.0
    %1108 = vmatpush1.msra.mxu0 0.0
    %1109 = vmatprep.subr.mxu0 0.0
    %1110 = vmatpush1.msra.mxu0 0.0
    %1111 = vmatprep.subr.mxu0 0.0
    %1112 = vmatpush1.msra.mxu0 0.0
    %1113 = vmatprep.subr.mxu0 0.0
    %1114 = vmatpush1.msra.mxu0 0.0
    %1115 = vmatprep.subr.mxu0 0.0
    %1116 = vmatpush1.msra.mxu0 0.0
    %1117 = vmatprep.subr.mxu0 0.0
    %1118 = vmatpush1.msra.mxu0 0.0
    %1119 = vmatprep.subr.mxu0 0.0
    %1120 = vmatpush1.msra.mxu0 0.0
    %1121 = vmatprep.subr.mxu0 0.0
    %1122 = vmatpush1.msra.mxu0 0.0
    %1123 = vmatprep.subr.mxu0 0.0
    %1124 = vmatpush1.msra.mxu0 0.0
    %1125 = vmatprep.subr.mxu0 0.0
    %1126 = vmatpush1.msra.mxu0 0.0
    %1127 = vmatprep.subr.mxu0 0.0
    %1128 = vmatpush1.msra.mxu0 0.0
    %1129 = vmatprep.subr.mxu0 0.0
    %1130 = vmatpush1.msra.mxu0 0.0
    %1131 = vmatprep.subr.mxu0 0.0
    %1132 = vmatpush1.msra.mxu0 0.0
    %1133 = vmatprep.subr.mxu0 0.0
    %1134 = vmatpush1.msra.mxu0 0.0
    %1135 = vmatprep.subr.mxu0 0.0
    %1136 = vmatpush1.msra.mxu0 0.0
    %1137 = vmatprep.subr.mxu0 0.0
    %1138 = vmatpush1.msra.mxu0 0.0
    %1139 = vmatprep.mubr.f32.mxu0 0.0
    %1140 = vmatmul.mubr.f32.gmra.mrb[0].mxu0 %v287
    %v1141 = vpop.f32.mrb[0].mxu0
    %v1142 = vadd.f32 0.0, %v1141
    %v1143 = vpop.f32.mrb[0].mxu0
    %1144 = vmatprep.mubr.f32.mxu0 0.0
    %1145 = vmatmul.mubr.f32.gmra.mrb[0].mxu0 %v290
    %v1146 = vpop.f32.mrb[0].mxu0
    %v1147 = vadd.f32 0.0, %v1146
    %v1148 = vpop.f32.mrb[0].mxu0
    %1149 = vdwg.mxu0
    %v1150 = vadd.f32 %v1070, %v1142
    %v1151 = vadd.f32 %v1071, %v1147
    %vm1152 = vcmp.gt.f32.partialorder %v1150, 0.0
    %vm1153 = vcmp.gt.f32.partialorder %v1151, 0.0
    %v1154 = vmul.f32 %v103, %v1150
    %v1155 = vmul.f32 %v103, %v1151
    %v1156 = vsel %vm1152, %v1150, %v1154
    %v1157 = vsel %vm1153, %v1151, %v1155
    %v1159 = vsel %vm108, %v1156, 0
    %v1162 = vsel %vm108, %v1157, 0
    %1164 = vmatprep.subr.mxu0 0.0
    %1165 = vmatpush1.msra.mxu0 %v70
    %1166 = vmatprep.subr.mxu0 0.0
    %1167 = vmatpush1.msra.mxu0 %v71
    %1168 = vmatprep.subr.mxu0 0.0
    %1169 = vmatpush1.msra.mxu0 %v72
    %1170 = vmatprep.subr.mxu0 0.0
    %1171 = vmatpush1.msra.mxu0 %v73
    %1172 = vmatprep.subr.mxu0 0.0
    %1173 = vmatpush1.msra.mxu0 0.0
    %1174 = vmatprep.subr.mxu0 0.0
    %1175 = vmatpush1.msra.mxu0 0.0
    %1176 = vmatprep.subr.mxu0 0.0
    %1177 = vmatpush1.msra.mxu0 0.0
    %1178 = vmatprep.subr.mxu0 0.0
    %1179 = vmatpush1.msra.mxu0 0.0
    %1180 = vmatprep.subr.mxu0 0.0
    %1181 = vmatpush1.msra.mxu0 0.0
    %1182 = vmatprep.subr.mxu0 0.0
    %1183 = vmatpush1.msra.mxu0 0.0
    %1184 = vmatprep.subr.mxu0 0.0
    %1185 = vmatpush1.msra.mxu0 0.0
    %1186 = vmatprep.subr.mxu0 0.0
    %1187 = vmatpush1.msra.mxu0 0.0
    %1188 = vmatprep.subr.mxu0 0.0
    %1189 = vmatpush1.msra.mxu0 0.0
    %1190 = vmatprep.subr.mxu0 0.0
    %1191 = vmatpush1.msra.mxu0 0.0
    %1192 = vmatprep.subr.mxu0 0.0
    %1193 = vmatpush1.msra.mxu0 0.0
    %1194 = vmatprep.subr.mxu0 0.0
    %1195 = vmatpush1.msra.mxu0 0.0
    %1196 = vmatprep.subr.mxu0 0.0
    %1197 = vmatpush1.msra.mxu0 0.0
    %1198 = vmatprep.subr.mxu0 0.0
    %1199 = vmatpush1.msra.mxu0 0.0
    %1200 = vmatprep.subr.mxu0 0.0
    %1201 = vmatpush1.msra.mxu0 0.0
    %1202 = vmatprep.subr.mxu0 0.0
    %1203 = vmatpush1.msra.mxu0 0.0
    %1204 = vmatprep.subr.mxu0 0.0
    %1205 = vmatpush1.msra.mxu0 0.0
    %1206 = vmatprep.subr.mxu0 0.0
    %1207 = vmatpush1.msra.mxu0 0.0
    %1208 = vmatprep.subr.mxu0 0.0
    %1209 = vmatpush1.msra.mxu0 0.0
    %1210 = vmatprep.subr.mxu0 0.0
    %1211 = vmatpush1.msra.mxu0 0.0
    %1212 = vmatprep.subr.mxu0 0.0
    %1213 = vmatpush1.msra.mxu0 0.0
    %1214 = vmatprep.subr.mxu0 0.0
    %1215 = vmatpush1.msra.mxu0 0.0
    %1216 = vmatprep.subr.mxu0 0.0
    %1217 = vmatpush1.msra.mxu0 0.0
    %1218 = vmatprep.subr.mxu0 0.0
    %1219 = vmatpush1.msra.mxu0 0.0
    %1220 = vmatprep.subr.mxu0 0.0
    %1221 = vmatpush1.msra.mxu0 0.0
    %1222 = vmatprep.subr.mxu0 0.0
    %1223 = vmatpush1.msra.mxu0 0.0
    %1224 = vmatprep.subr.mxu0 0.0
    %1225 = vmatpush1.msra.mxu0 0.0
    %1226 = vmatprep.subr.mxu0 0.0
    %1227 = vmatpush1.msra.mxu0 0.0
    %1228 = vmatprep.mubr.f32.mxu0 0.0
    %1229 = vmatmul.mubr.f32.gmra.mrb[0].mxu0 %v1159
    %v1230 = vpop.f32.mrb[0].mxu0
    %v1231 = vadd.f32 %v79, %v1230
    %v1232 = vpop.f32.mrb[0].mxu0
    %1233 = vmatprep.mubr.f32.mxu0 0.0
    %1234 = vmatmul.mubr.f32.gmra.mrb[0].mxu0 %v1162
    %v1235 = vpop.f32.mrb[0].mxu0
    %v1236 = vadd.f32 %v79, %v1235
    %v1237 = vpop.f32.mrb[0].mxu0
    %1238 = vdwg.mxu0
    %vm1239 = vcmp.gt.f32.partialorder %v1231, 0.0
    %vm1240 = vcmp.gt.f32.partialorder %v1236, 0.0
    %v1241 = vmul.f32 %v192, %v1231
    %v1242 = vmul.f32 %v192, %v1236
    %v1243 = vsel %vm1239, %v1231, %v1241
    %v1244 = vsel %vm1240, %v1236, %v1242
    %v1245 = vadd.f32 %v1156, %v1243
    %v1246 = vadd.f32 %v1157, %v1244
    %v1248 = vsel %vm108, %v1245, 0
    %v1251 = vsel %vm108, %v1246, 0
    %1253 = vmatprep.subr.mxu0 0.0
    %1254 = vmatpush1.msra.mxu0 %v81
    %1255 = vmatprep.subr.mxu0 0.0
    %1256 = vmatpush1.msra.mxu0 %v82
    %1257 = vmatprep.subr.mxu0 0.0
    %1258 = vmatpush1.msra.mxu0 %v83
    %1259 = vmatprep.subr.mxu0 0.0
    %1260 = vmatpush1.msra.mxu0 %v84
    %1261 = vmatprep.subr.mxu0 0.0
    %1262 = vmatpush1.msra.mxu0 0.0
    %1263 = vmatprep.subr.mxu0 0.0
    %1264 = vmatpush1.msra.mxu0 0.0
    %1265 = vmatprep.subr.mxu0 0.0
    %1266 = vmatpush1.msra.mxu0 0.0
    %1267 = vmatprep.subr.mxu0 0.0
    %1268 = vmatpush1.msra.mxu0 0.0
    %1269 = vmatprep.subr.mxu0 0.0
    %1270 = vmatpush1.msra.mxu0 0.0
    %1271 = vmatprep.subr.mxu0 0.0
    %1272 = vmatpush1.msra.mxu0 0.0
    %1273 = vmatprep.subr.mxu0 0.0
    %1274 = vmatpush1.msra.mxu0 0.0
    %1275 = vmatprep.subr.mxu0 0.0
    %1276 = vmatpush1.msra.mxu0 0.0
    %1277 = vmatprep.subr.mxu0 0.0
    %1278 = vmatpush1.msra.mxu0 0.0
    %1279 = vmatprep.subr.mxu0 0.0
    %1280 = vmatpush1.msra.mxu0 0.0
    %1281 = vmatprep.subr.mxu0 0.0
    %1282 = vmatpush1.msra.mxu0 0.0
    %1283 = vmatprep.subr.mxu0 0.0
    %1284 = vmatpush1.msra.mxu0 0.0
    %1285 = vmatprep.subr.mxu0 0.0
    %1286 = vmatpush1.msra.mxu0 0.0
    %1287 = vmatprep.subr.mxu0 0.0
    %1288 = vmatpush1.msra.mxu0 0.0
    %1289 = vmatprep.subr.mxu0 0.0
    %1290 = vmatpush1.msra.mxu0 0.0
    %1291 = vmatprep.subr.mxu0 0.0
    %1292 = vmatpush1.msra.mxu0 0.0
    %1293 = vmatprep.subr.mxu0 0.0
    %1294 = vmatpush1.msra.mxu0 0.0
    %1295 = vmatprep.subr.mxu0 0.0
    %1296 = vmatpush1.msra.mxu0 0.0
    %1297 = vmatprep.subr.mxu0 0.0
    %1298 = vmatpush1.msra.mxu0 0.0
    %1299 = vmatprep.subr.mxu0 0.0
    %1300 = vmatpush1.msra.mxu0 0.0
    %1301 = vmatprep.subr.mxu0 0.0
    %1302 = vmatpush1.msra.mxu0 0.0
    %1303 = vmatprep.subr.mxu0 0.0
    %1304 = vmatpush1.msra.mxu0 0.0
    %1305 = vmatprep.subr.mxu0 0.0
    %1306 = vmatpush1.msra.mxu0 0.0
    %1307 = vmatprep.subr.mxu0 0.0
    %1308 = vmatpush1.msra.mxu0 0.0
    %1309 = vmatprep.subr.mxu0 0.0
    %1310 = vmatpush1.msra.mxu0 0.0
    %1311 = vmatprep.subr.mxu0 0.0
    %1312 = vmatpush1.msra.mxu0 0.0
    %1313 = vmatprep.subr.mxu0 0.0
    %1314 = vmatpush1.msra.mxu0 0.0
    %1315 = vmatprep.subr.mxu0 0.0
    %1316 = vmatpush1.msra.mxu0 0.0
    %1317 = vmatprep.mubr.f32.mxu0 0.0
    %1318 = vmatmul.mubr.f32.gmra.mrb[0].mxu0 %v1248
    %v1319 = vpop.f32.mrb[0].mxu0
    %v1320 = vadd.f32 %v90, %v1319
    %v1321 = vpop.f32.mrb[0].mxu0
    %1322 = vmatprep.mubr.f32.mxu0 0.0
    %1323 = vmatmul.mubr.f32.gmra.mrb[0].mxu0 %v1251
    %v1324 = vpop.f32.mrb[0].mxu0
    %v1325 = vadd.f32 %v90, %v1324
    %v1326 = vpop.f32.mrb[0].mxu0
    %1327 = vdwg.mxu0
    %1330 = vrot.lane.b32.xlu0 %v1320, 12
    %v1331 = vpop.permute.xlu0 %1330
    %1332 = vrot.lane.b32.xlu0 %v1325, 12
    %v1333 = vpop.permute.xlu0 %1332
    %vm1336 = vcmask 130144
    %1337 = vst.msk [vmem:[#allocation9] sm:$0xff] %vm1336, %v1331
    %1338 = vst.msk [vmem:[#allocation9 + $0x8] sm:$0xff] %vm1336, %v1333
    %s1339 = scalar_lea.vmem [#allocation2], 64
    %v1340 = vld [vmem:[%s1339] sm:$0xff]
    %v1341 = vld [vmem:[%s1339 + $0x8] sm:$0xff]
    %v1342 = vsel %vm280, %v1320, 0
    %v1344 = vsel %vm280, %v1325, 0
    %1346 = vmatprep.subr.mxu0 0.0
    %1347 = vmatpush1.msra.mxu0 %v294
    %1348 = vmatprep.subr.mxu0 0.0
    %1349 = vmatpush1.msra.mxu0 0.0
    %1350 = vmatprep.subr.mxu0 0.0
    %1351 = vmatpush1.msra.mxu0 0.0
    %1352 = vmatprep.subr.mxu0 0.0
    %1353 = vmatpush1.msra.mxu0 0.0
    %1354 = vmatprep.subr.mxu0 0.0
    %1355 = vmatpush1.msra.mxu0 0.0
    %1356 = vmatprep.subr.mxu0 0.0
    %1357 = vmatpush1.msra.mxu0 0.0
    %1358 = vmatprep.subr.mxu0 0.0
    %1359 = vmatpush1.msra.mxu0 0.0
    %1360 = vmatprep.subr.mxu0 0.0
    %1361 = vmatpush1.msra.mxu0 0.0
    %1362 = vmatprep.subr.mxu0 0.0
    %1363 = vmatpush1.msra.mxu0 0.0
    %1364 = vmatprep.subr.mxu0 0.0
    %1365 = vmatpush1.msra.mxu0 0.0
    %1366 = vmatprep.subr.mxu0 0.0
    %1367 = vmatpush1.msra.mxu0 0.0
    %1368 = vmatprep.subr.mxu0 0.0
    %1369 = vmatpush1.msra.mxu0 0.0
    %1370 = vmatprep.subr.mxu0 0.0
    %1371 = vmatpush1.msra.mxu0 0.0
    %1372 = vmatprep.subr.mxu0 0.0
    %1373 = vmatpush1.msra.mxu0 0.0
    %1374 = vmatprep.subr.mxu0 0.0
    %1375 = vmatpush1.msra.mxu0 0.0
    %1376 = vmatprep.subr.mxu0 0.0
    %1377 = vmatpush1.msra.mxu0 0.0
    %1378 = vmatprep.subr.mxu0 0.0
    %1379 = vmatpush1.msra.mxu0 0.0
    %1380 = vmatprep.subr.mxu0 0.0
    %1381 = vmatpush1.msra.mxu0 0.0
    %1382 = vmatprep.subr.mxu0 0.0
    %1383 = vmatpush1.msra.mxu0 0.0
    %1384 = vmatprep.subr.mxu0 0.0
    %1385 = vmatpush1.msra.mxu0 0.0
    %1386 = vmatprep.subr.mxu0 0.0
    %1387 = vmatpush1.msra.mxu0 0.0
    %1388 = vmatprep.subr.mxu0 0.0
    %1389 = vmatpush1.msra.mxu0 0.0
    %1390 = vmatprep.subr.mxu0 0.0
    %1391 = vmatpush1.msra.mxu0 0.0
    %1392 = vmatprep.subr.mxu0 0.0
    %1393 = vmatpush1.msra.mxu0 0.0
    %1394 = vmatprep.subr.mxu0 0.0
    %1395 = vmatpush1.msra.mxu0 0.0
    %1396 = vmatprep.subr.mxu0 0.0
    %1397 = vmatpush1.msra.mxu0 0.0
    %1398 = vmatprep.subr.mxu0 0.0
    %1399 = vmatpush1.msra.mxu0 0.0
    %1400 = vmatprep.subr.mxu0 0.0
    %1401 = vmatpush1.msra.mxu0 0.0
    %1402 = vmatprep.subr.mxu0 0.0
    %1403 = vmatpush1.msra.mxu0 0.0
    %1404 = vmatprep.subr.mxu0 0.0
    %1405 = vmatpush1.msra.mxu0 0.0
    %1406 = vmatprep.subr.mxu0 0.0
    %1407 = vmatpush1.msra.mxu0 0.0
    %1408 = vmatprep.subr.mxu0 0.0
    %1409 = vmatpush1.msra.mxu0 0.0
    %1410 = vmatprep.mubr.f32.mxu0 0.0
    %1411 = vmatmul.mubr.f32.gmra.mrb[0].mxu0 %v1342
    %v1412 = vpop.f32.mrb[0].mxu0
    %v1413 = vadd.f32 0.0, %v1412
    %v1414 = vpop.f32.mrb[0].mxu0
    %1415 = vmatprep.mubr.f32.mxu0 0.0
    %1416 = vmatmul.mubr.f32.gmra.mrb[0].mxu0 %v1344
    %v1417 = vpop.f32.mrb[0].mxu0
    %v1418 = vadd.f32 0.0, %v1417
    %v1419 = vpop.f32.mrb[0].mxu0
    %1420 = vdwg.mxu0
    %v1421 = vadd.f32 %v1340, %v1413
    %v1422 = vadd.f32 %v1341, %v1418
    %1423 = vmatprep.subr.mxu0 0.0
    %1424 = vmatpush1.msra.mxu0 %v645
    %1425 = vmatprep.subr.mxu0 0.0
    %1426 = vmatpush1.msra.mxu0 0.0
    %1427 = vmatprep.subr.mxu0 0.0
    %1428 = vmatpush1.msra.mxu0 0.0
    %1429 = vmatprep.subr.mxu0 0.0
    %1430 = vmatpush1.msra.mxu0 0.0
    %1431 = vmatprep.subr.mxu0 0.0
    %1432 = vmatpush1.msra.mxu0 0.0
    %1433 = vmatprep.subr.mxu0 0.0
    %1434 = vmatpush1.msra.mxu0 0.0
    %1435 = vmatprep.subr.mxu0 0.0
    %1436 = vmatpush1.msra.mxu0 0.0
    %1437 = vmatprep.subr.mxu0 0.0
    %1438 = vmatpush1.msra.mxu0 0.0
    %1439 = vmatprep.subr.mxu0 0.0
    %1440 = vmatpush1.msra.mxu0 0.0
    %1441 = vmatprep.subr.mxu0 0.0
    %1442 = vmatpush1.msra.mxu0 0.0
    %1443 = vmatprep.subr.mxu0 0.0
    %1444 = vmatpush1.msra.mxu0 0.0
    %1445 = vmatprep.subr.mxu0 0.0
    %1446 = vmatpush1.msra.mxu0 0.0
    %1447 = vmatprep.subr.mxu0 0.0
    %1448 = vmatpush1.msra.mxu0 0.0
    %1449 = vmatprep.subr.mxu0 0.0
    %1450 = vmatpush1.msra.mxu0 0.0
    %1451 = vmatprep.subr.mxu0 0.0
    %1452 = vmatpush1.msra.mxu0 0.0
    %1453 = vmatprep.subr.mxu0 0.0
    %1454 = vmatpush1.msra.mxu0 0.0
    %1455 = vmatprep.subr.mxu0 0.0
    %1456 = vmatpush1.msra.mxu0 0.0
    %1457 = vmatprep.subr.mxu0 0.0
    %1458 = vmatpush1.msra.mxu0 0.0
    %1459 = vmatprep.subr.mxu0 0.0
    %1460 = vmatpush1.msra.mxu0 0.0
    %1461 = vmatprep.subr.mxu0 0.0
    %1462 = vmatpush1.msra.mxu0 0.0
    %1463 = vmatprep.subr.mxu0 0.0
    %1464 = vmatpush1.msra.mxu0 0.0
    %1465 = vmatprep.subr.mxu0 0.0
    %1466 = vmatpush1.msra.mxu0 0.0
    %1467 = vmatprep.subr.mxu0 0.0
    %1468 = vmatpush1.msra.mxu0 0.0
    %1469 = vmatprep.subr.mxu0 0.0
    %1470 = vmatpush1.msra.mxu0 0.0
    %1471 = vmatprep.subr.mxu0 0.0
    %1472 = vmatpush1.msra.mxu0 0.0
    %1473 = vmatprep.subr.mxu0 0.0
    %1474 = vmatpush1.msra.mxu0 0.0
    %1475 = vmatprep.subr.mxu0 0.0
    %1476 = vmatpush1.msra.mxu0 0.0
    %1477 = vmatprep.subr.mxu0 0.0
    %1478 = vmatpush1.msra.mxu0 0.0
    %1479 = vmatprep.subr.mxu0 0.0
    %1480 = vmatpush1.msra.mxu0 0.0
    %1481 = vmatprep.subr.mxu0 0.0
    %1482 = vmatpush1.msra.mxu0 0.0
    %1483 = vmatprep.subr.mxu0 0.0
    %1484 = vmatpush1.msra.mxu0 0.0
    %1485 = vmatprep.subr.mxu0 0.0
    %1486 = vmatpush1.msra.mxu0 0.0
    %1487 = vmatprep.mubr.f32.mxu0 0.0
    %1488 = vmatmul.mubr.f32.gmra.mrb[0].mxu0 %v914
    %v1489 = vpop.f32.mrb[0].mxu0
    %v1490 = vadd.f32 0.0, %v1489
    %v1491 = vpop.f32.mrb[0].mxu0
    %1492 = vmatprep.mubr.f32.mxu0 0.0
    %1493 = vmatmul.mubr.f32.gmra.mrb[0].mxu0 %v916
    %v1494 = vpop.f32.mrb[0].mxu0
    %v1495 = vadd.f32 0.0, %v1494
    %v1496 = vpop.f32.mrb[0].mxu0
    %1497 = vdwg.mxu0
    %v1498 = vadd.f32 %v1421, %v1490
    %v1499 = vadd.f32 %v1422, %v1495
    %1500 = vmatprep.subr.mxu0 0.0
    %1501 = vmatpush1.msra.mxu0 %v1073
    %1502 = vmatprep.subr.mxu0 0.0
    %1503 = vmatpush1.msra.mxu0 0.0
    %1504 = vmatprep.subr.mxu0 0.0
    %1505 = vmatpush1.msra.mxu0 0.0
    %1506 = vmatprep.subr.mxu0 0.0
    %1507 = vmatpush1.msra.mxu0 0.0
    %1508 = vmatprep.subr.mxu0 0.0
    %1509 = vmatpush1.msra.mxu0 0.0
    %1510 = vmatprep.subr.mxu0 0.0
    %1511 = vmatpush1.msra.mxu0 0.0
    %1512 = vmatprep.subr.mxu0 0.0
    %1513 = vmatpush1.msra.mxu0 0.0
    %1514 = vmatprep.subr.mxu0 0.0
    %1515 = vmatpush1.msra.mxu0 0.0
    %1516 = vmatprep.subr.mxu0 0.0
    %1517 = vmatpush1.msra.mxu0 0.0
    %1518 = vmatprep.subr.mxu0 0.0
    %1519 = vmatpush1.msra.mxu0 0.0
    %1520 = vmatprep.subr.mxu0 0.0
    %1521 = vmatpush1.msra.mxu0 0.0
    %1522 = vmatprep.subr.mxu0 0.0
    %1523 = vmatpush1.msra.mxu0 0.0
    %1524 = vmatprep.subr.mxu0 0.0
    %1525 = vmatpush1.msra.mxu0 0.0
    %1526 = vmatprep.subr.mxu0 0.0
    %1527 = vmatpush1.msra.mxu0 0.0
    %1528 = vmatprep.subr.mxu0 0.0
    %1529 = vmatpush1.msra.mxu0 0.0
    %1530 = vmatprep.subr.mxu0 0.0
    %1531 = vmatpush1.msra.mxu0 0.0
    %1532 = vmatprep.subr.mxu0 0.0
    %1533 = vmatpush1.msra.mxu0 0.0
    %1534 = vmatprep.subr.mxu0 0.0
    %1535 = vmatpush1.msra.mxu0 0.0
    %1536 = vmatprep.subr.mxu0 0.0
    %1537 = vmatpush1.msra.mxu0 0.0
    %1538 = vmatprep.subr.mxu0 0.0
    %1539 = vmatpush1.msra.mxu0 0.0
    %1540 = vmatprep.subr.mxu0 0.0
    %1541 = vmatpush1.msra.mxu0 0.0
    %1542 = vmatprep.subr.mxu0 0.0
    %1543 = vmatpush1.msra.mxu0 0.0
    %1544 = vmatprep.subr.mxu0 0.0
    %1545 = vmatpush1.msra.mxu0 0.0
    %1546 = vmatprep.subr.mxu0 0.0
    %1547 = vmatpush1.msra.mxu0 0.0
    %1548 = vmatprep.subr.mxu0 0.0
    %1549 = vmatpush1.msra.mxu0 0.0
    %1550 = vmatprep.subr.mxu0 0.0
    %1551 = vmatpush1.msra.mxu0 0.0
    %1552 = vmatprep.subr.mxu0 0.0
    %1553 = vmatpush1.msra.mxu0 0.0
    %1554 = vmatprep.subr.mxu0 0.0
    %1555 = vmatpush1.msra.mxu0 0.0
    %1556 = vmatprep.subr.mxu0 0.0
    %1557 = vmatpush1.msra.mxu0 0.0
    %1558 = vmatprep.subr.mxu0 0.0
    %1559 = vmatpush1.msra.mxu0 0.0
    %1560 = vmatprep.subr.mxu0 0.0
    %1561 = vmatpush1.msra.mxu0 0.0
    %1562 = vmatprep.subr.mxu0 0.0
    %1563 = vmatpush1.msra.mxu0 0.0
    %1564 = vmatprep.mubr.f32.mxu0 0.0
    %1565 = vmatmul.mubr.f32.gmra.mrb[0].mxu0 %v563
    %v1566 = vpop.f32.mrb[0].mxu0
    %v1567 = vadd.f32 0.0, %v1566
    %v1568 = vpop.f32.mrb[0].mxu0
    %1569 = vmatprep.mubr.f32.mxu0 0.0
    %1570 = vmatmul.mubr.f32.gmra.mrb[0].mxu0 %v565
    %v1571 = vpop.f32.mrb[0].mxu0
    %v1572 = vadd.f32 0.0, %v1571
    %v1573 = vpop.f32.mrb[0].mxu0
    %1574 = vdwg.mxu0
    %v1575 = vadd.f32 %v1498, %v1567
    %v1576 = vadd.f32 %v1499, %v1572
    %v1578 = vsel %vm292, %v98, 0
    %1580 = vmatprep.subr.mxu0 0.0
    %1581 = vmatpush1.msra.mxu0 %v1578
    %1582 = vmatprep.subr.mxu0 0.0
    %1583 = vmatpush1.msra.mxu0 0.0
    %1584 = vmatprep.subr.mxu0 0.0
    %1585 = vmatpush1.msra.mxu0 0.0
    %1586 = vmatprep.subr.mxu0 0.0
    %1587 = vmatpush1.msra.mxu0 0.0
    %1588 = vmatprep.subr.mxu0 0.0
    %1589 = vmatpush1.msra.mxu0 0.0
    %1590 = vmatprep.subr.mxu0 0.0
    %1591 = vmatpush1.msra.mxu0 0.0
    %1592 = vmatprep.subr.mxu0 0.0
    %1593 = vmatpush1.msra.mxu0 0.0
    %1594 = vmatprep.subr.mxu0 0.0
    %1595 = vmatpush1.msra.mxu0 0.0
    %1596 = vmatprep.subr.mxu0 0.0
    %1597 = vmatpush1.msra.mxu0 0.0
    %1598 = vmatprep.subr.mxu0 0.0
    %1599 = vmatpush1.msra.mxu0 0.0
    %1600 = vmatprep.subr.mxu0 0.0
    %1601 = vmatpush1.msra.mxu0 0.0
    %1602 = vmatprep.subr.mxu0 0.0
    %1603 = vmatpush1.msra.mxu0 0.0
    %1604 = vmatprep.subr.mxu0 0.0
    %1605 = vmatpush1.msra.mxu0 0.0
    %1606 = vmatprep.subr.mxu0 0.0
    %1607 = vmatpush1.msra.mxu0 0.0
    %1608 = vmatprep.subr.mxu0 0.0
    %1609 = vmatpush1.msra.mxu0 0.0
    %1610 = vmatprep.subr.mxu0 0.0
    %1611 = vmatpush1.msra.mxu0 0.0
    %1612 = vmatprep.subr.mxu0 0.0
    %1613 = vmatpush1.msra.mxu0 0.0
    %1614 = vmatprep.subr.mxu0 0.0
    %1615 = vmatpush1.msra.mxu0 0.0
    %1616 = vmatprep.subr.mxu0 0.0
    %1617 = vmatpush1.msra.mxu0 0.0
    %1618 = vmatprep.subr.mxu0 0.0
    %1619 = vmatpush1.msra.mxu0 0.0
    %1620 = vmatprep.subr.mxu0 0.0
    %1621 = vmatpush1.msra.mxu0 0.0
    %1622 = vmatprep.subr.mxu0 0.0
    %1623 = vmatpush1.msra.mxu0 0.0
    %1624 = vmatprep.subr.mxu0 0.0
    %1625 = vmatpush1.msra.mxu0 0.0
    %1626 = vmatprep.subr.mxu0 0.0
    %1627 = vmatpush1.msra.mxu0 0.0
    %1628 = vmatprep.subr.mxu0 0.0
    %1629 = vmatpush1.msra.mxu0 0.0
    %1630 = vmatprep.subr.mxu0 0.0
    %1631 = vmatpush1.msra.mxu0 0.0
    %1632 = vmatprep.subr.mxu0 0.0
    %1633 = vmatpush1.msra.mxu0 0.0
    %1634 = vmatprep.subr.mxu0 0.0
    %1635 = vmatpush1.msra.mxu0 0.0
    %1636 = vmatprep.subr.mxu0 0.0
    %1637 = vmatpush1.msra.mxu0 0.0
    %1638 = vmatprep.subr.mxu0 0.0
    %1639 = vmatpush1.msra.mxu0 0.0
    %1640 = vmatprep.subr.mxu0 0.0
    %1641 = vmatpush1.msra.mxu0 0.0
    %1642 = vmatprep.subr.mxu0 0.0
    %1643 = vmatpush1.msra.mxu0 0.0
    %1644 = vmatprep.mubr.f32.mxu0 0.0
    %1645 = vmatmul.mubr.f32.gmra.mrb[0].mxu0 %v287
    %v1646 = vpop.f32.mrb[0].mxu0
    %v1647 = vadd.f32 0.0, %v1646
    %v1648 = vpop.f32.mrb[0].mxu0
    %1649 = vmatprep.mubr.f32.mxu0 0.0
    %1650 = vmatmul.mubr.f32.gmra.mrb[0].mxu0 %v290
    %v1651 = vpop.f32.mrb[0].mxu0
    %v1652 = vadd.f32 0.0, %v1651
    %v1653 = vpop.f32.mrb[0].mxu0
    %1654 = vdwg.mxu0
    %v1655 = vadd.f32 %v1575, %v1647
    %v1656 = vadd.f32 %v1576, %v1652
    %vm1657 = vcmp.gt.f32.partialorder %v1655, 0.0
    %vm1658 = vcmp.gt.f32.partialorder %v1656, 0.0
    %v1659 = vmul.f32 %v103, %v1655
    %v1660 = vmul.f32 %v103, %v1656
    %v1661 = vsel %vm1657, %v1655, %v1659
    %v1662 = vsel %vm1658, %v1656, %v1660
    %v1664 = vsel %vm108, %v1661, 0
    %v1667 = vsel %vm108, %v1662, 0
    %1669 = vmatprep.subr.mxu0 0.0
    %1670 = vmatpush1.msra.mxu0 %v70
    %1671 = vmatprep.subr.mxu0 0.0
    %1672 = vmatpush1.msra.mxu0 %v71
    %1673 = vmatprep.subr.mxu0 0.0
    %1674 = vmatpush1.msra.mxu0 %v72
    %1675 = vmatprep.subr.mxu0 0.0
    %1676 = vmatpush1.msra.mxu0 %v73
    %1677 = vmatprep.subr.mxu0 0.0
    %1678 = vmatpush1.msra.mxu0 0.0
    %1679 = vmatprep.subr.mxu0 0.0
    %1680 = vmatpush1.msra.mxu0 0.0
    %1681 = vmatprep.subr.mxu0 0.0
    %1682 = vmatpush1.msra.mxu0 0.0
    %1683 = vmatprep.subr.mxu0 0.0
    %1684 = vmatpush1.msra.mxu0 0.0
    %1685 = vmatprep.subr.mxu0 0.0
    %1686 = vmatpush1.msra.mxu0 0.0
    %1687 = vmatprep.subr.mxu0 0.0
    %1688 = vmatpush1.msra.mxu0 0.0
    %1689 = vmatprep.subr.mxu0 0.0
    %1690 = vmatpush1.msra.mxu0 0.0
    %1691 = vmatprep.subr.mxu0 0.0
    %1692 = vmatpush1.msra.mxu0 0.0
    %1693 = vmatprep.subr.mxu0 0.0
    %1694 = vmatpush1.msra.mxu0 0.0
    %1695 = vmatprep.subr.mxu0 0.0
    %1696 = vmatpush1.msra.mxu0 0.0
    %1697 = vmatprep.subr.mxu0 0.0
    %1698 = vmatpush1.msra.mxu0 0.0
    %1699 = vmatprep.subr.mxu0 0.0
    %1700 = vmatpush1.msra.mxu0 0.0
    %1701 = vmatprep.subr.mxu0 0.0
    %1702 = vmatpush1.msra.mxu0 0.0
    %1703 = vmatprep.subr.mxu0 0.0
    %1704 = vmatpush1.msra.mxu0 0.0
    %1705 = vmatprep.subr.mxu0 0.0
    %1706 = vmatpush1.msra.mxu0 0.0
    %1707 = vmatprep.subr.mxu0 0.0
    %1708 = vmatpush1.msra.mxu0 0.0
    %1709 = vmatprep.subr.mxu0 0.0
    %1710 = vmatpush1.msra.mxu0 0.0
    %1711 = vmatprep.subr.mxu0 0.0
    %1712 = vmatpush1.msra.mxu0 0.0
    %1713 = vmatprep.subr.mxu0 0.0
    %1714 = vmatpush1.msra.mxu0 0.0
    %1715 = vmatprep.subr.mxu0 0.0
    %1716 = vmatpush1.msra.mxu0 0.0
    %1717 = vmatprep.subr.mxu0 0.0
    %1718 = vmatpush1.msra.mxu0 0.0
    %1719 = vmatprep.subr.mxu0 0.0
    %1720 = vmatpush1.msra.mxu0 0.0
    %1721 = vmatprep.subr.mxu0 0.0
    %1722 = vmatpush1.msra.mxu0 0.0
    %1723 = vmatprep.subr.mxu0 0.0
    %1724 = vmatpush1.msra.mxu0 0.0
    %1725 = vmatprep.subr.mxu0 0.0
    %1726 = vmatpush1.msra.mxu0 0.0
    %1727 = vmatprep.subr.mxu0 0.0
    %1728 = vmatpush1.msra.mxu0 0.0
    %1729 = vmatprep.subr.mxu0 0.0
    %1730 = vmatpush1.msra.mxu0 0.0
    %1731 = vmatprep.subr.mxu0 0.0
    %1732 = vmatpush1.msra.mxu0 0.0
    %1733 = vmatprep.mubr.f32.mxu0 0.0
    %1734 = vmatmul.mubr.f32.gmra.mrb[0].mxu0 %v1664
    %v1735 = vpop.f32.mrb[0].mxu0
    %v1736 = vadd.f32 %v79, %v1735
    %v1737 = vpop.f32.mrb[0].mxu0
    %1738 = vmatprep.mubr.f32.mxu0 0.0
    %1739 = vmatmul.mubr.f32.gmra.mrb[0].mxu0 %v1667
    %v1740 = vpop.f32.mrb[0].mxu0
    %v1741 = vadd.f32 %v79, %v1740
    %v1742 = vpop.f32.mrb[0].mxu0
    %1743 = vdwg.mxu0
    %vm1744 = vcmp.gt.f32.partialorder %v1736, 0.0
    %vm1745 = vcmp.gt.f32.partialorder %v1741, 0.0
    %v1746 = vmul.f32 %v192, %v1736
    %v1747 = vmul.f32 %v192, %v1741
    %v1748 = vsel %vm1744, %v1736, %v1746
    %v1749 = vsel %vm1745, %v1741, %v1747
    %v1750 = vadd.f32 %v1661, %v1748
    %v1751 = vadd.f32 %v1662, %v1749
    %v1753 = vsel %vm108, %v1750, 0
    %v1756 = vsel %vm108, %v1751, 0
    %1758 = vmatprep.subr.mxu0 0.0
    %1759 = vmatpush1.msra.mxu0 %v81
    %1760 = vmatprep.subr.mxu0 0.0
    %1761 = vmatpush1.msra.mxu0 %v82
    %1762 = vmatprep.subr.mxu0 0.0
    %1763 = vmatpush1.msra.mxu0 %v83
    %1764 = vmatprep.subr.mxu0 0.0
    %1765 = vmatpush1.msra.mxu0 %v84
    %1766 = vmatprep.subr.mxu0 0.0
    %1767 = vmatpush1.msra.mxu0 0.0
    %1768 = vmatprep.subr.mxu0 0.0
    %1769 = vmatpush1.msra.mxu0 0.0
    %1770 = vmatprep.subr.mxu0 0.0
    %1771 = vmatpush1.msra.mxu0 0.0
    %1772 = vmatprep.subr.mxu0 0.0
    %1773 = vmatpush1.msra.mxu0 0.0
    %1774 = vmatprep.subr.mxu0 0.0
    %1775 = vmatpush1.msra.mxu0 0.0
    %1776 = vmatprep.subr.mxu0 0.0
    %1777 = vmatpush1.msra.mxu0 0.0
    %1778 = vmatprep.subr.mxu0 0.0
    %1779 = vmatpush1.msra.mxu0 0.0
    %1780 = vmatprep.subr.mxu0 0.0
    %1781 = vmatpush1.msra.mxu0 0.0
    %1782 = vmatprep.subr.mxu0 0.0
    %1783 = vmatpush1.msra.mxu0 0.0
    %1784 = vmatprep.subr.mxu0 0.0
    %1785 = vmatpush1.msra.mxu0 0.0
    %1786 = vmatprep.subr.mxu0 0.0
    %1787 = vmatpush1.msra.mxu0 0.0
    %1788 = vmatprep.subr.mxu0 0.0
    %1789 = vmatpush1.msra.mxu0 0.0
    %1790 = vmatprep.subr.mxu0 0.0
    %1791 = vmatpush1.msra.mxu0 0.0
    %1792 = vmatprep.subr.mxu0 0.0
    %1793 = vmatpush1.msra.mxu0 0.0
    %1794 = vmatprep.subr.mxu0 0.0
    %1795 = vmatpush1.msra.mxu0 0.0
    %1796 = vmatprep.subr.mxu0 0.0
    %1797 = vmatpush1.msra.mxu0 0.0
    %1798 = vmatprep.subr.mxu0 0.0
    %1799 = vmatpush1.msra.mxu0 0.0
    %1800 = vmatprep.subr.mxu0 0.0
    %1801 = vmatpush1.msra.mxu0 0.0
    %1802 = vmatprep.subr.mxu0 0.0
    %1803 = vmatpush1.msra.mxu0 0.0
    %1804 = vmatprep.subr.mxu0 0.0
    %1805 = vmatpush1.msra.mxu0 0.0
    %1806 = vmatprep.subr.mxu0 0.0
    %1807 = vmatpush1.msra.mxu0 0.0
    %1808 = vmatprep.subr.mxu0 0.0
    %1809 = vmatpush1.msra.mxu0 0.0
    %1810 = vmatprep.subr.mxu0 0.0
    %1811 = vmatpush1.msra.mxu0 0.0
    %1812 = vmatprep.subr.mxu0 0.0
    %1813 = vmatpush1.msra.mxu0 0.0
    %1814 = vmatprep.subr.mxu0 0.0
    %1815 = vmatpush1.msra.mxu0 0.0
    %1816 = vmatprep.subr.mxu0 0.0
    %1817 = vmatpush1.msra.mxu0 0.0
    %1818 = vmatprep.subr.mxu0 0.0
    %1819 = vmatpush1.msra.mxu0 0.0
    %1820 = vmatprep.subr.mxu0 0.0
    %1821 = vmatpush1.msra.mxu0 0.0
    %1822 = vmatprep.mubr.f32.mxu0 0.0
    %1823 = vmatmul.mubr.f32.gmra.mrb[0].mxu0 %v1753
    %v1824 = vpop.f32.mrb[0].mxu0
    %v1825 = vadd.f32 %v90, %v1824
    %v1826 = vpop.f32.mrb[0].mxu0
    %1827 = vmatprep.mubr.f32.mxu0 0.0
    %1828 = vmatmul.mubr.f32.gmra.mrb[0].mxu0 %v1756
    %v1829 = vpop.f32.mrb[0].mxu0
    %v1830 = vadd.f32 %v90, %v1829
    %v1831 = vpop.f32.mrb[0].mxu0
    %1832 = vdwg.mxu0
    %1835 = vrot.lane.b32.xlu0 %v1825, 16
    %v1836 = vpop.permute.xlu0 %1835
    %1837 = vrot.lane.b32.xlu0 %v1830, 16
    %v1838 = vpop.permute.xlu0 %1837
    %vm1841 = vcmask 162944
    %1842 = vst.msk [vmem:[#allocation9] sm:$0xff] %vm1841, %v1836
    %1843 = vst.msk [vmem:[#allocation9 + $0x8] sm:$0xff] %vm1841, %v1838
    %s1844 = scalar_lea.vmem [#allocation2], 80
    %v1845 = vld [vmem:[%s1844] sm:$0xff]
    %v1846 = vld [vmem:[%s1844 + $0x8] sm:$0xff]
    %v1847 = vsel %vm280, %v1825, 0
    %v1849 = vsel %vm280, %v1830, 0
    %1851 = vmatprep.subr.mxu0 0.0
    %1852 = vmatpush1.msra.mxu0 %v294
    %1853 = vmatprep.subr.mxu0 0.0
    %1854 = vmatpush1.msra.mxu0 0.0
    %1855 = vmatprep.subr.mxu0 0.0
    %1856 = vmatpush1.msra.mxu0 0.0
    %1857 = vmatprep.subr.mxu0 0.0
    %1858 = vmatpush1.msra.mxu0 0.0
    %1859 = vmatprep.subr.mxu0 0.0
    %1860 = vmatpush1.msra.mxu0 0.0
    %1861 = vmatprep.subr.mxu0 0.0
    %1862 = vmatpush1.msra.mxu0 0.0
    %1863 = vmatprep.subr.mxu0 0.0
    %1864 = vmatpush1.msra.mxu0 0.0
    %1865 = vmatprep.subr.mxu0 0.0
    %1866 = vmatpush1.msra.mxu0 0.0
    %1867 = vmatprep.subr.mxu0 0.0
    %1868 = vmatpush1.msra.mxu0 0.0
    %1869 = vmatprep.subr.mxu0 0.0
    %1870 = vmatpush1.msra.mxu0 0.0
    %1871 = vmatprep.subr.mxu0 0.0
    %1872 = vmatpush1.msra.mxu0 0.0
    %1873 = vmatprep.subr.mxu0 0.0
    %1874 = vmatpush1.msra.mxu0 0.0
    %1875 = vmatprep.subr.mxu0 0.0
    %1876 = vmatpush1.msra.mxu0 0.0
    %1877 = vmatprep.subr.mxu0 0.0
    %1878 = vmatpush1.msra.mxu0 0.0
    %1879 = vmatprep.subr.mxu0 0.0
    %1880 = vmatpush1.msra.mxu0 0.0
    %1881 = vmatprep.subr.mxu0 0.0
    %1882 = vmatpush1.msra.mxu0 0.0
    %1883 = vmatprep.subr.mxu0 0.0
    %1884 = vmatpush1.msra.mxu0 0.0
    %1885 = vmatprep.subr.mxu0 0.0
    %1886 = vmatpush1.msra.mxu0 0.0
    %1887 = vmatprep.subr.mxu0 0.0
    %1888 = vmatpush1.msra.mxu0 0.0
    %1889 = vmatprep.subr.mxu0 0.0
    %1890 = vmatpush1.msra.mxu0 0.0
    %1891 = vmatprep.subr.mxu0 0.0
    %1892 = vmatpush1.msra.mxu0 0.0
    %1893 = vmatprep.subr.mxu0 0.0
    %1894 = vmatpush1.msra.mxu0 0.0
    %1895 = vmatprep.subr.mxu0 0.0
    %1896 = vmatpush1.msra.mxu0 0.0
    %1897 = vmatprep.subr.mxu0 0.0
    %1898 = vmatpush1.msra.mxu0 0.0
    %1899 = vmatprep.subr.mxu0 0.0
    %1900 = vmatpush1.msra.mxu0 0.0
    %1901 = vmatprep.subr.mxu0 0.0
    %1902 = vmatpush1.msra.mxu0 0.0
    %1903 = vmatprep.subr.mxu0 0.0
    %1904 = vmatpush1.msra.mxu0 0.0
    %1905 = vmatprep.subr.mxu0 0.0
    %1906 = vmatpush1.msra.mxu0 0.0
    %1907 = vmatprep.subr.mxu0 0.0
    %1908 = vmatpush1.msra.mxu0 0.0
    %1909 = vmatprep.subr.mxu0 0.0
    %1910 = vmatpush1.msra.mxu0 0.0
    %1911 = vmatprep.subr.mxu0 0.0
    %1912 = vmatpush1.msra.mxu0 0.0
    %1913 = vmatprep.subr.mxu0 0.0
    %1914 = vmatpush1.msra.mxu0 0.0
    %1915 = vmatprep.mubr.f32.mxu0 0.0
    %1916 = vmatmul.mubr.f32.gmra.mrb[0].mxu0 %v1847
    %v1917 = vpop.f32.mrb[0].mxu0
    %v1918 = vadd.f32 0.0, %v1917
    %v1919 = vpop.f32.mrb[0].mxu0
    %1920 = vmatprep.mubr.f32.mxu0 0.0
    %1921 = vmatmul.mubr.f32.gmra.mrb[0].mxu0 %v1849
    %v1922 = vpop.f32.mrb[0].mxu0
    %v1923 = vadd.f32 0.0, %v1922
    %v1924 = vpop.f32.mrb[0].mxu0
    %1925 = vdwg.mxu0
    %v1926 = vadd.f32 %v1845, %v1918
    %v1927 = vadd.f32 %v1846, %v1923
    %1928 = vmatprep.subr.mxu0 0.0
    %1929 = vmatpush1.msra.mxu0 %v645
    %1930 = vmatprep.subr.mxu0 0.0
    %1931 = vmatpush1.msra.mxu0 0.0
    %1932 = vmatprep.subr.mxu0 0.0
    %1933 = vmatpush1.msra.mxu0 0.0
    %1934 = vmatprep.subr.mxu0 0.0
    %1935 = vmatpush1.msra.mxu0 0.0
    %1936 = vmatprep.subr.mxu0 0.0
    %1937 = vmatpush1.msra.mxu0 0.0
    %1938 = vmatprep.subr.mxu0 0.0
    %1939 = vmatpush1.msra.mxu0 0.0
    %1940 = vmatprep.subr.mxu0 0.0
    %1941 = vmatpush1.msra.mxu0 0.0
    %1942 = vmatprep.subr.mxu0 0.0
    %1943 = vmatpush1.msra.mxu0 0.0
    %1944 = vmatprep.subr.mxu0 0.0
    %1945 = vmatpush1.msra.mxu0 0.0
    %1946 = vmatprep.subr.mxu0 0.0
    %1947 = vmatpush1.msra.mxu0 0.0
    %1948 = vmatprep.subr.mxu0 0.0
    %1949 = vmatpush1.msra.mxu0 0.0
    %1950 = vmatprep.subr.mxu0 0.0
    %1951 = vmatpush1.msra.mxu0 0.0
    %1952 = vmatprep.subr.mxu0 0.0
    %1953 = vmatpush1.msra.mxu0 0.0
    %1954 = vmatprep.subr.mxu0 0.0
    %1955 = vmatpush1.msra.mxu0 0.0
    %1956 = vmatprep.subr.mxu0 0.0
    %1957 = vmatpush1.msra.mxu0 0.0
    %1958 = vmatprep.subr.mxu0 0.0
    %1959 = vmatpush1.msra.mxu0 0.0
    %1960 = vmatprep.subr.mxu0 0.0
    %1961 = vmatpush1.msra.mxu0 0.0
    %1962 = vmatprep.subr.mxu0 0.0
    %1963 = vmatpush1.msra.mxu0 0.0
    %1964 = vmatprep.subr.mxu0 0.0
    %1965 = vmatpush1.msra.mxu0 0.0
    %1966 = vmatprep.subr.mxu0 0.0
    %1967 = vmatpush1.msra.mxu0 0.0
    %1968 = vmatprep.subr.mxu0 0.0
    %1969 = vmatpush1.msra.mxu0 0.0
    %1970 = vmatprep.subr.mxu0 0.0
    %1971 = vmatpush1.msra.mxu0 0.0
    %1972 = vmatprep.subr.mxu0 0.0
    %1973 = vmatpush1.msra.mxu0 0.0
    %1974 = vmatprep.subr.mxu0 0.0
    %1975 = vmatpush1.msra.mxu0 0.0
    %1976 = vmatprep.subr.mxu0 0.0
    %1977 = vmatpush1.msra.mxu0 0.0
    %1978 = vmatprep.subr.mxu0 0.0
    %1979 = vmatpush1.msra.mxu0 0.0
    %1980 = vmatprep.subr.mxu0 0.0
    %1981 = vmatpush1.msra.mxu0 0.0
    %1982 = vmatprep.subr.mxu0 0.0
    %1983 = vmatpush1.msra.mxu0 0.0
    %1984 = vmatprep.subr.mxu0 0.0
    %1985 = vmatpush1.msra.mxu0 0.0
    %1986 = vmatprep.subr.mxu0 0.0
    %1987 = vmatpush1.msra.mxu0 0.0
    %1988 = vmatprep.subr.mxu0 0.0
    %1989 = vmatpush1.msra.mxu0 0.0
    %1990 = vmatprep.subr.mxu0 0.0
    %1991 = vmatpush1.msra.mxu0 0.0
    %1992 = vmatprep.mubr.f32.mxu0 0.0
    %1993 = vmatmul.mubr.f32.gmra.mrb[0].mxu0 %v1342
    %v1994 = vpop.f32.mrb[0].mxu0
    %v1995 = vadd.f32 0.0, %v1994
    %v1996 = vpop.f32.mrb[0].mxu0
    %1997 = vmatprep.mubr.f32.mxu0 0.0
    %1998 = vmatmul.mubr.f32.gmra.mrb[0].mxu0 %v1344
    %v1999 = vpop.f32.mrb[0].mxu0
    %v2000 = vadd.f32 0.0, %v1999
    %v2001 = vpop.f32.mrb[0].mxu0
    %2002 = vdwg.mxu0
    %v2003 = vadd.f32 %v1926, %v1995
    %v2004 = vadd.f32 %v1927, %v2000
    %2005 = vmatprep.subr.mxu0 0.0
    %2006 = vmatpush1.msra.mxu0 %v1073
    %2007 = vmatprep.subr.mxu0 0.0
    %2008 = vmatpush1.msra.mxu0 0.0
    %2009 = vmatprep.subr.mxu0 0.0
    %2010 = vmatpush1.msra.mxu0 0.0
    %2011 = vmatprep.subr.mxu0 0.0
    %2012 = vmatpush1.msra.mxu0 0.0
    %2013 = vmatprep.subr.mxu0 0.0
    %2014 = vmatpush1.msra.mxu0 0.0
    %2015 = vmatprep.subr.mxu0 0.0
    %2016 = vmatpush1.msra.mxu0 0.0
    %2017 = vmatprep.subr.mxu0 0.0
    %2018 = vmatpush1.msra.mxu0 0.0
    %2019 = vmatprep.subr.mxu0 0.0
    %2020 = vmatpush1.msra.mxu0 0.0
    %2021 = vmatprep.subr.mxu0 0.0
    %2022 = vmatpush1.msra.mxu0 0.0
    %2023 = vmatprep.subr.mxu0 0.0
    %2024 = vmatpush1.msra.mxu0 0.0
    %2025 = vmatprep.subr.mxu0 0.0
    %2026 = vmatpush1.msra.mxu0 0.0
    %2027 = vmatprep.subr.mxu0 0.0
    %2028 = vmatpush1.msra.mxu0 0.0
    %2029 = vmatprep.subr.mxu0 0.0
    %2030 = vmatpush1.msra.mxu0 0.0
    %2031 = vmatprep.subr.mxu0 0.0
    %2032 = vmatpush1.msra.mxu0 0.0
    %2033 = vmatprep.subr.mxu0 0.0
    %2034 = vmatpush1.msra.mxu0 0.0
    %2035 = vmatprep.subr.mxu0 0.0
    %2036 = vmatpush1.msra.mxu0 0.0
    %2037 = vmatprep.subr.mxu0 0.0
    %2038 = vmatpush1.msra.mxu0 0.0
    %2039 = vmatprep.subr.mxu0 0.0
    %2040 = vmatpush1.msra.mxu0 0.0
    %2041 = vmatprep.subr.mxu0 0.0
    %2042 = vmatpush1.msra.mxu0 0.0
    %2043 = vmatprep.subr.mxu0 0.0
    %2044 = vmatpush1.msra.mxu0 0.0
    %2045 = vmatprep.subr.mxu0 0.0
    %2046 = vmatpush1.msra.mxu0 0.0
    %2047 = vmatprep.subr.mxu0 0.0
    %2048 = vmatpush1.msra.mxu0 0.0
    %2049 = vmatprep.subr.mxu0 0.0
    %2050 = vmatpush1.msra.mxu0 0.0
    %2051 = vmatprep.subr.mxu0 0.0
    %2052 = vmatpush1.msra.mxu0 0.0
    %2053 = vmatprep.subr.mxu0 0.0
    %2054 = vmatpush1.msra.mxu0 0.0
    %2055 = vmatprep.subr.mxu0 0.0
    %2056 = vmatpush1.msra.mxu0 0.0
    %2057 = vmatprep.subr.mxu0 0.0
    %2058 = vmatpush1.msra.mxu0 0.0
    %2059 = vmatprep.subr.mxu0 0.0
    %2060 = vmatpush1.msra.mxu0 0.0
    %2061 = vmatprep.subr.mxu0 0.0
    %2062 = vmatpush1.msra.mxu0 0.0
    %2063 = vmatprep.subr.mxu0 0.0
    %2064 = vmatpush1.msra.mxu0 0.0
    %2065 = vmatprep.subr.mxu0 0.0
    %2066 = vmatpush1.msra.mxu0 0.0
    %2067 = vmatprep.subr.mxu0 0.0
    %2068 = vmatpush1.msra.mxu0 0.0
    %2069 = vmatprep.mubr.f32.mxu0 0.0
    %2070 = vmatmul.mubr.f32.gmra.mrb[0].mxu0 %v914
    %v2071 = vpop.f32.mrb[0].mxu0
    %v2072 = vadd.f32 0.0, %v2071
    %v2073 = vpop.f32.mrb[0].mxu0
    %2074 = vmatprep.mubr.f32.mxu0 0.0
    %2075 = vmatmul.mubr.f32.gmra.mrb[0].mxu0 %v916
    %v2076 = vpop.f32.mrb[0].mxu0
    %v2077 = vadd.f32 0.0, %v2076
    %v2078 = vpop.f32.mrb[0].mxu0
    %2079 = vdwg.mxu0
    %v2080 = vadd.f32 %v2003, %v2072
    %v2081 = vadd.f32 %v2004, %v2077
    %2082 = vmatprep.subr.mxu0 0.0
    %2083 = vmatpush1.msra.mxu0 %v1578
    %2084 = vmatprep.subr.mxu0 0.0
    %2085 = vmatpush1.msra.mxu0 0.0
    %2086 = vmatprep.subr.mxu0 0.0
    %2087 = vmatpush1.msra.mxu0 0.0
    %2088 = vmatprep.subr.mxu0 0.0
    %2089 = vmatpush1.msra.mxu0 0.0
    %2090 = vmatprep.subr.mxu0 0.0
    %2091 = vmatpush1.msra.mxu0 0.0
    %2092 = vmatprep.subr.mxu0 0.0
    %2093 = vmatpush1.msra.mxu0 0.0
    %2094 = vmatprep.subr.mxu0 0.0
    %2095 = vmatpush1.msra.mxu0 0.0
    %2096 = vmatprep.subr.mxu0 0.0
    %2097 = vmatpush1.msra.mxu0 0.0
    %2098 = vmatprep.subr.mxu0 0.0
    %2099 = vmatpush1.msra.mxu0 0.0
    %2100 = vmatprep.subr.mxu0 0.0
    %2101 = vmatpush1.msra.mxu0 0.0
    %2102 = vmatprep.subr.mxu0 0.0
    %2103 = vmatpush1.msra.mxu0 0.0
    %2104 = vmatprep.subr.mxu0 0.0
    %2105 = vmatpush1.msra.mxu0 0.0
    %2106 = vmatprep.subr.mxu0 0.0
    %2107 = vmatpush1.msra.mxu0 0.0
    %2108 = vmatprep.subr.mxu0 0.0
    %2109 = vmatpush1.msra.mxu0 0.0
    %2110 = vmatprep.subr.mxu0 0.0
    %2111 = vmatpush1.msra.mxu0 0.0
    %2112 = vmatprep.subr.mxu0 0.0
    %2113 = vmatpush1.msra.mxu0 0.0
    %2114 = vmatprep.subr.mxu0 0.0
    %2115 = vmatpush1.msra.mxu0 0.0
    %2116 = vmatprep.subr.mxu0 0.0
    %2117 = vmatpush1.msra.mxu0 0.0
    %2118 = vmatprep.subr.mxu0 0.0
    %2119 = vmatpush1.msra.mxu0 0.0
    %2120 = vmatprep.subr.mxu0 0.0
    %2121 = vmatpush1.msra.mxu0 0.0
    %2122 = vmatprep.subr.mxu0 0.0
    %2123 = vmatpush1.msra.mxu0 0.0
    %2124 = vmatprep.subr.mxu0 0.0
    %2125 = vmatpush1.msra.mxu0 0.0
    %2126 = vmatprep.subr.mxu0 0.0
    %2127 = vmatpush1.msra.mxu0 0.0
    %2128 = vmatprep.subr.mxu0 0.0
    %2129 = vmatpush1.msra.mxu0 0.0
    %2130 = vmatprep.subr.mxu0 0.0
    %2131 = vmatpush1.msra.mxu0 0.0
    %2132 = vmatprep.subr.mxu0 0.0
    %2133 = vmatpush1.msra.mxu0 0.0
    %2134 = vmatprep.subr.mxu0 0.0
    %2135 = vmatpush1.msra.mxu0 0.0
    %2136 = vmatprep.subr.mxu0 0.0
    %2137 = vmatpush1.msra.mxu0 0.0
    %2138 = vmatprep.subr.mxu0 0.0
    %2139 = vmatpush1.msra.mxu0 0.0
    %2140 = vmatprep.subr.mxu0 0.0
    %2141 = vmatpush1.msra.mxu0 0.0
    %2142 = vmatprep.subr.mxu0 0.0
    %2143 = vmatpush1.msra.mxu0 0.0
    %2144 = vmatprep.subr.mxu0 0.0
    %2145 = vmatpush1.msra.mxu0 0.0
    %2146 = vmatprep.mubr.f32.mxu0 0.0
    %2147 = vmatmul.mubr.f32.gmra.mrb[0].mxu0 %v563
    %v2148 = vpop.f32.mrb[0].mxu0
    %v2149 = vadd.f32 0.0, %v2148
    %v2150 = vpop.f32.mrb[0].mxu0
    %2151 = vmatprep.mubr.f32.mxu0 0.0
    %2152 = vmatmul.mubr.f32.gmra.mrb[0].mxu0 %v565
    %v2153 = vpop.f32.mrb[0].mxu0
    %v2154 = vadd.f32 0.0, %v2153
    %v2155 = vpop.f32.mrb[0].mxu0
    %2156 = vdwg.mxu0
    %v2157 = vadd.f32 %v2080, %v2149
    %v2158 = vadd.f32 %v2081, %v2154
    %vm2159 = vcmp.gt.f32.partialorder %v2157, 0.0
    %vm2160 = vcmp.gt.f32.partialorder %v2158, 0.0
    %v2161 = vmul.f32 %v103, %v2157
    %v2162 = vmul.f32 %v103, %v2158
    %v2163 = vsel %vm2159, %v2157, %v2161
    %v2164 = vsel %vm2160, %v2158, %v2162
    %v2166 = vsel %vm108, %v2163, 0
    %v2169 = vsel %vm108, %v2164, 0
    %2171 = vmatprep.subr.mxu0 0.0
    %2172 = vmatpush1.msra.mxu0 %v70
    %2173 = vmatprep.subr.mxu0 0.0
    %2174 = vmatpush1.msra.mxu0 %v71
    %2175 = vmatprep.subr.mxu0 0.0
    %2176 = vmatpush1.msra.mxu0 %v72
    %2177 = vmatprep.subr.mxu0 0.0
    %2178 = vmatpush1.msra.mxu0 %v73
    %2179 = vmatprep.subr.mxu0 0.0
    %2180 = vmatpush1.msra.mxu0 0.0
    %2181 = vmatprep.subr.mxu0 0.0
    %2182 = vmatpush1.msra.mxu0 0.0
    %2183 = vmatprep.subr.mxu0 0.0
    %2184 = vmatpush1.msra.mxu0 0.0
    %2185 = vmatprep.subr.mxu0 0.0
    %2186 = vmatpush1.msra.mxu0 0.0
    %2187 = vmatprep.subr.mxu0 0.0
    %2188 = vmatpush1.msra.mxu0 0.0
    %2189 = vmatprep.subr.mxu0 0.0
    %2190 = vmatpush1.msra.mxu0 0.0
    %2191 = vmatprep.subr.mxu0 0.0
    %2192 = vmatpush1.msra.mxu0 0.0
    %2193 = vmatprep.subr.mxu0 0.0
    %2194 = vmatpush1.msra.mxu0 0.0
    %2195 = vmatprep.subr.mxu0 0.0
    %2196 = vmatpush1.msra.mxu0 0.0
    %2197 = vmatprep.subr.mxu0 0.0
    %2198 = vmatpush1.msra.mxu0 0.0
    %2199 = vmatprep.subr.mxu0 0.0
    %2200 = vmatpush1.msra.mxu0 0.0
    %2201 = vmatprep.subr.mxu0 0.0
    %2202 = vmatpush1.msra.mxu0 0.0
    %2203 = vmatprep.subr.mxu0 0.0
    %2204 = vmatpush1.msra.mxu0 0.0
    %2205 = vmatprep.subr.mxu0 0.0
    %2206 = vmatpush1.msra.mxu0 0.0
    %2207 = vmatprep.subr.mxu0 0.0
    %2208 = vmatpush1.msra.mxu0 0.0
    %2209 = vmatprep.subr.mxu0 0.0
    %2210 = vmatpush1.msra.mxu0 0.0
    %2211 = vmatprep.subr.mxu0 0.0
    %2212 = vmatpush1.msra.mxu0 0.0
    %2213 = vmatprep.subr.mxu0 0.0
    %2214 = vmatpush1.msra.mxu0 0.0
    %2215 = vmatprep.subr.mxu0 0.0
    %2216 = vmatpush1.msra.mxu0 0.0
    %2217 = vmatprep.subr.mxu0 0.0
    %2218 = vmatpush1.msra.mxu0 0.0
    %2219 = vmatprep.subr.mxu0 0.0
    %2220 = vmatpush1.msra.mxu0 0.0
    %2221 = vmatprep.subr.mxu0 0.0
    %2222 = vmatpush1.msra.mxu0 0.0
    %2223 = vmatprep.subr.mxu0 0.0
    %2224 = vmatpush1.msra.mxu0 0.0
    %2225 = vmatprep.subr.mxu0 0.0
    %2226 = vmatpush1.msra.mxu0 0.0
    %2227 = vmatprep.subr.mxu0 0.0
    %2228 = vmatpush1.msra.mxu0 0.0
    %2229 = vmatprep.subr.mxu0 0.0
    %2230 = vmatpush1.msra.mxu0 0.0
    %2231 = vmatprep.subr.mxu0 0.0
    %2232 = vmatpush1.msra.mxu0 0.0
    %2233 = vmatprep.subr.mxu0 0.0
    %2234 = vmatpush1.msra.mxu0 0.0
    %2235 = vmatprep.mubr.f32.mxu0 0.0
    %2236 = vmatmul.mubr.f32.gmra.mrb[0].mxu0 %v2166
    %v2237 = vpop.f32.mrb[0].mxu0
    %v2238 = vadd.f32 %v79, %v2237
    %v2239 = vpop.f32.mrb[0].mxu0
    %2240 = vmatprep.mubr.f32.mxu0 0.0
    %2241 = vmatmul.mubr.f32.gmra.mrb[0].mxu0 %v2169
    %v2242 = vpop.f32.mrb[0].mxu0
    %v2243 = vadd.f32 %v79, %v2242
    %v2244 = vpop.f32.mrb[0].mxu0
    %2245 = vdwg.mxu0
    %vm2246 = vcmp.gt.f32.partialorder %v2238, 0.0
    %vm2247 = vcmp.gt.f32.partialorder %v2243, 0.0
    %v2248 = vmul.f32 %v192, %v2238
    %v2249 = vmul.f32 %v192, %v2243
    %v2250 = vsel %vm2246, %v2238, %v2248
    %v2251 = vsel %vm2247, %v2243, %v2249
    %v2252 = vadd.f32 %v2163, %v2250
    %v2253 = vadd.f32 %v2164, %v2251
    %v2255 = vsel %vm108, %v2252, 0
    %v2258 = vsel %vm108, %v2253, 0
    %2260 = vmatprep.subr.mxu0 0.0
    %2261 = vmatpush1.msra.mxu0 %v81
    %2262 = vmatprep.subr.mxu0 0.0
    %2263 = vmatpush1.msra.mxu0 %v82
    %2264 = vmatprep.subr.mxu0 0.0
    %2265 = vmatpush1.msra.mxu0 %v83
    %2266 = vmatprep.subr.mxu0 0.0
    %2267 = vmatpush1.msra.mxu0 %v84
    %2268 = vmatprep.subr.mxu0 0.0
    %2269 = vmatpush1.msra.mxu0 0.0
    %2270 = vmatprep.subr.mxu0 0.0
    %2271 = vmatpush1.msra.mxu0 0.0
    %2272 = vmatprep.subr.mxu0 0.0
    %2273 = vmatpush1.msra.mxu0 0.0
    %2274 = vmatprep.subr.mxu0 0.0
    %2275 = vmatpush1.msra.mxu0 0.0
    %2276 = vmatprep.subr.mxu0 0.0
    %2277 = vmatpush1.msra.mxu0 0.0
    %2278 = vmatprep.subr.mxu0 0.0
    %2279 = vmatpush1.msra.mxu0 0.0
    %2280 = vmatprep.subr.mxu0 0.0
    %2281 = vmatpush1.msra.mxu0 0.0
    %2282 = vmatprep.subr.mxu0 0.0
    %2283 = vmatpush1.msra.mxu0 0.0
    %2284 = vmatprep.subr.mxu0 0.0
    %2285 = vmatpush1.msra.mxu0 0.0
    %2286 = vmatprep.subr.mxu0 0.0
    %2287 = vmatpush1.msra.mxu0 0.0
    %2288 = vmatprep.subr.mxu0 0.0
    %2289 = vmatpush1.msra.mxu0 0.0
    %2290 = vmatprep.subr.mxu0 0.0
    %2291 = vmatpush1.msra.mxu0 0.0
    %2292 = vmatprep.subr.mxu0 0.0
    %2293 = vmatpush1.msra.mxu0 0.0
    %2294 = vmatprep.subr.mxu0 0.0
    %2295 = vmatpush1.msra.mxu0 0.0
    %2296 = vmatprep.subr.mxu0 0.0
    %2297 = vmatpush1.msra.mxu0 0.0
    %2298 = vmatprep.subr.mxu0 0.0
    %2299 = vmatpush1.msra.mxu0 0.0
    %2300 = vmatprep.subr.mxu0 0.0
    %2301 = vmatpush1.msra.mxu0 0.0
    %2302 = vmatprep.subr.mxu0 0.0
    %2303 = vmatpush1.msra.mxu0 0.0
    %2304 = vmatprep.subr.mxu0 0.0
    %2305 = vmatpush1.msra.mxu0 0.0
    %2306 = vmatprep.subr.mxu0 0.0
    %2307 = vmatpush1.msra.mxu0 0.0
    %2308 = vmatprep.subr.mxu0 0.0
    %2309 = vmatpush1.msra.mxu0 0.0
    %2310 = vmatprep.subr.mxu0 0.0
    %2311 = vmatpush1.msra.mxu0 0.0
    %2312 = vmatprep.subr.mxu0 0.0
    %2313 = vmatpush1.msra.mxu0 0.0
    %2314 = vmatprep.subr.mxu0 0.0
    %2315 = vmatpush1.msra.mxu0 0.0
    %2316 = vmatprep.subr.mxu0 0.0
    %2317 = vmatpush1.msra.mxu0 0.0
    %2318 = vmatprep.subr.mxu0 0.0
    %2319 = vmatpush1.msra.mxu0 0.0
    %2320 = vmatprep.subr.mxu0 0.0
    %2321 = vmatpush1.msra.mxu0 0.0
    %2322 = vmatprep.subr.mxu0 0.0
    %2323 = vmatpush1.msra.mxu0 0.0
    %2324 = vmatprep.mubr.f32.mxu0 0.0
    %2325 = vmatmul.mubr.f32.gmra.mrb[0].mxu0 %v2255
    %v2326 = vpop.f32.mrb[0].mxu0
    %v2327 = vadd.f32 %v90, %v2326
    %v2328 = vpop.f32.mrb[0].mxu0
    %2329 = vmatprep.mubr.f32.mxu0 0.0
    %2330 = vmatmul.mubr.f32.gmra.mrb[0].mxu0 %v2258
    %v2331 = vpop.f32.mrb[0].mxu0
    %v2332 = vadd.f32 %v90, %v2331
    %v2333 = vpop.f32.mrb[0].mxu0
    %2334 = vdwg.mxu0
    %2337 = vrot.lane.b32.xlu0 %v2327, 20
    %v2338 = vpop.permute.xlu0 %2337
    %2339 = vrot.lane.b32.xlu0 %v2332, 20
    %v2340 = vpop.permute.xlu0 %2339
    %vm2343 = vcmask 195744
    %2344 = vst.msk [vmem:[#allocation9] sm:$0xff] %vm2343, %v2338
    %2345 = vst.msk [vmem:[#allocation9 + $0x8] sm:$0xff] %vm2343, %v2340
    %s2346 = scalar_lea.vmem [#allocation2], 96
    %v2347 = vld [vmem:[%s2346] sm:$0xff]
    %v2348 = vld [vmem:[%s2346 + $0x8] sm:$0xff]
    %v2349 = vsel %vm280, %v2327, 0
    %v2351 = vsel %vm280, %v2332, 0
    %2353 = vmatprep.subr.mxu0 0.0
    %2354 = vmatpush1.msra.mxu0 %v294
    %2355 = vmatprep.subr.mxu0 0.0
    %2356 = vmatpush1.msra.mxu0 0.0
    %2357 = vmatprep.subr.mxu0 0.0
    %2358 = vmatpush1.msra.mxu0 0.0
    %2359 = vmatprep.subr.mxu0 0.0
    %2360 = vmatpush1.msra.mxu0 0.0
    %2361 = vmatprep.subr.mxu0 0.0
    %2362 = vmatpush1.msra.mxu0 0.0
    %2363 = vmatprep.subr.mxu0 0.0
    %2364 = vmatpush1.msra.mxu0 0.0
    %2365 = vmatprep.subr.mxu0 0.0
    %2366 = vmatpush1.msra.mxu0 0.0
    %2367 = vmatprep.subr.mxu0 0.0
    %2368 = vmatpush1.msra.mxu0 0.0
    %2369 = vmatprep.subr.mxu0 0.0
    %2370 = vmatpush1.msra.mxu0 0.0
    %2371 = vmatprep.subr.mxu0 0.0
    %2372 = vmatpush1.msra.mxu0 0.0
    %2373 = vmatprep.subr.mxu0 0.0
    %2374 = vmatpush1.msra.mxu0 0.0
    %2375 = vmatprep.subr.mxu0 0.0
    %2376 = vmatpush1.msra.mxu0 0.0
    %2377 = vmatprep.subr.mxu0 0.0
    %2378 = vmatpush1.msra.mxu0 0.0
    %2379 = vmatprep.subr.mxu0 0.0
    %2380 = vmatpush1.msra.mxu0 0.0
    %2381 = vmatprep.subr.mxu0 0.0
    %2382 = vmatpush1.msra.mxu0 0.0
    %2383 = vmatprep.subr.mxu0 0.0
    %2384 = vmatpush1.msra.mxu0 0.0
    %2385 = vmatprep.subr.mxu0 0.0
    %2386 = vmatpush1.msra.mxu0 0.0
    %2387 = vmatprep.subr.mxu0 0.0
    %2388 = vmatpush1.msra.mxu0 0.0
    %2389 = vmatprep.subr.mxu0 0.0
    %2390 = vmatpush1.msra.mxu0 0.0
    %2391 = vmatprep.subr.mxu0 0.0
    %2392 = vmatpush1.msra.mxu0 0.0
    %2393 = vmatprep.subr.mxu0 0.0
    %2394 = vmatpush1.msra.mxu0 0.0
    %2395 = vmatprep.subr.mxu0 0.0
    %2396 = vmatpush1.msra.mxu0 0.0
    %2397 = vmatprep.subr.mxu0 0.0
    %2398 = vmatpush1.msra.mxu0 0.0
    %2399 = vmatprep.subr.mxu0 0.0
    %2400 = vmatpush1.msra.mxu0 0.0
    %2401 = vmatprep.subr.mxu0 0.0
    %2402 = vmatpush1.msra.mxu0 0.0
    %2403 = vmatprep.subr.mxu0 0.0
    %2404 = vmatpush1.msra.mxu0 0.0
    %2405 = vmatprep.subr.mxu0 0.0
    %2406 = vmatpush1.msra.mxu0 0.0
    %2407 = vmatprep.subr.mxu0 0.0
    %2408 = vmatpush1.msra.mxu0 0.0
    %2409 = vmatprep.subr.mxu0 0.0
    %2410 = vmatpush1.msra.mxu0 0.0
    %2411 = vmatprep.subr.mxu0 0.0
    %2412 = vmatpush1.msra.mxu0 0.0
    %2413 = vmatprep.subr.mxu0 0.0
    %2414 = vmatpush1.msra.mxu0 0.0
    %2415 = vmatprep.subr.mxu0 0.0
    %2416 = vmatpush1.msra.mxu0 0.0
    %2417 = vmatprep.mubr.f32.mxu0 0.0
    %2418 = vmatmul.mubr.f32.gmra.mrb[0].mxu0 %v2349
    %v2419 = vpop.f32.mrb[0].mxu0
    %v2420 = vadd.f32 0.0, %v2419
    %v2421 = vpop.f32.mrb[0].mxu0
    %2422 = vmatprep.mubr.f32.mxu0 0.0
    %2423 = vmatmul.mubr.f32.gmra.mrb[0].mxu0 %v2351
    %v2424 = vpop.f32.mrb[0].mxu0
    %v2425 = vadd.f32 0.0, %v2424
    %v2426 = vpop.f32.mrb[0].mxu0
    %2427 = vdwg.mxu0
    %v2428 = vadd.f32 %v2347, %v2420
    %v2429 = vadd.f32 %v2348, %v2425
    %2430 = vmatprep.subr.mxu0 0.0
    %2431 = vmatpush1.msra.mxu0 %v645
    %2432 = vmatprep.subr.mxu0 0.0
    %2433 = vmatpush1.msra.mxu0 0.0
    %2434 = vmatprep.subr.mxu0 0.0
    %2435 = vmatpush1.msra.mxu0 0.0
    %2436 = vmatprep.subr.mxu0 0.0
    %2437 = vmatpush1.msra.mxu0 0.0
    %2438 = vmatprep.subr.mxu0 0.0
    %2439 = vmatpush1.msra.mxu0 0.0
    %2440 = vmatprep.subr.mxu0 0.0
    %2441 = vmatpush1.msra.mxu0 0.0
    %2442 = vmatprep.subr.mxu0 0.0
    %2443 = vmatpush1.msra.mxu0 0.0
    %2444 = vmatprep.subr.mxu0 0.0
    %2445 = vmatpush1.msra.mxu0 0.0
    %2446 = vmatprep.subr.mxu0 0.0
    %2447 = vmatpush1.msra.mxu0 0.0
    %2448 = vmatprep.subr.mxu0 0.0
    %2449 = vmatpush1.msra.mxu0 0.0
    %2450 = vmatprep.subr.mxu0 0.0
    %2451 = vmatpush1.msra.mxu0 0.0
    %2452 = vmatprep.subr.mxu0 0.0
    %2453 = vmatpush1.msra.mxu0 0.0
    %2454 = vmatprep.subr.mxu0 0.0
    %2455 = vmatpush1.msra.mxu0 0.0
    %2456 = vmatprep.subr.mxu0 0.0
    %2457 = vmatpush1.msra.mxu0 0.0
    %2458 = vmatprep.subr.mxu0 0.0
    %2459 = vmatpush1.msra.mxu0 0.0
    %2460 = vmatprep.subr.mxu0 0.0
    %2461 = vmatpush1.msra.mxu0 0.0
    %2462 = vmatprep.subr.mxu0 0.0
    %2463 = vmatpush1.msra.mxu0 0.0
    %2464 = vmatprep.subr.mxu0 0.0
    %2465 = vmatpush1.msra.mxu0 0.0
    %2466 = vmatprep.subr.mxu0 0.0
    %2467 = vmatpush1.msra.mxu0 0.0
    %2468 = vmatprep.subr.mxu0 0.0
    %2469 = vmatpush1.msra.mxu0 0.0
    %2470 = vmatprep.subr.mxu0 0.0
    %2471 = vmatpush1.msra.mxu0 0.0
    %2472 = vmatprep.subr.mxu0 0.0
    %2473 = vmatpush1.msra.mxu0 0.0
    %2474 = vmatprep.subr.mxu0 0.0
    %2475 = vmatpush1.msra.mxu0 0.0
    %2476 = vmatprep.subr.mxu0 0.0
    %2477 = vmatpush1.msra.mxu0 0.0
    %2478 = vmatprep.subr.mxu0 0.0
    %2479 = vmatpush1.msra.mxu0 0.0
    %2480 = vmatprep.subr.mxu0 0.0
    %2481 = vmatpush1.msra.mxu0 0.0
    %2482 = vmatprep.subr.mxu0 0.0
    %2483 = vmatpush1.msra.mxu0 0.0
    %2484 = vmatprep.subr.mxu0 0.0
    %2485 = vmatpush1.msra.mxu0 0.0
    %2486 = vmatprep.subr.mxu0 0.0
    %2487 = vmatpush1.msra.mxu0 0.0
    %2488 = vmatprep.subr.mxu0 0.0
    %2489 = vmatpush1.msra.mxu0 0.0
    %2490 = vmatprep.subr.mxu0 0.0
    %2491 = vmatpush1.msra.mxu0 0.0
    %2492 = vmatprep.subr.mxu0 0.0
    %2493 = vmatpush1.msra.mxu0 0.0
    %2494 = vmatprep.mubr.f32.mxu0 0.0
    %2495 = vmatmul.mubr.f32.gmra.mrb[0].mxu0 %v1847
    %v2496 = vpop.f32.mrb[0].mxu0
    %v2497 = vadd.f32 0.0, %v2496
    %v2498 = vpop.f32.mrb[0].mxu0
    %2499 = vmatprep.mubr.f32.mxu0 0.0
    %2500 = vmatmul.mubr.f32.gmra.mrb[0].mxu0 %v1849
    %v2501 = vpop.f32.mrb[0].mxu0
    %v2502 = vadd.f32 0.0, %v2501
    %v2503 = vpop.f32.mrb[0].mxu0
    %2504 = vdwg.mxu0
    %v2505 = vadd.f32 %v2428, %v2497
    %v2506 = vadd.f32 %v2429, %v2502
    %2507 = vmatprep.subr.mxu0 0.0
    %2508 = vmatpush1.msra.mxu0 %v1073
    %2509 = vmatprep.subr.mxu0 0.0
    %2510 = vmatpush1.msra.mxu0 0.0
    %2511 = vmatprep.subr.mxu0 0.0
    %2512 = vmatpush1.msra.mxu0 0.0
    %2513 = vmatprep.subr.mxu0 0.0
    %2514 = vmatpush1.msra.mxu0 0.0
    %2515 = vmatprep.subr.mxu0 0.0
    %2516 = vmatpush1.msra.mxu0 0.0
    %2517 = vmatprep.subr.mxu0 0.0
    %2518 = vmatpush1.msra.mxu0 0.0
    %2519 = vmatprep.subr.mxu0 0.0
    %2520 = vmatpush1.msra.mxu0 0.0
    %2521 = vmatprep.subr.mxu0 0.0
    %2522 = vmatpush1.msra.mxu0 0.0
    %2523 = vmatprep.subr.mxu0 0.0
    %2524 = vmatpush1.msra.mxu0 0.0
    %2525 = vmatprep.subr.mxu0 0.0
    %2526 = vmatpush1.msra.mxu0 0.0
    %2527 = vmatprep.subr.mxu0 0.0
    %2528 = vmatpush1.msra.mxu0 0.0
    %2529 = vmatprep.subr.mxu0 0.0
    %2530 = vmatpush1.msra.mxu0 0.0
    %2531 = vmatprep.subr.mxu0 0.0
    %2532 = vmatpush1.msra.mxu0 0.0
    %2533 = vmatprep.subr.mxu0 0.0
    %2534 = vmatpush1.msra.mxu0 0.0
    %2535 = vmatprep.subr.mxu0 0.0
    %2536 = vmatpush1.msra.mxu0 0.0
    %2537 = vmatprep.subr.mxu0 0.0
    %2538 = vmatpush1.msra.mxu0 0.0
    %2539 = vmatprep.subr.mxu0 0.0
    %2540 = vmatpush1.msra.mxu0 0.0
    %2541 = vmatprep.subr.mxu0 0.0
    %2542 = vmatpush1.msra.mxu0 0.0
    %2543 = vmatprep.subr.mxu0 0.0
    %2544 = vmatpush1.msra.mxu0 0.0
    %2545 = vmatprep.subr.mxu0 0.0
    %2546 = vmatpush1.msra.mxu0 0.0
    %2547 = vmatprep.subr.mxu0 0.0
    %2548 = vmatpush1.msra.mxu0 0.0
    %2549 = vmatprep.subr.mxu0 0.0
    %2550 = vmatpush1.msra.mxu0 0.0
    %2551 = vmatprep.subr.mxu0 0.0
    %2552 = vmatpush1.msra.mxu0 0.0
    %2553 = vmatprep.subr.mxu0 0.0
    %2554 = vmatpush1.msra.mxu0 0.0
    %2555 = vmatprep.subr.mxu0 0.0
    %2556 = vmatpush1.msra.mxu0 0.0
    %2557 = vmatprep.subr.mxu0 0.0
    %2558 = vmatpush1.msra.mxu0 0.0
    %2559 = vmatprep.subr.mxu0 0.0
    %2560 = vmatpush1.msra.mxu0 0.0
    %2561 = vmatprep.subr.mxu0 0.0
    %2562 = vmatpush1.msra.mxu0 0.0
    %2563 = vmatprep.subr.mxu0 0.0
    %2564 = vmatpush1.msra.mxu0 0.0
    %2565 = vmatprep.subr.mxu0 0.0
    %2566 = vmatpush1.msra.mxu0 0.0
    %2567 = vmatprep.subr.mxu0 0.0
    %2568 = vmatpush1.msra.mxu0 0.0
    %2569 = vmatprep.subr.mxu0 0.0
    %2570 = vmatpush1.msra.mxu0 0.0
    %2571 = vmatprep.mubr.f32.mxu0 0.0
    %2572 = vmatmul.mubr.f32.gmra.mrb[0].mxu0 %v1342
    %v2573 = vpop.f32.mrb[0].mxu0
    %v2574 = vadd.f32 0.0, %v2573
    %v2575 = vpop.f32.mrb[0].mxu0
    %2576 = vmatprep.mubr.f32.mxu0 0.0
    %2577 = vmatmul.mubr.f32.gmra.mrb[0].mxu0 %v1344
    %v2578 = vpop.f32.mrb[0].mxu0
    %v2579 = vadd.f32 0.0, %v2578
    %v2580 = vpop.f32.mrb[0].mxu0
    %2581 = vdwg.mxu0
    %v2582 = vadd.f32 %v2505, %v2574
    %v2583 = vadd.f32 %v2506, %v2579
    %2584 = vmatprep.subr.mxu0 0.0
    %2585 = vmatpush1.msra.mxu0 %v1578
    %2586 = vmatprep.subr.mxu0 0.0
    %2587 = vmatpush1.msra.mxu0 0.0
    %2588 = vmatprep.subr.mxu0 0.0
    %2589 = vmatpush1.msra.mxu0 0.0
    %2590 = vmatprep.subr.mxu0 0.0
    %2591 = vmatpush1.msra.mxu0 0.0
    %2592 = vmatprep.subr.mxu0 0.0
    %2593 = vmatpush1.msra.mxu0 0.0
    %2594 = vmatprep.subr.mxu0 0.0
    %2595 = vmatpush1.msra.mxu0 0.0
    %2596 = vmatprep.subr.mxu0 0.0
    %2597 = vmatpush1.msra.mxu0 0.0
    %2598 = vmatprep.subr.mxu0 0.0
    %2599 = vmatpush1.msra.mxu0 0.0
    %2600 = vmatprep.subr.mxu0 0.0
    %2601 = vmatpush1.msra.mxu0 0.0
    %2602 = vmatprep.subr.mxu0 0.0
    %2603 = vmatpush1.msra.mxu0 0.0
    %2604 = vmatprep.subr.mxu0 0.0
    %2605 = vmatpush1.msra.mxu0 0.0
    %2606 = vmatprep.subr.mxu0 0.0
    %2607 = vmatpush1.msra.mxu0 0.0
    %2608 = vmatprep.subr.mxu0 0.0
    %2609 = vmatpush1.msra.mxu0 0.0
    %2610 = vmatprep.subr.mxu0 0.0
    %2611 = vmatpush1.msra.mxu0 0.0
    %2612 = vmatprep.subr.mxu0 0.0
    %2613 = vmatpush1.msra.mxu0 0.0
    %2614 = vmatprep.subr.mxu0 0.0
    %2615 = vmatpush1.msra.mxu0 0.0
    %2616 = vmatprep.subr.mxu0 0.0
    %2617 = vmatpush1.msra.mxu0 0.0
    %2618 = vmatprep.subr.mxu0 0.0
    %2619 = vmatpush1.msra.mxu0 0.0
    %2620 = vmatprep.subr.mxu0 0.0
    %2621 = vmatpush1.msra.mxu0 0.0
    %2622 = vmatprep.subr.mxu0 0.0
    %2623 = vmatpush1.msra.mxu0 0.0
    %2624 = vmatprep.subr.mxu0 0.0
    %2625 = vmatpush1.msra.mxu0 0.0
    %2626 = vmatprep.subr.mxu0 0.0
    %2627 = vmatpush1.msra.mxu0 0.0
    %2628 = vmatprep.subr.mxu0 0.0
    %2629 = vmatpush1.msra.mxu0 0.0
    %2630 = vmatprep.subr.mxu0 0.0
    %2631 = vmatpush1.msra.mxu0 0.0
    %2632 = vmatprep.subr.mxu0 0.0
    %2633 = vmatpush1.msra.mxu0 0.0
    %2634 = vmatprep.subr.mxu0 0.0
    %2635 = vmatpush1.msra.mxu0 0.0
    %2636 = vmatprep.subr.mxu0 0.0
    %2637 = vmatpush1.msra.mxu0 0.0
    %2638 = vmatprep.subr.mxu0 0.0
    %2639 = vmatpush1.msra.mxu0 0.0
    %2640 = vmatprep.subr.mxu0 0.0
    %2641 = vmatpush1.msra.mxu0 0.0
    %2642 = vmatprep.subr.mxu0 0.0
    %2643 = vmatpush1.msra.mxu0 0.0
    %2644 = vmatprep.subr.mxu0 0.0
    %2645 = vmatpush1.msra.mxu0 0.0
    %2646 = vmatprep.subr.mxu0 0.0
    %2647 = vmatpush1.msra.mxu0 0.0
    %2648 = vmatprep.mubr.f32.mxu0 0.0
    %2649 = vmatmul.mubr.f32.gmra.mrb[0].mxu0 %v914
    %v2650 = vpop.f32.mrb[0].mxu0
    %v2651 = vadd.f32 0.0, %v2650
    %v2652 = vpop.f32.mrb[0].mxu0
    %2653 = vmatprep.mubr.f32.mxu0 0.0
    %2654 = vmatmul.mubr.f32.gmra.mrb[0].mxu0 %v916
    %v2655 = vpop.f32.mrb[0].mxu0
    %v2656 = vadd.f32 0.0, %v2655
    %v2657 = vpop.f32.mrb[0].mxu0
    %2658 = vdwg.mxu0
    %v2659 = vadd.f32 %v2582, %v2651
    %v2660 = vadd.f32 %v2583, %v2656
    %vm2661 = vcmp.gt.f32.partialorder %v2659, 0.0
    %vm2662 = vcmp.gt.f32.partialorder %v2660, 0.0
    %v2663 = vmul.f32 %v103, %v2659
    %v2664 = vmul.f32 %v103, %v2660
    %v2665 = vsel %vm2661, %v2659, %v2663
    %v2666 = vsel %vm2662, %v2660, %v2664
    %v2668 = vsel %vm108, %v2665, 0
    %v2671 = vsel %vm108, %v2666, 0
    %2673 = vmatprep.subr.mxu0 0.0
    %2674 = vmatpush1.msra.mxu0 %v70
    %2675 = vmatprep.subr.mxu0 0.0
    %2676 = vmatpush1.msra.mxu0 %v71
    %2677 = vmatprep.subr.mxu0 0.0
    %2678 = vmatpush1.msra.mxu0 %v72
    %2679 = vmatprep.subr.mxu0 0.0
    %2680 = vmatpush1.msra.mxu0 %v73
    %2681 = vmatprep.subr.mxu0 0.0
    %2682 = vmatpush1.msra.mxu0 0.0
    %2683 = vmatprep.subr.mxu0 0.0
    %2684 = vmatpush1.msra.mxu0 0.0
    %2685 = vmatprep.subr.mxu0 0.0
    %2686 = vmatpush1.msra.mxu0 0.0
    %2687 = vmatprep.subr.mxu0 0.0
    %2688 = vmatpush1.msra.mxu0 0.0
    %2689 = vmatprep.subr.mxu0 0.0
    %2690 = vmatpush1.msra.mxu0 0.0
    %2691 = vmatprep.subr.mxu0 0.0
    %2692 = vmatpush1.msra.mxu0 0.0
    %2693 = vmatprep.subr.mxu0 0.0
    %2694 = vmatpush1.msra.mxu0 0.0
    %2695 = vmatprep.subr.mxu0 0.0
    %2696 = vmatpush1.msra.mxu0 0.0
    %2697 = vmatprep.subr.mxu0 0.0
    %2698 = vmatpush1.msra.mxu0 0.0
    %2699 = vmatprep.subr.mxu0 0.0
    %2700 = vmatpush1.msra.mxu0 0.0
    %2701 = vmatprep.subr.mxu0 0.0
    %2702 = vmatpush1.msra.mxu0 0.0
    %2703 = vmatprep.subr.mxu0 0.0
    %2704 = vmatpush1.msra.mxu0 0.0
    %2705 = vmatprep.subr.mxu0 0.0
    %2706 = vmatpush1.msra.mxu0 0.0
    %2707 = vmatprep.subr.mxu0 0.0
    %2708 = vmatpush1.msra.mxu0 0.0
    %2709 = vmatprep.subr.mxu0 0.0
    %2710 = vmatpush1.msra.mxu0 0.0
    %2711 = vmatprep.subr.mxu0 0.0
    %2712 = vmatpush1.msra.mxu0 0.0
    %2713 = vmatprep.subr.mxu0 0.0
    %2714 = vmatpush1.msra.mxu0 0.0
    %2715 = vmatprep.subr.mxu0 0.0
    %2716 = vmatpush1.msra.mxu0 0.0
    %2717 = vmatprep.subr.mxu0 0.0
    %2718 = vmatpush1.msra.mxu0 0.0
    %2719 = vmatprep.subr.mxu0 0.0
    %2720 = vmatpush1.msra.mxu0 0.0
    %2721 = vmatprep.subr.mxu0 0.0
    %2722 = vmatpush1.msra.mxu0 0.0
    %2723 = vmatprep.subr.mxu0 0.0
    %2724 = vmatpush1.msra.mxu0 0.0
    %2725 = vmatprep.subr.mxu0 0.0
    %2726 = vmatpush1.msra.mxu0 0.0
    %2727 = vmatprep.subr.mxu0 0.0
    %2728 = vmatpush1.msra.mxu0 0.0
    %2729 = vmatprep.subr.mxu0 0.0
    %2730 = vmatpush1.msra.mxu0 0.0
    %2731 = vmatprep.subr.mxu0 0.0
    %2732 = vmatpush1.msra.mxu0 0.0
    %2733 = vmatprep.subr.mxu0 0.0
    %2734 = vmatpush1.msra.mxu0 0.0
    %2735 = vmatprep.subr.mxu0 0.0
    %2736 = vmatpush1.msra.mxu0 0.0
    %2737 = vmatprep.mubr.f32.mxu0 0.0
    %2738 = vmatmul.mubr.f32.gmra.mrb[0].mxu0 %v2668
    %v2739 = vpop.f32.mrb[0].mxu0
    %v2740 = vadd.f32 %v79, %v2739
    %v2741 = vpop.f32.mrb[0].mxu0
    %2742 = vmatprep.mubr.f32.mxu0 0.0
    %2743 = vmatmul.mubr.f32.gmra.mrb[0].mxu0 %v2671
    %v2744 = vpop.f32.mrb[0].mxu0
    %v2745 = vadd.f32 %v79, %v2744
    %v2746 = vpop.f32.mrb[0].mxu0
    %2747 = vdwg.mxu0
    %vm2748 = vcmp.gt.f32.partialorder %v2740, 0.0
    %vm2749 = vcmp.gt.f32.partialorder %v2745, 0.0
    %v2750 = vmul.f32 %v192, %v2740
    %v2751 = vmul.f32 %v192, %v2745
    %v2752 = vsel %vm2748, %v2740, %v2750
    %v2753 = vsel %vm2749, %v2745, %v2751
    %v2754 = vadd.f32 %v2665, %v2752
    %v2755 = vadd.f32 %v2666, %v2753
    %v2757 = vsel %vm108, %v2754, 0
    %v2760 = vsel %vm108, %v2755, 0
    %2762 = vmatprep.subr.mxu0 0.0
    %2763 = vmatpush1.msra.mxu0 %v81
    %2764 = vmatprep.subr.mxu0 0.0
    %2765 = vmatpush1.msra.mxu0 %v82
    %2766 = vmatprep.subr.mxu0 0.0
    %2767 = vmatpush1.msra.mxu0 %v83
    %2768 = vmatprep.subr.mxu0 0.0
    %2769 = vmatpush1.msra.mxu0 %v84
    %2770 = vmatprep.subr.mxu0 0.0
    %2771 = vmatpush1.msra.mxu0 0.0
    %2772 = vmatprep.subr.mxu0 0.0
    %2773 = vmatpush1.msra.mxu0 0.0
    %2774 = vmatprep.subr.mxu0 0.0
    %2775 = vmatpush1.msra.mxu0 0.0
    %2776 = vmatprep.subr.mxu0 0.0
    %2777 = vmatpush1.msra.mxu0 0.0
    %2778 = vmatprep.subr.mxu0 0.0
    %2779 = vmatpush1.msra.mxu0 0.0
    %2780 = vmatprep.subr.mxu0 0.0
    %2781 = vmatpush1.msra.mxu0 0.0
    %2782 = vmatprep.subr.mxu0 0.0
    %2783 = vmatpush1.msra.mxu0 0.0
    %2784 = vmatprep.subr.mxu0 0.0
    %2785 = vmatpush1.msra.mxu0 0.0
    %2786 = vmatprep.subr.mxu0 0.0
    %2787 = vmatpush1.msra.mxu0 0.0
    %2788 = vmatprep.subr.mxu0 0.0
    %2789 = vmatpush1.msra.mxu0 0.0
    %2790 = vmatprep.subr.mxu0 0.0
    %2791 = vmatpush1.msra.mxu0 0.0
    %2792 = vmatprep.subr.mxu0 0.0
    %2793 = vmatpush1.msra.mxu0 0.0
    %2794 = vmatprep.subr.mxu0 0.0
    %2795 = vmatpush1.msra.mxu0 0.0
    %2796 = vmatprep.subr.mxu0 0.0
    %2797 = vmatpush1.msra.mxu0 0.0
    %2798 = vmatprep.subr.mxu0 0.0
    %2799 = vmatpush1.msra.mxu0 0.0
    %2800 = vmatprep.subr.mxu0 0.0
    %2801 = vmatpush1.msra.mxu0 0.0
    %2802 = vmatprep.subr.mxu0 0.0
    %2803 = vmatpush1.msra.mxu0 0.0
    %2804 = vmatprep.subr.mxu0 0.0
    %2805 = vmatpush1.msra.mxu0 0.0
    %2806 = vmatprep.subr.mxu0 0.0
    %2807 = vmatpush1.msra.mxu0 0.0
    %2808 = vmatprep.subr.mxu0 0.0
    %2809 = vmatpush1.msra.mxu0 0.0
    %2810 = vmatprep.subr.mxu0 0.0
    %2811 = vmatpush1.msra.mxu0 0.0
    %2812 = vmatprep.subr.mxu0 0.0
    %2813 = vmatpush1.msra.mxu0 0.0
    %2814 = vmatprep.subr.mxu0 0.0
    %2815 = vmatpush1.msra.mxu0 0.0
    %2816 = vmatprep.subr.mxu0 0.0
    %2817 = vmatpush1.msra.mxu0 0.0
    %2818 = vmatprep.subr.mxu0 0.0
    %2819 = vmatpush1.msra.mxu0 0.0
    %2820 = vmatprep.subr.mxu0 0.0
    %2821 = vmatpush1.msra.mxu0 0.0
    %2822 = vmatprep.subr.mxu0 0.0
    %2823 = vmatpush1.msra.mxu0 0.0
    %2824 = vmatprep.subr.mxu0 0.0
    %2825 = vmatpush1.msra.mxu0 0.0
    %2826 = vmatprep.mubr.f32.mxu0 0.0
    %2827 = vmatmul.mubr.f32.gmra.mrb[0].mxu0 %v2757
    %v2828 = vpop.f32.mrb[0].mxu0
    %v2829 = vadd.f32 %v90, %v2828
    %v2830 = vpop.f32.mrb[0].mxu0
    %2831 = vmatprep.mubr.f32.mxu0 0.0
    %2832 = vmatmul.mubr.f32.gmra.mrb[0].mxu0 %v2760
    %v2833 = vpop.f32.mrb[0].mxu0
    %v2834 = vadd.f32 %v90, %v2833
    %v2835 = vpop.f32.mrb[0].mxu0
    %2836 = vdwg.mxu0
    %2839 = vrot.lane.b32.xlu0 %v2829, 24
    %v2840 = vpop.permute.xlu0 %2839
    %2841 = vrot.lane.b32.xlu0 %v2834, 24
    %v2842 = vpop.permute.xlu0 %2841
    %vm2845 = vcmask 228544
    %2846 = vst.msk [vmem:[#allocation9] sm:$0xff] %vm2845, %v2840
    %2847 = vst.msk [vmem:[#allocation9 + $0x8] sm:$0xff] %vm2845, %v2842
    %s2848 = scalar_lea.vmem [#allocation2], 112
    %v2849 = vld [vmem:[%s2848] sm:$0xff]
    %v2850 = vld [vmem:[%s2848 + $0x8] sm:$0xff]
    %v2851 = vsel %vm280, %v2829, 0
    %v2853 = vsel %vm280, %v2834, 0
    %2855 = vmatprep.subr.mxu0 0.0
    %2856 = vmatpush1.msra.mxu0 %v294
    %2857 = vmatprep.subr.mxu0 0.0
    %2858 = vmatpush1.msra.mxu0 0.0
    %2859 = vmatprep.subr.mxu0 0.0
    %2860 = vmatpush1.msra.mxu0 0.0
    %2861 = vmatprep.subr.mxu0 0.0
    %2862 = vmatpush1.msra.mxu0 0.0
    %2863 = vmatprep.subr.mxu0 0.0
    %2864 = vmatpush1.msra.mxu0 0.0
    %2865 = vmatprep.subr.mxu0 0.0
    %2866 = vmatpush1.msra.mxu0 0.0
    %2867 = vmatprep.subr.mxu0 0.0
    %2868 = vmatpush1.msra.mxu0 0.0
    %2869 = vmatprep.subr.mxu0 0.0
    %2870 = vmatpush1.msra.mxu0 0.0
    %2871 = vmatprep.subr.mxu0 0.0
    %2872 = vmatpush1.msra.mxu0 0.0
    %2873 = vmatprep.subr.mxu0 0.0
    %2874 = vmatpush1.msra.mxu0 0.0
    %2875 = vmatprep.subr.mxu0 0.0
    %2876 = vmatpush1.msra.mxu0 0.0
    %2877 = vmatprep.subr.mxu0 0.0
    %2878 = vmatpush1.msra.mxu0 0.0
    %2879 = vmatprep.subr.mxu0 0.0
    %2880 = vmatpush1.msra.mxu0 0.0
    %2881 = vmatprep.subr.mxu0 0.0
    %2882 = vmatpush1.msra.mxu0 0.0
    %2883 = vmatprep.subr.mxu0 0.0
    %2884 = vmatpush1.msra.mxu0 0.0
    %2885 = vmatprep.subr.mxu0 0.0
    %2886 = vmatpush1.msra.mxu0 0.0
    %2887 = vmatprep.subr.mxu0 0.0
    %2888 = vmatpush1.msra.mxu0 0.0
    %2889 = vmatprep.subr.mxu0 0.0
    %2890 = vmatpush1.msra.mxu0 0.0
    %2891 = vmatprep.subr.mxu0 0.0
    %2892 = vmatpush1.msra.mxu0 0.0
    %2893 = vmatprep.subr.mxu0 0.0
    %2894 = vmatpush1.msra.mxu0 0.0
    %2895 = vmatprep.subr.mxu0 0.0
    %2896 = vmatpush1.msra.mxu0 0.0
    %2897 = vmatprep.subr.mxu0 0.0
    %2898 = vmatpush1.msra.mxu0 0.0
    %2899 = vmatprep.subr.mxu0 0.0
    %2900 = vmatpush1.msra.mxu0 0.0
    %2901 = vmatprep.subr.mxu0 0.0
    %2902 = vmatpush1.msra.mxu0 0.0
    %2903 = vmatprep.subr.mxu0 0.0
    %2904 = vmatpush1.msra.mxu0 0.0
    %2905 = vmatprep.subr.mxu0 0.0
    %2906 = vmatpush1.msra.mxu0 0.0
    %2907 = vmatprep.subr.mxu0 0.0
    %2908 = vmatpush1.msra.mxu0 0.0
    %2909 = vmatprep.subr.mxu0 0.0
    %2910 = vmatpush1.msra.mxu0 0.0
    %2911 = vmatprep.subr.mxu0 0.0
    %2912 = vmatpush1.msra.mxu0 0.0
    %2913 = vmatprep.subr.mxu0 0.0
    %2914 = vmatpush1.msra.mxu0 0.0
    %2915 = vmatprep.subr.mxu0 0.0
    %2916 = vmatpush1.msra.mxu0 0.0
    %2917 = vmatprep.subr.mxu0 0.0
    %2918 = vmatpush1.msra.mxu0 0.0
    %2919 = vmatprep.mubr.f32.mxu0 0.0
    %2920 = vmatmul.mubr.f32.gmra.mrb[0].mxu0 %v2851
    %v2921 = vpop.f32.mrb[0].mxu0
    %v2922 = vadd.f32 0.0, %v2921
    %v2923 = vpop.f32.mrb[0].mxu0
    %2924 = vmatprep.mubr.f32.mxu0 0.0
    %2925 = vmatmul.mubr.f32.gmra.mrb[0].mxu0 %v2853
    %v2926 = vpop.f32.mrb[0].mxu0
    %v2927 = vadd.f32 0.0, %v2926
    %v2928 = vpop.f32.mrb[0].mxu0
    %2929 = vdwg.mxu0
    %v2930 = vadd.f32 %v2849, %v2922
    %v2931 = vadd.f32 %v2850, %v2927
    %2932 = vmatprep.subr.mxu0 0.0
    %2933 = vmatpush1.msra.mxu0 %v645
    %2934 = vmatprep.subr.mxu0 0.0
    %2935 = vmatpush1.msra.mxu0 0.0
    %2936 = vmatprep.subr.mxu0 0.0
    %2937 = vmatpush1.msra.mxu0 0.0
    %2938 = vmatprep.subr.mxu0 0.0
    %2939 = vmatpush1.msra.mxu0 0.0
    %2940 = vmatprep.subr.mxu0 0.0
    %2941 = vmatpush1.msra.mxu0 0.0
    %2942 = vmatprep.subr.mxu0 0.0
    %2943 = vmatpush1.msra.mxu0 0.0
    %2944 = vmatprep.subr.mxu0 0.0
    %2945 = vmatpush1.msra.mxu0 0.0
    %2946 = vmatprep.subr.mxu0 0.0
    %2947 = vmatpush1.msra.mxu0 0.0
    %2948 = vmatprep.subr.mxu0 0.0
    %2949 = vmatpush1.msra.mxu0 0.0
    %2950 = vmatprep.subr.mxu0 0.0
    %2951 = vmatpush1.msra.mxu0 0.0
    %2952 = vmatprep.subr.mxu0 0.0
    %2953 = vmatpush1.msra.mxu0 0.0
    %2954 = vmatprep.subr.mxu0 0.0
    %2955 = vmatpush1.msra.mxu0 0.0
    %2956 = vmatprep.subr.mxu0 0.0
    %2957 = vmatpush1.msra.mxu0 0.0
    %2958 = vmatprep.subr.mxu0 0.0
    %2959 = vmatpush1.msra.mxu0 0.0
    %2960 = vmatprep.subr.mxu0 0.0
    %2961 = vmatpush1.msra.mxu0 0.0
    %2962 = vmatprep.subr.mxu0 0.0
    %2963 = vmatpush1.msra.mxu0 0.0
    %2964 = vmatprep.subr.mxu0 0.0
    %2965 = vmatpush1.msra.mxu0 0.0
    %2966 = vmatprep.subr.mxu0 0.0
    %2967 = vmatpush1.msra.mxu0 0.0
    %2968 = vmatprep.subr.mxu0 0.0
    %2969 = vmatpush1.msra.mxu0 0.0
    %2970 = vmatprep.subr.mxu0 0.0
    %2971 = vmatpush1.msra.mxu0 0.0
    %2972 = vmatprep.subr.mxu0 0.0
    %2973 = vmatpush1.msra.mxu0 0.0
    %2974 = vmatprep.subr.mxu0 0.0
    %2975 = vmatpush1.msra.mxu0 0.0
    %2976 = vmatprep.subr.mxu0 0.0
    %2977 = vmatpush1.msra.mxu0 0.0
    %2978 = vmatprep.subr.mxu0 0.0
    %2979 = vmatpush1.msra.mxu0 0.0
    %2980 = vmatprep.subr.mxu0 0.0
    %2981 = vmatpush1.msra.mxu0 0.0
    %2982 = vmatprep.subr.mxu0 0.0
    %2983 = vmatpush1.msra.mxu0 0.0
    %2984 = vmatprep.subr.mxu0 0.0
    %2985 = vmatpush1.msra.mxu0 0.0
    %2986 = vmatprep.subr.mxu0 0.0
    %2987 = vmatpush1.msra.mxu0 0.0
    %2988 = vmatprep.subr.mxu0 0.0
    %2989 = vmatpush1.msra.mxu0 0.0
    %2990 = vmatprep.subr.mxu0 0.0
    %2991 = vmatpush1.msra.mxu0 0.0
    %2992 = vmatprep.subr.mxu0 0.0
    %2993 = vmatpush1.msra.mxu0 0.0
    %2994 = vmatprep.subr.mxu0 0.0
    %2995 = vmatpush1.msra.mxu0 0.0
    %2996 = vmatprep.mubr.f32.mxu0 0.0
    %2997 = vmatmul.mubr.f32.gmra.mrb[0].mxu0 %v2349
    %v2998 = vpop.f32.mrb[0].mxu0
    %v2999 = vadd.f32 0.0, %v2998
    %v3000 = vpop.f32.mrb[0].mxu0
    %3001 = vmatprep.mubr.f32.mxu0 0.0
    %3002 = vmatmul.mubr.f32.gmra.mrb[0].mxu0 %v2351
    %v3003 = vpop.f32.mrb[0].mxu0
    %v3004 = vadd.f32 0.0, %v3003
    %v3005 = vpop.f32.mrb[0].mxu0
    %3006 = vdwg.mxu0
    %v3007 = vadd.f32 %v2930, %v2999
    %v3008 = vadd.f32 %v2931, %v3004
    %3009 = vmatprep.subr.mxu0 0.0
    %3010 = vmatpush1.msra.mxu0 %v1073
    %3011 = vmatprep.subr.mxu0 0.0
    %3012 = vmatpush1.msra.mxu0 0.0
    %3013 = vmatprep.subr.mxu0 0.0
    %3014 = vmatpush1.msra.mxu0 0.0
    %3015 = vmatprep.subr.mxu0 0.0
    %3016 = vmatpush1.msra.mxu0 0.0
    %3017 = vmatprep.subr.mxu0 0.0
    %3018 = vmatpush1.msra.mxu0 0.0
    %3019 = vmatprep.subr.mxu0 0.0
    %3020 = vmatpush1.msra.mxu0 0.0
    %3021 = vmatprep.subr.mxu0 0.0
    %3022 = vmatpush1.msra.mxu0 0.0
    %3023 = vmatprep.subr.mxu0 0.0
    %3024 = vmatpush1.msra.mxu0 0.0
    %3025 = vmatprep.subr.mxu0 0.0
    %3026 = vmatpush1.msra.mxu0 0.0
    %3027 = vmatprep.subr.mxu0 0.0
    %3028 = vmatpush1.msra.mxu0 0.0
    %3029 = vmatprep.subr.mxu0 0.0
    %3030 = vmatpush1.msra.mxu0 0.0
    %3031 = vmatprep.subr.mxu0 0.0
    %3032 = vmatpush1.msra.mxu0 0.0
    %3033 = vmatprep.subr.mxu0 0.0
    %3034 = vmatpush1.msra.mxu0 0.0
    %3035 = vmatprep.subr.mxu0 0.0
    %3036 = vmatpush1.msra.mxu0 0.0
    %3037 = vmatprep.subr.mxu0 0.0
    %3038 = vmatpush1.msra.mxu0 0.0
    %3039 = vmatprep.subr.mxu0 0.0
    %3040 = vmatpush1.msra.mxu0 0.0
    %3041 = vmatprep.subr.mxu0 0.0
    %3042 = vmatpush1.msra.mxu0 0.0
    %3043 = vmatprep.subr.mxu0 0.0
    %3044 = vmatpush1.msra.mxu0 0.0
    %3045 = vmatprep.subr.mxu0 0.0
    %3046 = vmatpush1.msra.mxu0 0.0
    %3047 = vmatprep.subr.mxu0 0.0
    %3048 = vmatpush1.msra.mxu0 0.0
    %3049 = vmatprep.subr.mxu0 0.0
    %3050 = vmatpush1.msra.mxu0 0.0
    %3051 = vmatprep.subr.mxu0 0.0
    %3052 = vmatpush1.msra.mxu0 0.0
    %3053 = vmatprep.subr.mxu0 0.0
    %3054 = vmatpush1.msra.mxu0 0.0
    %3055 = vmatprep.subr.mxu0 0.0
    %3056 = vmatpush1.msra.mxu0 0.0
    %3057 = vmatprep.subr.mxu0 0.0
    %3058 = vmatpush1.msra.mxu0 0.0
    %3059 = vmatprep.subr.mxu0 0.0
    %3060 = vmatpush1.msra.mxu0 0.0
    %3061 = vmatprep.subr.mxu0 0.0
    %3062 = vmatpush1.msra.mxu0 0.0
    %3063 = vmatprep.subr.mxu0 0.0
    %3064 = vmatpush1.msra.mxu0 0.0
    %3065 = vmatprep.subr.mxu0 0.0
    %3066 = vmatpush1.msra.mxu0 0.0
    %3067 = vmatprep.subr.mxu0 0.0
    %3068 = vmatpush1.msra.mxu0 0.0
    %3069 = vmatprep.subr.mxu0 0.0
    %3070 = vmatpush1.msra.mxu0 0.0
    %3071 = vmatprep.subr.mxu0 0.0
    %3072 = vmatpush1.msra.mxu0 0.0
    %3073 = vmatprep.mubr.f32.mxu0 0.0
    %3074 = vmatmul.mubr.f32.gmra.mrb[0].mxu0 %v1847
    %v3075 = vpop.f32.mrb[0].mxu0
    %v3076 = vadd.f32 0.0, %v3075
    %v3077 = vpop.f32.mrb[0].mxu0
    %3078 = vmatprep.mubr.f32.mxu0 0.0
    %3079 = vmatmul.mubr.f32.gmra.mrb[0].mxu0 %v1849
    %v3080 = vpop.f32.mrb[0].mxu0
    %v3081 = vadd.f32 0.0, %v3080
    %v3082 = vpop.f32.mrb[0].mxu0
    %3083 = vdwg.mxu0
    %v3084 = vadd.f32 %v3007, %v3076
    %v3085 = vadd.f32 %v3008, %v3081
    %3086 = vmatprep.subr.mxu0 0.0
    %3087 = vmatpush1.msra.mxu0 %v1578
    %3088 = vmatprep.subr.mxu0 0.0
    %3089 = vmatpush1.msra.mxu0 0.0
    %3090 = vmatprep.subr.mxu0 0.0
    %3091 = vmatpush1.msra.mxu0 0.0
    %3092 = vmatprep.subr.mxu0 0.0
    %3093 = vmatpush1.msra.mxu0 0.0
    %3094 = vmatprep.subr.mxu0 0.0
    %3095 = vmatpush1.msra.mxu0 0.0
    %3096 = vmatprep.subr.mxu0 0.0
    %3097 = vmatpush1.msra.mxu0 0.0
    %3098 = vmatprep.subr.mxu0 0.0
    %3099 = vmatpush1.msra.mxu0 0.0
    %3100 = vmatprep.subr.mxu0 0.0
    %3101 = vmatpush1.msra.mxu0 0.0
    %3102 = vmatprep.subr.mxu0 0.0
    %3103 = vmatpush1.msra.mxu0 0.0
    %3104 = vmatprep.subr.mxu0 0.0
    %3105 = vmatpush1.msra.mxu0 0.0
    %3106 = vmatprep.subr.mxu0 0.0
    %3107 = vmatpush1.msra.mxu0 0.0
    %3108 = vmatprep.subr.mxu0 0.0
    %3109 = vmatpush1.msra.mxu0 0.0
    %3110 = vmatprep.subr.mxu0 0.0
    %3111 = vmatpush1.msra.mxu0 0.0
    %3112 = vmatprep.subr.mxu0 0.0
    %3113 = vmatpush1.msra.mxu0 0.0
    %3114 = vmatprep.subr.mxu0 0.0
    %3115 = vmatpush1.msra.mxu0 0.0
    %3116 = vmatprep.subr.mxu0 0.0
    %3117 = vmatpush1.msra.mxu0 0.0
    %3118 = vmatprep.subr.mxu0 0.0
    %3119 = vmatpush1.msra.mxu0 0.0
    %3120 = vmatprep.subr.mxu0 0.0
    %3121 = vmatpush1.msra.mxu0 0.0
    %3122 = vmatprep.subr.mxu0 0.0
    %3123 = vmatpush1.msra.mxu0 0.0
    %3124 = vmatprep.subr.mxu0 0.0
    %3125 = vmatpush1.msra.mxu0 0.0
    %3126 = vmatprep.subr.mxu0 0.0
    %3127 = vmatpush1.msra.mxu0 0.0
    %3128 = vmatprep.subr.mxu0 0.0
    %3129 = vmatpush1.msra.mxu0 0.0
    %3130 = vmatprep.subr.mxu0 0.0
    %3131 = vmatpush1.msra.mxu0 0.0
    %3132 = vmatprep.subr.mxu0 0.0
    %3133 = vmatpush1.msra.mxu0 0.0
    %3134 = vmatprep.subr.mxu0 0.0
    %3135 = vmatpush1.msra.mxu0 0.0
    %3136 = vmatprep.subr.mxu0 0.0
    %3137 = vmatpush1.msra.mxu0 0.0
    %3138 = vmatprep.subr.mxu0 0.0
    %3139 = vmatpush1.msra.mxu0 0.0
    %3140 = vmatprep.subr.mxu0 0.0
    %3141 = vmatpush1.msra.mxu0 0.0
    %3142 = vmatprep.subr.mxu0 0.0
    %3143 = vmatpush1.msra.mxu0 0.0
    %3144 = vmatprep.subr.mxu0 0.0
    %3145 = vmatpush1.msra.mxu0 0.0
    %3146 = vmatprep.subr.mxu0 0.0
    %3147 = vmatpush1.msra.mxu0 0.0
    %3148 = vmatprep.subr.mxu0 0.0
    %3149 = vmatpush1.msra.mxu0 0.0
    %3150 = vmatprep.mubr.f32.mxu0 0.0
    %3151 = vmatmul.mubr.f32.gmra.mrb[0].mxu0 %v1342
    %v3152 = vpop.f32.mrb[0].mxu0
    %v3153 = vadd.f32 0.0, %v3152
    %v3154 = vpop.f32.mrb[0].mxu0
    %3155 = vmatprep.mubr.f32.mxu0 0.0
    %3156 = vmatmul.mubr.f32.gmra.mrb[0].mxu0 %v1344
    %v3157 = vpop.f32.mrb[0].mxu0
    %v3158 = vadd.f32 0.0, %v3157
    %v3159 = vpop.f32.mrb[0].mxu0
    %3160 = vdwg.mxu0
    %v3161 = vadd.f32 %v3084, %v3153
    %v3162 = vadd.f32 %v3085, %v3158
    %vm3163 = vcmp.gt.f32.partialorder %v3161, 0.0
    %vm3164 = vcmp.gt.f32.partialorder %v3162, 0.0
    %v3165 = vmul.f32 %v103, %v3161
    %v3166 = vmul.f32 %v103, %v3162
    %v3167 = vsel %vm3163, %v3161, %v3165
    %v3168 = vsel %vm3164, %v3162, %v3166
    %v3170 = vsel %vm108, %v3167, 0
    %v3173 = vsel %vm108, %v3168, 0
    %3175 = vmatprep.subr.mxu0 0.0
    %3176 = vmatpush1.msra.mxu0 %v70
    %3177 = vmatprep.subr.mxu0 0.0
    %3178 = vmatpush1.msra.mxu0 %v71
    %3179 = vmatprep.subr.mxu0 0.0
    %3180 = vmatpush1.msra.mxu0 %v72
    %3181 = vmatprep.subr.mxu0 0.0
    %3182 = vmatpush1.msra.mxu0 %v73
    %3183 = vmatprep.subr.mxu0 0.0
    %3184 = vmatpush1.msra.mxu0 0.0
    %3185 = vmatprep.subr.mxu0 0.0
    %3186 = vmatpush1.msra.mxu0 0.0
    %3187 = vmatprep.subr.mxu0 0.0
    %3188 = vmatpush1.msra.mxu0 0.0
    %3189 = vmatprep.subr.mxu0 0.0
    %3190 = vmatpush1.msra.mxu0 0.0
    %3191 = vmatprep.subr.mxu0 0.0
    %3192 = vmatpush1.msra.mxu0 0.0
    %3193 = vmatprep.subr.mxu0 0.0
    %3194 = vmatpush1.msra.mxu0 0.0
    %3195 = vmatprep.subr.mxu0 0.0
    %3196 = vmatpush1.msra.mxu0 0.0
    %3197 = vmatprep.subr.mxu0 0.0
    %3198 = vmatpush1.msra.mxu0 0.0
    %3199 = vmatprep.subr.mxu0 0.0
    %3200 = vmatpush1.msra.mxu0 0.0
    %3201 = vmatprep.subr.mxu0 0.0
    %3202 = vmatpush1.msra.mxu0 0.0
    %3203 = vmatprep.subr.mxu0 0.0
    %3204 = vmatpush1.msra.mxu0 0.0
    %3205 = vmatprep.subr.mxu0 0.0
    %3206 = vmatpush1.msra.mxu0 0.0
    %3207 = vmatprep.subr.mxu0 0.0
    %3208 = vmatpush1.msra.mxu0 0.0
    %3209 = vmatprep.subr.mxu0 0.0
    %3210 = vmatpush1.msra.mxu0 0.0
    %3211 = vmatprep.subr.mxu0 0.0
    %3212 = vmatpush1.msra.mxu0 0.0
    %3213 = vmatprep.subr.mxu0 0.0
    %3214 = vmatpush1.msra.mxu0 0.0
    %3215 = vmatprep.subr.mxu0 0.0
    %3216 = vmatpush1.msra.mxu0 0.0
    %3217 = vmatprep.subr.mxu0 0.0
    %3218 = vmatpush1.msra.mxu0 0.0
    %3219 = vmatprep.subr.mxu0 0.0
    %3220 = vmatpush1.msra.mxu0 0.0
    %3221 = vmatprep.subr.mxu0 0.0
    %3222 = vmatpush1.msra.mxu0 0.0
    %3223 = vmatprep.subr.mxu0 0.0
    %3224 = vmatpush1.msra.mxu0 0.0
    %3225 = vmatprep.subr.mxu0 0.0
    %3226 = vmatpush1.msra.mxu0 0.0
    %3227 = vmatprep.subr.mxu0 0.0
    %3228 = vmatpush1.msra.mxu0 0.0
    %3229 = vmatprep.subr.mxu0 0.0
    %3230 = vmatpush1.msra.mxu0 0.0
    %3231 = vmatprep.subr.mxu0 0.0
    %3232 = vmatpush1.msra.mxu0 0.0
    %3233 = vmatprep.subr.mxu0 0.0
    %3234 = vmatpush1.msra.mxu0 0.0
    %3235 = vmatprep.subr.mxu0 0.0
    %3236 = vmatpush1.msra.mxu0 0.0
    %3237 = vmatprep.subr.mxu0 0.0
    %3238 = vmatpush1.msra.mxu0 0.0
    %3239 = vmatprep.mubr.f32.mxu0 0.0
    %3240 = vmatmul.mubr.f32.gmra.mrb[0].mxu0 %v3170
    %v3241 = vpop.f32.mrb[0].mxu0
    %v3242 = vadd.f32 %v79, %v3241
    %v3243 = vpop.f32.mrb[0].mxu0
    %3244 = vmatprep.mubr.f32.mxu0 0.0
    %3245 = vmatmul.mubr.f32.gmra.mrb[0].mxu0 %v3173
    %v3246 = vpop.f32.mrb[0].mxu0
    %v3247 = vadd.f32 %v79, %v3246
    %v3248 = vpop.f32.mrb[0].mxu0
    %3249 = vdwg.mxu0
    %vm3250 = vcmp.gt.f32.partialorder %v3242, 0.0
    %vm3251 = vcmp.gt.f32.partialorder %v3247, 0.0
    %v3252 = vmul.f32 %v192, %v3242
    %v3253 = vmul.f32 %v192, %v3247
    %v3254 = vsel %vm3250, %v3242, %v3252
    %v3255 = vsel %vm3251, %v3247, %v3253
    %v3256 = vadd.f32 %v3167, %v3254
    %v3257 = vadd.f32 %v3168, %v3255
    %v3259 = vsel %vm108, %v3256, 0
    %v3262 = vsel %vm108, %v3257, 0
    %3264 = vmatprep.subr.mxu0 0.0
    %3265 = vmatpush1.msra.mxu0 %v81
    %3266 = vmatprep.subr.mxu0 0.0
    %3267 = vmatpush1.msra.mxu0 %v82
    %3268 = vmatprep.subr.mxu0 0.0
    %3269 = vmatpush1.msra.mxu0 %v83
    %3270 = vmatprep.subr.mxu0 0.0
    %3271 = vmatpush1.msra.mxu0 %v84
    %3272 = vmatprep.subr.mxu0 0.0
    %3273 = vmatpush1.msra.mxu0 0.0
    %3274 = vmatprep.subr.mxu0 0.0
    %3275 = vmatpush1.msra.mxu0 0.0
    %3276 = vmatprep.subr.mxu0 0.0
    %3277 = vmatpush1.msra.mxu0 0.0
    %3278 = vmatprep.subr.mxu0 0.0
    %3279 = vmatpush1.msra.mxu0 0.0
    %3280 = vmatprep.subr.mxu0 0.0
    %3281 = vmatpush1.msra.mxu0 0.0
    %3282 = vmatprep.subr.mxu0 0.0
    %3283 = vmatpush1.msra.mxu0 0.0
    %3284 = vmatprep.subr.mxu0 0.0
    %3285 = vmatpush1.msra.mxu0 0.0
    %3286 = vmatprep.subr.mxu0 0.0
    %3287 = vmatpush1.msra.mxu0 0.0
    %3288 = vmatprep.subr.mxu0 0.0
    %3289 = vmatpush1.msra.mxu0 0.0
    %3290 = vmatprep.subr.mxu0 0.0
    %3291 = vmatpush1.msra.mxu0 0.0
    %3292 = vmatprep.subr.mxu0 0.0
    %3293 = vmatpush1.msra.mxu0 0.0
    %3294 = vmatprep.subr.mxu0 0.0
    %3295 = vmatpush1.msra.mxu0 0.0
    %3296 = vmatprep.subr.mxu0 0.0
    %3297 = vmatpush1.msra.mxu0 0.0
    %3298 = vmatprep.subr.mxu0 0.0
    %3299 = vmatpush1.msra.mxu0 0.0
    %3300 = vmatprep.subr.mxu0 0.0
    %3301 = vmatpush1.msra.mxu0 0.0
    %3302 = vmatprep.subr.mxu0 0.0
    %3303 = vmatpush1.msra.mxu0 0.0
    %3304 = vmatprep.subr.mxu0 0.0
    %3305 = vmatpush1.msra.mxu0 0.0
    %3306 = vmatprep.subr.mxu0 0.0
    %3307 = vmatpush1.msra.mxu0 0.0
    %3308 = vmatprep.subr.mxu0 0.0
    %3309 = vmatpush1.msra.mxu0 0.0
    %3310 = vmatprep.subr.mxu0 0.0
    %3311 = vmatpush1.msra.mxu0 0.0
    %3312 = vmatprep.subr.mxu0 0.0
    %3313 = vmatpush1.msra.mxu0 0.0
    %3314 = vmatprep.subr.mxu0 0.0
    %3315 = vmatpush1.msra.mxu0 0.0
    %3316 = vmatprep.subr.mxu0 0.0
    %3317 = vmatpush1.msra.mxu0 0.0
    %3318 = vmatprep.subr.mxu0 0.0
    %3319 = vmatpush1.msra.mxu0 0.0
    %3320 = vmatprep.subr.mxu0 0.0
    %3321 = vmatpush1.msra.mxu0 0.0
    %3322 = vmatprep.subr.mxu0 0.0
    %3323 = vmatpush1.msra.mxu0 0.0
    %3324 = vmatprep.subr.mxu0 0.0
    %3325 = vmatpush1.msra.mxu0 0.0
    %3326 = vmatprep.subr.mxu0 0.0
    %3327 = vmatpush1.msra.mxu0 0.0
    %3328 = vmatprep.mubr.f32.mxu0 0.0
    %3329 = vmatmul.mubr.f32.gmra.mrb[0].mxu0 %v3259
    %v3330 = vpop.f32.mrb[0].mxu0
    %v3331 = vadd.f32 %v90, %v3330
    %v3332 = vpop.f32.mrb[0].mxu0
    %3333 = vmatprep.mubr.f32.mxu0 0.0
    %3334 = vmatmul.mubr.f32.gmra.mrb[0].mxu0 %v3262
    %v3335 = vpop.f32.mrb[0].mxu0
    %v3336 = vadd.f32 %v90, %v3335
    %v3337 = vpop.f32.mrb[0].mxu0
    %3338 = vdwg.mxu0
    %3341 = vrot.lane.b32.xlu0 %v3331, 28
    %v3342 = vpop.permute.xlu0 %3341
    %3343 = vrot.lane.b32.xlu0 %v3336, 28
    %v3344 = vpop.permute.xlu0 %3343
    %vm3347 = vcmask 261344
    %3348 = vst.msk [vmem:[#allocation9] sm:$0xff] %vm3347, %v3342
    %3349 = vst.msk [vmem:[#allocation9 + $0x8] sm:$0xff] %vm3347, %v3344
    // Predicated region
    $region42: #{tpu_custom_call.1} parent=1 // pred_check
      _
    $region43: #{tpu_custom_call.1} parent=1 // pred_check_branch
      %3351 = sbr.rel (0) target = $region45
    $region44: #{tpu_custom_call.1} parent=1 // pred_region
      %s3353 = ssub.s32 256, 256
      %3354 = vsyncadd [#allocation4], %s3353
      %s3355 = sshll.u32 [#allocation9], 4
      %s3356 = int_to_ptr.vmem [resolvable:$true] %s3355
      %3361 = dma.vmem_to_hbm [thread:$0]  %s3356, 256, %s7, [#allocation4], 128, 128, 8
    $region45: #{tpu_custom_call.1} parent=1 // pred_fallthru
      _
    // Predicated region
    $region46: #{tpu_custom_call.1} parent=1 // pred_check
      _
    $region47: #{tpu_custom_call.1} parent=1 // pred_check_branch
      %3363 = sbr.rel (0) target = $region49
    $region48: #{tpu_custom_call.1} parent=1 // pred_region
      %3364 = dma.done [#allocation4], 256
    $region49: #{tpu_custom_call.1} parent=1 // pred_fallthru
      _
    %3365 = vsyncpa [#allocation3], 1
    %3366 = vsyncpa [#allocation7], 1
    %3367 = vsyncpa [#allocation4], 1
    %3368 = vsyncpa [#allocation5], 1

</llo_original>
